<compile_context>
chip_gen: v7x
topology: tpu7x:2x2x1
jax: 0.10.0
libtpu: 0.0.40
codegen_flags: <defaults>
</compile_context>

<pallas_src>
import functools

import jax
import jax.numpy as jnp
from jax.experimental import pallas as pl
from jax.experimental.pallas import tpu as pltpu

LOG_SIG_MAX = 2.0
LOG_SIG_MIN = -20.0


def conv2d_size_out(size, kernel_size, stride):
    return (size - (kernel_size - 1) - 1) // stride + 1


def _vmem_spec():
    return pl.BlockSpec(memory_space=pltpu.MemorySpace.VMEM)


# ----------------------------------------------------------------------------
# The single fused kernel.
#
#   p1_ref  : (oh1*oh1*bp, 64*C)  conv1 K=256 im2col, rows ordered (ow, oh, b),
#                                 bf16 (exact for uint8 frames), /255 folded
#                                 into w1 instead.
#   act_ref : (bp, 1) int32       discrete policy action.
#   w*_ref  : GEMM weights pre-packed to (K, N); dtype = MXU operand dtype.
#   out_ref : (bp, 256) f32       lanes [0:128) mean, [128:256) std.
#   y1_scr  : (oh1*bp, oh1*32)    VMEM scratch; rows=(oh, b), lanes=(ow, c).
# ----------------------------------------------------------------------------
def _fused_kernel(p1_ref, act_ref, w1_ref, b1_ref, w2_ref, b2_ref,
                  w3_ref, b3_ref, fcw_ref, fcb_ref, we_ref, wa_ref, bt_ref,
                  hw_ref, hb_ref, out_ref, y1_scr, *, bp, oh1, oh2, action_n):
    cdt = w1_ref.dtype            # MXU operand dtype (f32 or bf16)
    c1 = w1_ref.shape[1]          # 32 conv1 output channels

    # --- conv1: one K=256 GEMM, f32 accumulate, ReLU in f32 -----------------
    y1 = jnp.dot(p1_ref[...].astype(cdt), w1_ref[...],
                 preferred_element_type=jnp.float32)
    y1 = jnp.maximum(y1 + b1_ref[...], 0.0)          # (oh1*oh1*bp, 32)

    # --- park y1 in VMEM, re-laid out so conv2 patches are aligned slices ---
    # scratch[oh*bp + b, ow*32 + c] = y1[b, oh, ow, c]; the p1 row order
    # (ow, oh, b) makes each store a contiguous row block of y1.
    for ow in range(oh1):
        y1_scr[:, ow * c1:(ow + 1) * c1] = y1[ow * oh1 * bp:(ow + 1) * oh1 * bp, :]

    # --- conv2 (one K=512 GEMM per 3x3 position) fused with conv3 -----------
    c3 = w3_ref.shape[1]                              # 32
    kc3 = w3_ref.shape[0] // (oh2 * oh2)              # 64 channels per tap
    acc3 = jnp.zeros((bp, c3), jnp.float32)
    for i in range(oh2):
        for j in range(oh2):
            # rows (2i+kh)*bp (bp-aligned), lanes [64j, 64j+128): K = (kh, kw, c)
            patch = jnp.concatenate(
                [y1_scr[(2 * i + kh) * bp:(2 * i + kh + 1) * bp,
                        2 * j * c1:(2 * j + 4) * c1] for kh in range(4)],
                axis=1)                               # (bp, 512)
            y2 = jnp.dot(patch.astype(cdt), w2_ref[...],
                         preferred_element_type=jnp.float32)
            y2 = jnp.maximum(y2 + b2_ref[...], 0.0)   # (bp, 64)
            p = i * oh2 + j                           # conv3 tap (output is 1x1)
            acc3 = acc3 + jnp.dot(y2.astype(cdt),
                                  w3_ref[p * kc3:(p + 1) * kc3, :],
                                  preferred_element_type=jnp.float32)
    flat = jnp.maximum(acc3 + b3_ref[...], 0.0)       # (bp, 32) == Flatten

    # --- fc ------------------------------------------------------------------
    emb = jnp.dot(flat.astype(cdt), fcw_ref[...],
                  preferred_element_type=jnp.float32)
    emb = jnp.maximum(emb + fcb_ref[...], 0.0)        # (bp, hidden)

    # --- trunk: one-hot(action) built from an iota compare, applied as a
    #     second small GEMM against the action rows of the split trunk weight.
    onehot = (jax.lax.broadcasted_iota(jnp.int32, (bp, action_n), 1)
              == act_ref[...]).astype(cdt)
    h = jnp.dot(emb.astype(cdt), we_ref[...], preferred_element_type=jnp.float32)
    h = h + jnp.dot(onehot, wa_ref[...], preferred_element_type=jnp.float32)
    h = jnp.maximum(h + bt_ref[...], 0.0)             # (bp, hidden // 2)

    # --- fused mean/std head: single lane-dense (bp, 256) slab --------------
    ho = jnp.dot(h.astype(cdt), hw_ref[...],
                 preferred_element_type=jnp.float32) + hb_ref[...]
    out_ref[:, :128] = ho[:, :128]
    out_ref[:, 128:] = jnp.exp(jnp.clip(ho[:, 128:], LOG_SIG_MIN, LOG_SIG_MAX))


def fused_call(p1, acts, kp, *, bp, oh1, oh2, action_n):
    kern = functools.partial(_fused_kernel, bp=bp, oh1=oh1, oh2=oh2,
                             action_n=action_n)
    c1 = kp["w1"].shape[1]
    return pl.pallas_call(
        kern,
        out_shape=jax.ShapeDtypeStruct((bp, 256), jnp.float32),
        in_specs=[_vmem_spec() for _ in range(15)],
        out_specs=_vmem_spec(),
        scratch_shapes=[pltpu.VMEM((oh1 * bp, oh1 * c1), jnp.float32)],
        compiler_params=pltpu.CompilerParams(vmem_limit_bytes=32 * 1024 * 1024),
    )(p1, acts, kp["w1"], kp["b1"], kp["w2"], kp["b2"], kp["w3"], kp["b3"],
      kp["fcw"], kp["fcb"], kp["w_emb"], kp["w_act"], kp["b_tr"],
      kp["head_w"], kp["head_b"])


# ----------------------------------------------------------------------------
# Forward pass (matches CNNBase.forward).  The only wrapper work is the
# K=256 conv1 im2col built from a space-to-depth relayout in bf16 (no f32
# up-cast of obs) and padding the batch to a multiple of 8 rows.
# ----------------------------------------------------------------------------
def cnn_base_forward(kp, obs, policy_action, *, action_n, embed_size):
    B, C, H, W = obs.shape
    oh1 = conv2d_size_out(H, 8, 4)
    oh2 = conv2d_size_out(oh1, 4, 2)
    oh3 = conv2d_size_out(oh2, 3, 1)
    assert H == W and H % 4 == 0 and H // 4 == oh1 + 1
    assert oh3 == 1, "kernel written for conv3 output 1x1 (e.g. 36x36 input)"

    bp = max(8, ((B + 7) // 8) * 8)                   # sublane-aligned batch rows

    # keep obs narrow: bf16 is exact for uint8 frame values 0..255.
    x = obs.astype(jnp.bfloat16)
    if bp != B:
        x = jnp.pad(x, ((0, bp - B), (0, 0), (0, 0), (0, 0)))
    x = x.transpose(0, 2, 3, 1)                       # (bp, H, W, C)
    x = x.reshape(bp, H // 4, 4, W // 4, 4, C).transpose(0, 1, 3, 2, 4, 5)
    x = x.reshape(bp, H // 4, W // 4, 16 * C)         # (bp, 9, 9, 16C)
    # K=256 im2col: concat the 2x2 space-to-depth taps along the lane axis;
    # K order = (ib, jb, rh, rw, c) to match the w1 packing.
    p1 = jnp.concatenate(
        [x[:, ib:ib + oh1, jb:jb + oh1, :] for ib in (0, 1) for jb in (0, 1)],
        axis=-1)                                      # (bp, 8, 8, 64C)
    # rows ordered (ow, oh, b) so the kernel's scratch relayout is contiguous.
    p1 = p1.transpose(2, 1, 0, 3).reshape(oh1 * oh1 * bp, 64 * C)
    # TODO(synk): at scale, fold this im2col into a batch-gridded BlockSpec.

    acts = policy_action.astype(jnp.int32).reshape(B, 1)
    if bp != B:
        acts = jnp.pad(acts, ((0, bp - B), (0, 0)))

    out = fused_call(p1, acts, kp, bp=bp, oh1=oh1, oh2=oh2, action_n=action_n)
    mean = out[:B, :embed_size]
    std = out[:B, 128:128 + embed_size]
    return mean, std


# ----------------------------------------------------------------------------
# Parameters: torch-layout init (mirrors CNNBase.__init__), then packed into
# kernel-friendly (K, N) layouts.  mxu_dtype=bf16 packs the GEMM weights for
# the bf16 MXU path on v6e/v7x (elementwise math stays f32 in-kernel).
# ----------------------------------------------------------------------------
def orthogonal_init(key, shape, gain=1.0):
    rows = shape[0]
    cols = 1
    for d in shape[1:]:
        cols *= d
    n = max(rows, cols)
    a = jax.random.normal(key, (n, n), dtype=jnp.float32)
    q, _ = jnp.linalg.qr(a)
    return (gain * q[:rows, :cols]).reshape(shape)


def make_torch_params(key, num_inputs, input_size, action_n, hidden_size,
                      embed_size):
    h, w = input_size
    h1, w1 = conv2d_size_out(h, 8, 4), conv2d_size_out(w, 8, 4)
    h2, w2 = conv2d_size_out(h1, 4, 2), conv2d_size_out(w1, 4, 2)
    h3, w3 = conv2d_size_out(h2, 3, 1), conv2d_size_out(w2, 3, 1)
    flat = 32 * h3 * w3

    relu_gain = jnp.sqrt(2.0)
    ks = jax.random.split(key, 8)
    p = {}
    p["conv1_w"] = orthogonal_init(ks[0], (32, num_inputs, 8, 8), relu_gain)
    p["conv1_b"] = jnp.zeros((32,), jnp.float32)
    p["conv2_w"] = orthogonal_init(ks[1], (64, 32, 4, 4), relu_gain)
    p["conv2_b"] = jnp.zeros((64,), jnp.float32)
    p["conv3_w"] = orthogonal_init(ks[2], (32, 64, 3, 3), relu_gain)
    p["conv3_b"] = jnp.zeros((32,), jnp.float32)
    p["fc_w"] = orthogonal_init(ks[3], (hidden_size, flat), relu_gain)
    p["fc_b"] = jnp.zeros((hidden_size,), jnp.float32)
    p["trunk_w"] = orthogonal_init(
        ks[4], (hidden_size // 2, hidden_size + action_n), jnp.sqrt(2.0))
    p["trunk_b"] = jnp.zeros((hidden_size // 2,), jnp.float32)
    bound = 1.0 / jnp.sqrt(jnp.float32(hidden_size // 2))
    p["mean_w"] = jax.random.uniform(
        ks[5], (embed_size, hidden_size // 2), jnp.float32, -bound, bound)
    p["mean_b"] = jax.random.uniform(
        ks[6], (embed_size,), jnp.float32, -bound, bound)
    p["std_w"] = jax.random.uniform(
        ks[7], (embed_size, hidden_size // 2), jnp.float32, -bound, bound)
    p["std_b"] = jnp.zeros((embed_size,), jnp.float32)
    return p


def pack_params(tp, *, hidden_size, embed_size, mxu_dtype=jnp.float32):
    assert embed_size <= 128
    p = {}
    # conv1: (O, C, 8, 8) -> (256, 32) with K order (ib, jb, rh, rw, c),
    # kh = 4*ib + rh, kw = 4*jb + rw; /255 folded in (bias NOT scaled).
    w1 = tp["conv1_w"]
    out_c, C, _, _ = w1.shape
    w1 = w1.reshape(out_c, C, 2, 4, 2, 4)              # (o, c, ib, rh, jb, rw)
    w1 = w1.transpose(2, 4, 3, 5, 1, 0)                # (ib, jb, rh, rw, c, o)
    p["w1"] = (w1.reshape(64 * C, out_c) / 255.0).astype(mxu_dtype)
    p["b1"] = tp["conv1_b"].reshape(1, -1)
    # conv2 / conv3 as GEMMs with (kh, kw, cin) K flattening.
    p["w2"] = tp["conv2_w"].transpose(2, 3, 1, 0).reshape(4 * 4 * 32, 64).astype(mxu_dtype)
    p["b2"] = tp["conv2_b"].reshape(1, -1)
    p["w3"] = tp["conv3_w"].transpose(2, 3, 1, 0).reshape(3 * 3 * 64, 32).astype(mxu_dtype)
    p["b3"] = tp["conv3_b"].reshape(1, -1)
    # fc / trunk, pre-transposed to (in, out); trunk split into embedding /
    # action blocks so no concat is needed at runtime.
    p["fcw"] = tp["fc_w"].T.astype(mxu_dtype)
    p["fcb"] = tp["fc_b"].reshape(1, -1)
    wt = tp["trunk_w"].T                               # (hidden + A, hidden // 2)
    p["w_emb"] = wt[:hidden_size, :].astype(mxu_dtype)
    p["w_act"] = wt[hidden_size:, :].astype(mxu_dtype)
    p["b_tr"] = tp["trunk_b"].reshape(1, -1)
    # fused, lane-padded head: lanes [0:E] = mean, lanes [128:128+E] = log_std.
    half = hidden_size // 2
    hw = jnp.zeros((half, 256), jnp.float32)
    hw = hw.at[:, :embed_size].set(tp["mean_w"].T)
    hw = hw.at[:, 128:128 + embed_size].set(tp["std_w"].T)
    hb = jnp.zeros((1, 256), jnp.float32)
    hb = hb.at[0, :embed_size].set(tp["mean_b"])
    hb = hb.at[0, 128:128 + embed_size].set(tp["std_b"])
    p["head_w"] = hw.astype(mxu_dtype)
    p["head_b"] = hb
    return p


# ----------------------------------------------------------------------------
# Pure-JAX/XLA reference of the torch forward (numeric sanity check).
# ----------------------------------------------------------------------------
def reference_forward(tp, obs, policy_action, action_n):
    dn = ("NCHW", "OIHW", "NCHW")
    x = obs.astype(jnp.float32) / 255.0
    x = jax.lax.conv_general_dilated(x, tp["conv1_w"], (4, 4), "VALID",
                                     dimension_numbers=dn)
    x = jax.nn.relu(x + tp["conv1_b"].reshape(1, -1, 1, 1))
    x = jax.lax.conv_general_dilated(x, tp["conv2_w"], (2, 2), "VALID",
                                     dimension_numbers=dn)
    x = jax.nn.relu(x + tp["conv2_b"].reshape(1, -1, 1, 1))
    x = jax.lax.conv_general_dilated(x, tp["conv3_w"], (1, 1), "VALID",
                                     dimension_numbers=dn)
    x = jax.nn.relu(x + tp["conv3_b"].reshape(1, -1, 1, 1))
    x = x.reshape(x.shape[0], -1)
    emb = jax.nn.relu(x @ tp["fc_w"].T + tp["fc_b"])
    onehot = jax.nn.one_hot(policy_action[:, 0], action_n, dtype=jnp.float32)
    h = jnp.concatenate([emb, onehot], axis=1)
    h = jax.nn.relu(h @ tp["trunk_w"].T + tp["trunk_b"])
    mean = h @ tp["mean_w"].T + tp["mean_b"]
    log_std = jnp.clip(h @ tp["std_w"].T + tp["std_b"],
                       LOG_SIG_MIN, LOG_SIG_MAX)
    return mean, jnp.exp(log_std)


if __name__ == "__main__":
    # 36x36 input -> 8x8 -> 3x3 -> 1x1 conv stack, hidden=64, embed=1.
    B, num_inputs, H, W = 2, 4, 36, 36
    action_n = 6
    hidden_size = 64
    embed_size = 1

    tp = make_torch_params(jax.random.PRNGKey(42), num_inputs, (H, W),
                           action_n, hidden_size, embed_size)

    key = jax.random.PRNGKey(0)
    k_obs, k_act = jax.random.split(key)
    # uint8 frames (exactly representable in bf16), like real Atari obs.
    obs = jax.random.randint(k_obs, (B, num_inputs, H, W), 0, 256,
                             dtype=jnp.int32).astype(jnp.uint8)
    policy_action = jax.random.randint(k_act, (B, 1), 0, action_n,
                                       dtype=jnp.int32)

    fwd = jax.jit(functools.partial(cnn_base_forward,
                                    action_n=action_n, embed_size=embed_size))
    ref_mean, ref_std = reference_forward(tp, obs, policy_action, action_n)

    # --- f32 MXU operands: bit-for-bit-ish check against the XLA reference ---
    kp32 = pack_params(tp, hidden_size=hidden_size, embed_size=embed_size)
    mean, std = fwd(kp32, obs, policy_action)
    jax.block_until_ready((mean, std))
    assert mean.shape == (B, embed_size) and std.shape == (B, embed_size)
    assert bool(jnp.all(std > 0.0))
    assert bool(jnp.allclose(mean, ref_mean, rtol=1e-3, atol=1e-3))
    assert bool(jnp.allclose(std, ref_std, rtol=1e-3, atol=1e-3))

    # --- bf16 MXU operands (v6e/v7x throughput path): loose tolerance check ---
    kp_bf16 = pack_params(tp, hidden_size=hidden_size, embed_size=embed_size,
                          mxu_dtype=jnp.bfloat16)
    mean_bf, std_bf = fwd(kp_bf16, obs, policy_action)
    jax.block_until_ready((mean_bf, std_bf))
    assert bool(jnp.all(jnp.isfinite(mean_bf))) and bool(jnp.all(std_bf > 0.0))
    assert bool(jnp.allclose(mean_bf, ref_mean, rtol=0.2, atol=0.2))
    assert bool(jnp.allclose(std_bf, ref_std, rtol=0.2, atol=0.2))

    print("KERNEL_OK")
</pallas_src>

<mosaic_0001>
module attributes {stable_mosaic.version = 11 : i64} {
  func.func @_fused_kernel(%arg0: memref<512x256xbf16, #tpu.memory_space<vmem>>, %arg1: memref<8x1xi32, #tpu.memory_space<vmem>>, %arg2: memref<256x32xf32, #tpu.memory_space<vmem>>, %arg3: memref<1x32xf32, #tpu.memory_space<vmem>>, %arg4: memref<512x64xf32, #tpu.memory_space<vmem>>, %arg5: memref<1x64xf32, #tpu.memory_space<vmem>>, %arg6: memref<576x32xf32, #tpu.memory_space<vmem>>, %arg7: memref<1x32xf32, #tpu.memory_space<vmem>>, %arg8: memref<32x64xf32, #tpu.memory_space<vmem>>, %arg9: memref<1x64xf32, #tpu.memory_space<vmem>>, %arg10: memref<64x32xf32, #tpu.memory_space<vmem>>, %arg11: memref<6x32xf32, #tpu.memory_space<vmem>>, %arg12: memref<1x32xf32, #tpu.memory_space<vmem>>, %arg13: memref<32x256xf32, #tpu.memory_space<vmem>>, %arg14: memref<1x256xf32, #tpu.memory_space<vmem>>, %arg15: memref<8x256xf32, #tpu.memory_space<vmem>>, %arg16: memref<64x256xf32, #tpu.memory_space<vmem>>) attributes {dimension_semantics = [], scalar_prefetch = 0 : i64, scratch_operands = 1 : i64, tpu.core_type = #tpu.core_type<tc>} {
    %c0 = arith.constant 0 : index
    %c0_0 = arith.constant 0 : index
    %0 = vector.load %arg0[%c0, %c0_0] : memref<512x256xbf16, #tpu.memory_space<vmem>>, vector<512x256xbf16>
    %1 = arith.extf %0 : vector<512x256xbf16> to vector<512x256xf32>
    %c0_1 = arith.constant 0 : index
    %c0_2 = arith.constant 0 : index
    %2 = vector.load %arg2[%c0_1, %c0_2] : memref<256x32xf32, #tpu.memory_space<vmem>>, vector<256x32xf32>
    %cst = arith.constant dense<0.000000e+00> : vector<512x32xf32>
    %3 = tpu.matmul %1, %2, %cst {dimension_numbers = #tpu.dot_dimension_numbers<[1], [0], [0], [1], [0, 0, 1, 1], [], []>} : vector<512x256xf32>, vector<256x32xf32>, vector<512x32xf32> -> vector<512x32xf32>
    %c0_3 = arith.constant 0 : index
    %c0_4 = arith.constant 0 : index
    %4 = vector.load %arg3[%c0_3, %c0_4] : memref<1x32xf32, #tpu.memory_space<vmem>>, vector<1x32xf32>
    %5 = vector.broadcast %4 : vector<1x32xf32> to vector<512x32xf32>
    %6 = arith.addf %3, %5 : vector<512x32xf32>
    %cst_5 = arith.constant 0.000000e+00 : f32
    %7 = vector.broadcast %cst_5 : f32 to vector<512x32xf32>
    %8 = arith.maximumf %6, %7 : vector<512x32xf32>
    %9 = vector.extract_strided_slice %8 {offsets = [0, 0], sizes = [64, 32], strides = [1, 1]} : vector<512x32xf32> to vector<64x32xf32>
    %c0_6 = arith.constant 0 : index
    %c0_7 = arith.constant 0 : index
    %10 = vector.load %arg16[%c0_6, %c0_7] : memref<64x256xf32, #tpu.memory_space<vmem>>, vector<64x32xf32>
    tpu.vector_store %arg16[%c0_6, %c0_7], %9 {strides = array<i32>} : memref<64x256xf32, #tpu.memory_space<vmem>>, vector<64x32xf32>,
    %11 = vector.extract_strided_slice %8 {offsets = [64, 0], sizes = [64, 32], strides = [1, 1]} : vector<512x32xf32> to vector<64x32xf32>
    %c0_8 = arith.constant 0 : index
    %c32 = arith.constant 32 : index
    %12 = vector.load %arg16[%c0_8, %c32] : memref<64x256xf32, #tpu.memory_space<vmem>>, vector<64x32xf32>
    tpu.vector_store %arg16[%c0_8, %c32], %11 {strides = array<i32>} : memref<64x256xf32, #tpu.memory_space<vmem>>, vector<64x32xf32>,
    %13 = vector.extract_strided_slice %8 {offsets = [128, 0], sizes = [64, 32], strides = [1, 1]} : vector<512x32xf32> to vector<64x32xf32>
    %c0_9 = arith.constant 0 : index
    %c64 = arith.constant 64 : index
    %14 = vector.load %arg16[%c0_9, %c64] : memref<64x256xf32, #tpu.memory_space<vmem>>, vector<64x32xf32>
    tpu.vector_store %arg16[%c0_9, %c64], %13 {strides = array<i32>} : memref<64x256xf32, #tpu.memory_space<vmem>>, vector<64x32xf32>,
    %15 = vector.extract_strided_slice %8 {offsets = [192, 0], sizes = [64, 32], strides = [1, 1]} : vector<512x32xf32> to vector<64x32xf32>
    %c0_10 = arith.constant 0 : index
    %c96 = arith.constant 96 : index
    %16 = vector.load %arg16[%c0_10, %c96] : memref<64x256xf32, #tpu.memory_space<vmem>>, vector<64x32xf32>
    tpu.vector_store %arg16[%c0_10, %c96], %15 {strides = array<i32>} : memref<64x256xf32, #tpu.memory_space<vmem>>, vector<64x32xf32>,
    %17 = vector.extract_strided_slice %8 {offsets = [256, 0], sizes = [64, 32], strides = [1, 1]} : vector<512x32xf32> to vector<64x32xf32>
    %c0_11 = arith.constant 0 : index
    %c128 = arith.constant 128 : index
    %18 = vector.load %arg16[%c0_11, %c128] : memref<64x256xf32, #tpu.memory_space<vmem>>, vector<64x32xf32>
    tpu.vector_store %arg16[%c0_11, %c128], %17 {strides = array<i32>} : memref<64x256xf32, #tpu.memory_space<vmem>>, vector<64x32xf32>,
    %19 = vector.extract_strided_slice %8 {offsets = [320, 0], sizes = [64, 32], strides = [1, 1]} : vector<512x32xf32> to vector<64x32xf32>
    %c0_12 = arith.constant 0 : index
    %c160 = arith.constant 160 : index
    %20 = vector.load %arg16[%c0_12, %c160] : memref<64x256xf32, #tpu.memory_space<vmem>>, vector<64x32xf32>
    tpu.vector_store %arg16[%c0_12, %c160], %19 {strides = array<i32>} : memref<64x256xf32, #tpu.memory_space<vmem>>, vector<64x32xf32>,
    %21 = vector.extract_strided_slice %8 {offsets = [384, 0], sizes = [64, 32], strides = [1, 1]} : vector<512x32xf32> to vector<64x32xf32>
    %c0_13 = arith.constant 0 : index
    %c192 = arith.constant 192 : index
    %22 = vector.load %arg16[%c0_13, %c192] : memref<64x256xf32, #tpu.memory_space<vmem>>, vector<64x32xf32>
    tpu.vector_store %arg16[%c0_13, %c192], %21 {strides = array<i32>} : memref<64x256xf32, #tpu.memory_space<vmem>>, vector<64x32xf32>,
    %23 = vector.extract_strided_slice %8 {offsets = [448, 0], sizes = [64, 32], strides = [1, 1]} : vector<512x32xf32> to vector<64x32xf32>
    %c0_14 = arith.constant 0 : index
    %c224 = arith.constant 224 : index
    %24 = vector.load %arg16[%c0_14, %c224] : memref<64x256xf32, #tpu.memory_space<vmem>>, vector<64x32xf32>
    tpu.vector_store %arg16[%c0_14, %c224], %23 {strides = array<i32>} : memref<64x256xf32, #tpu.memory_space<vmem>>, vector<64x32xf32>,
    %cst_15 = arith.constant 0.000000e+00 : f32
    %25 = vector.broadcast %cst_15 : f32 to vector<8x32xf32>
    %c0_16 = arith.constant 0 : index
    %c0_17 = arith.constant 0 : index
    %26 = vector.load %arg16[%c0_16, %c0_17] : memref<64x256xf32, #tpu.memory_space<vmem>>, vector<8x128xf32>
    %c8 = arith.constant 8 : index
    %c0_18 = arith.constant 0 : index
    %27 = vector.load %arg16[%c8, %c0_18] : memref<64x256xf32, #tpu.memory_space<vmem>>, vector<8x128xf32>
    %c16 = arith.constant 16 : index
    %c0_19 = arith.constant 0 : index
    %28 = vector.load %arg16[%c16, %c0_19] : memref<64x256xf32, #tpu.memory_space<vmem>>, vector<8x128xf32>
    %c24 = arith.constant 24 : index
    %c0_20 = arith.constant 0 : index
    %29 = vector.load %arg16[%c24, %c0_20] : memref<64x256xf32, #tpu.memory_space<vmem>>, vector<8x128xf32>
    %30 = tpu.concatenate %26, %27, %28, %29 in 1 : vector<8x128xf32>, vector<8x128xf32>, vector<8x128xf32>, vector<8x128xf32> -> vector<8x512xf32>
    %c0_21 = arith.constant 0 : index
    %c0_22 = arith.constant 0 : index
    %31 = vector.load %arg4[%c0_21, %c0_22] : memref<512x64xf32, #tpu.memory_space<vmem>>, vector<512x64xf32>
    %cst_23 = arith.constant dense<0.000000e+00> : vector<8x64xf32>
    %32 = tpu.matmul %30, %31, %cst_23 {dimension_numbers = #tpu.dot_dimension_numbers<[1], [0], [0], [1], [0, 0, 1, 1], [], []>} : vector<8x512xf32>, vector<512x64xf32>, vector<8x64xf32> -> vector<8x64xf32>
    %c0_24 = arith.constant 0 : index
    %c0_25 = arith.constant 0 : index
    %33 = vector.load %arg5[%c0_24, %c0_25] : memref<1x64xf32, #tpu.memory_space<vmem>>, vector<1x64xf32>
    %34 = vector.broadcast %33 : vector<1x64xf32> to vector<8x64xf32>
    %35 = arith.addf %32, %34 : vector<8x64xf32>
    %cst_26 = arith.constant 0.000000e+00 : f32
    %36 = vector.broadcast %cst_26 : f32 to vector<8x64xf32>
    %37 = arith.maximumf %35, %36 : vector<8x64xf32>
    %c0_27 = arith.constant 0 : index
    %c0_28 = arith.constant 0 : index
    %38 = vector.load %arg6[%c0_27, %c0_28] : memref<576x32xf32, #tpu.memory_space<vmem>>, vector<64x32xf32>
    %cst_29 = arith.constant dense<0.000000e+00> : vector<8x32xf32>
    %39 = tpu.matmul %37, %38, %cst_29 {dimension_numbers = #tpu.dot_dimension_numbers<[1], [0], [0], [1], [0, 0, 1, 1], [], []>} : vector<8x64xf32>, vector<64x32xf32>, vector<8x32xf32> -> vector<8x32xf32>
    %40 = arith.addf %25, %39 : vector<8x32xf32>
    %c0_30 = arith.constant 0 : index
    %c64_31 = arith.constant 64 : index
    %41 = vector.load %arg16[%c0_30, %c64_31] : memref<64x256xf32, #tpu.memory_space<vmem>>, vector<8x128xf32>
    %c8_32 = arith.constant 8 : index
    %c64_33 = arith.constant 64 : index
    %42 = vector.load %arg16[%c8_32, %c64_33] : memref<64x256xf32, #tpu.memory_space<vmem>>, vector<8x128xf32>
    %c16_34 = arith.constant 16 : index
    %c64_35 = arith.constant 64 : index
    %43 = vector.load %arg16[%c16_34, %c64_35] : memref<64x256xf32, #tpu.memory_space<vmem>>, vector<8x128xf32>
    %c24_36 = arith.constant 24 : index
    %c64_37 = arith.constant 64 : index
    %44 = vector.load %arg16[%c24_36, %c64_37] : memref<64x256xf32, #tpu.memory_space<vmem>>, vector<8x128xf32>
    %45 = tpu.concatenate %41, %42, %43, %44 in 1 : vector<8x128xf32>, vector<8x128xf32>, vector<8x128xf32>, vector<8x128xf32> -> vector<8x512xf32>
    %c0_38 = arith.constant 0 : index
    %c0_39 = arith.constant 0 : index
    %46 = vector.load %arg4[%c0_38, %c0_39] : memref<512x64xf32, #tpu.memory_space<vmem>>, vector<512x64xf32>
    %cst_40 = arith.constant dense<0.000000e+00> : vector<8x64xf32>
    %47 = tpu.matmul %45, %46, %cst_40 {dimension_numbers = #tpu.dot_dimension_numbers<[1], [0], [0], [1], [0, 0, 1, 1], [], []>} : vector<8x512xf32>, vector<512x64xf32>, vector<8x64xf32> -> vector<8x64xf32>
    %c0_41 = arith.constant 0 : index
    %c0_42 = arith.constant 0 : index
    %48 = vector.load %arg5[%c0_41, %c0_42] : memref<1x64xf32, #tpu.memory_space<vmem>>, vector<1x64xf32>
    %49 = vector.broadcast %48 : vector<1x64xf32> to vector<8x64xf32>
    %50 = arith.addf %47, %49 : vector<8x64xf32>
    %cst_43 = arith.constant 0.000000e+00 : f32
    %51 = vector.broadcast %cst_43 : f32 to vector<8x64xf32>
    %52 = arith.maximumf %50, %51 : vector<8x64xf32>
    %c64_44 = arith.constant 64 : index
    %c0_45 = arith.constant 0 : index
    %53 = vector.load %arg6[%c64_44, %c0_45] : memref<576x32xf32, #tpu.memory_space<vmem>>, vector<64x32xf32>
    %cst_46 = arith.constant dense<0.000000e+00> : vector<8x32xf32>
    %54 = tpu.matmul %52, %53, %cst_46 {dimension_numbers = #tpu.dot_dimension_numbers<[1], [0], [0], [1], [0, 0, 1, 1], [], []>} : vector<8x64xf32>, vector<64x32xf32>, vector<8x32xf32> -> vector<8x32xf32>
    %55 = arith.addf %40, %54 : vector<8x32xf32>
    %c0_47 = arith.constant 0 : index
    %c128_48 = arith.constant 128 : index
    %56 = vector.load %arg16[%c0_47, %c128_48] : memref<64x256xf32, #tpu.memory_space<vmem>>, vector<8x128xf32>
    %c8_49 = arith.constant 8 : index
    %c128_50 = arith.constant 128 : index
    %57 = vector.load %arg16[%c8_49, %c128_50] : memref<64x256xf32, #tpu.memory_space<vmem>>, vector<8x128xf32>
    %c16_51 = arith.constant 16 : index
    %c128_52 = arith.constant 128 : index
    %58 = vector.load %arg16[%c16_51, %c128_52] : memref<64x256xf32, #tpu.memory_space<vmem>>, vector<8x128xf32>
    %c24_53 = arith.constant 24 : index
    %c128_54 = arith.constant 128 : index
    %59 = vector.load %arg16[%c24_53, %c128_54] : memref<64x256xf32, #tpu.memory_space<vmem>>, vector<8x128xf32>
    %60 = tpu.concatenate %56, %57, %58, %59 in 1 : vector<8x128xf32>, vector<8x128xf32>, vector<8x128xf32>, vector<8x128xf32> -> vector<8x512xf32>
    %c0_55 = arith.constant 0 : index
    %c0_56 = arith.constant 0 : index
    %61 = vector.load %arg4[%c0_55, %c0_56] : memref<512x64xf32, #tpu.memory_space<vmem>>, vector<512x64xf32>
    %cst_57 = arith.constant dense<0.000000e+00> : vector<8x64xf32>
    %62 = tpu.matmul %60, %61, %cst_57 {dimension_numbers = #tpu.dot_dimension_numbers<[1], [0], [0], [1], [0, 0, 1, 1], [], []>} : vector<8x512xf32>, vector<512x64xf32>, vector<8x64xf32> -> vector<8x64xf32>
    %c0_58 = arith.constant 0 : index
    %c0_59 = arith.constant 0 : index
    %63 = vector.load %arg5[%c0_58, %c0_59] : memref<1x64xf32, #tpu.memory_space<vmem>>, vector<1x64xf32>
    %64 = vector.broadcast %63 : vector<1x64xf32> to vector<8x64xf32>
    %65 = arith.addf %62, %64 : vector<8x64xf32>
    %cst_60 = arith.constant 0.000000e+00 : f32
    %66 = vector.broadcast %cst_60 : f32 to vector<8x64xf32>
    %67 = arith.maximumf %65, %66 : vector<8x64xf32>
    %c128_61 = arith.constant 128 : index
    %c0_62 = arith.constant 0 : index
    %68 = vector.load %arg6[%c128_61, %c0_62] : memref<576x32xf32, #tpu.memory_space<vmem>>, vector<64x32xf32>
    %cst_63 = arith.constant dense<0.000000e+00> : vector<8x32xf32>
    %69 = tpu.matmul %67, %68, %cst_63 {dimension_numbers = #tpu.dot_dimension_numbers<[1], [0], [0], [1], [0, 0, 1, 1], [], []>} : vector<8x64xf32>, vector<64x32xf32>, vector<8x32xf32> -> vector<8x32xf32>
    %70 = arith.addf %55, %69 : vector<8x32xf32>
    %c16_64 = arith.constant 16 : index
    %c0_65 = arith.constant 0 : index
    %71 = vector.load %arg16[%c16_64, %c0_65] : memref<64x256xf32, #tpu.memory_space<vmem>>, vector<8x128xf32>
    %c24_66 = arith.constant 24 : index
    %c0_67 = arith.constant 0 : index
    %72 = vector.load %arg16[%c24_66, %c0_67] : memref<64x256xf32, #tpu.memory_space<vmem>>, vector<8x128xf32>
    %c32_68 = arith.constant 32 : index
    %c0_69 = arith.constant 0 : index
    %73 = vector.load %arg16[%c32_68, %c0_69] : memref<64x256xf32, #tpu.memory_space<vmem>>, vector<8x128xf32>
    %c40 = arith.constant 40 : index
    %c0_70 = arith.constant 0 : index
    %74 = vector.load %arg16[%c40, %c0_70] : memref<64x256xf32, #tpu.memory_space<vmem>>, vector<8x128xf32>
    %75 = tpu.concatenate %71, %72, %73, %74 in 1 : vector<8x128xf32>, vector<8x128xf32>, vector<8x128xf32>, vector<8x128xf32> -> vector<8x512xf32>
    %c0_71 = arith.constant 0 : index
    %c0_72 = arith.constant 0 : index
    %76 = vector.load %arg4[%c0_71, %c0_72] : memref<512x64xf32, #tpu.memory_space<vmem>>, vector<512x64xf32>
    %cst_73 = arith.constant dense<0.000000e+00> : vector<8x64xf32>
    %77 = tpu.matmul %75, %76, %cst_73 {dimension_numbers = #tpu.dot_dimension_numbers<[1], [0], [0], [1], [0, 0, 1, 1], [], []>} : vector<8x512xf32>, vector<512x64xf32>, vector<8x64xf32> -> vector<8x64xf32>
    %c0_74 = arith.constant 0 : index
    %c0_75 = arith.constant 0 : index
    %78 = vector.load %arg5[%c0_74, %c0_75] : memref<1x64xf32, #tpu.memory_space<vmem>>, vector<1x64xf32>
    %79 = vector.broadcast %78 : vector<1x64xf32> to vector<8x64xf32>
    %80 = arith.addf %77, %79 : vector<8x64xf32>
    %cst_76 = arith.constant 0.000000e+00 : f32
    %81 = vector.broadcast %cst_76 : f32 to vector<8x64xf32>
    %82 = arith.maximumf %80, %81 : vector<8x64xf32>
    %c192_77 = arith.constant 192 : index
    %c0_78 = arith.constant 0 : index
    %83 = vector.load %arg6[%c192_77, %c0_78] : memref<576x32xf32, #tpu.memory_space<vmem>>, vector<64x32xf32>
    %cst_79 = arith.constant dense<0.000000e+00> : vector<8x32xf32>
    %84 = tpu.matmul %82, %83, %cst_79 {dimension_numbers = #tpu.dot_dimension_numbers<[1], [0], [0], [1], [0, 0, 1, 1], [], []>} : vector<8x64xf32>, vector<64x32xf32>, vector<8x32xf32> -> vector<8x32xf32>
    %85 = arith.addf %70, %84 : vector<8x32xf32>
    %c16_80 = arith.constant 16 : index
    %c64_81 = arith.constant 64 : index
    %86 = vector.load %arg16[%c16_80, %c64_81] : memref<64x256xf32, #tpu.memory_space<vmem>>, vector<8x128xf32>
    %c24_82 = arith.constant 24 : index
    %c64_83 = arith.constant 64 : index
    %87 = vector.load %arg16[%c24_82, %c64_83] : memref<64x256xf32, #tpu.memory_space<vmem>>, vector<8x128xf32>
    %c32_84 = arith.constant 32 : index
    %c64_85 = arith.constant 64 : index
    %88 = vector.load %arg16[%c32_84, %c64_85] : memref<64x256xf32, #tpu.memory_space<vmem>>, vector<8x128xf32>
    %c40_86 = arith.constant 40 : index
    %c64_87 = arith.constant 64 : index
    %89 = vector.load %arg16[%c40_86, %c64_87] : memref<64x256xf32, #tpu.memory_space<vmem>>, vector<8x128xf32>
    %90 = tpu.concatenate %86, %87, %88, %89 in 1 : vector<8x128xf32>, vector<8x128xf32>, vector<8x128xf32>, vector<8x128xf32> -> vector<8x512xf32>
    %c0_88 = arith.constant 0 : index
    %c0_89 = arith.constant 0 : index
    %91 = vector.load %arg4[%c0_88, %c0_89] : memref<512x64xf32, #tpu.memory_space<vmem>>, vector<512x64xf32>
    %cst_90 = arith.constant dense<0.000000e+00> : vector<8x64xf32>
    %92 = tpu.matmul %90, %91, %cst_90 {dimension_numbers = #tpu.dot_dimension_numbers<[1], [0], [0], [1], [0, 0, 1, 1], [], []>} : vector<8x512xf32>, vector<512x64xf32>, vector<8x64xf32> -> vector<8x64xf32>
    %c0_91 = arith.constant 0 : index
    %c0_92 = arith.constant 0 : index
    %93 = vector.load %arg5[%c0_91, %c0_92] : memref<1x64xf32, #tpu.memory_space<vmem>>, vector<1x64xf32>
    %94 = vector.broadcast %93 : vector<1x64xf32> to vector<8x64xf32>
    %95 = arith.addf %92, %94 : vector<8x64xf32>
    %cst_93 = arith.constant 0.000000e+00 : f32
    %96 = vector.broadcast %cst_93 : f32 to vector<8x64xf32>
    %97 = arith.maximumf %95, %96 : vector<8x64xf32>
    %c256 = arith.constant 256 : index
    %c0_94 = arith.constant 0 : index
    %98 = vector.load %arg6[%c256, %c0_94] : memref<576x32xf32, #tpu.memory_space<vmem>>, vector<64x32xf32>
    %cst_95 = arith.constant dense<0.000000e+00> : vector<8x32xf32>
    %99 = tpu.matmul %97, %98, %cst_95 {dimension_numbers = #tpu.dot_dimension_numbers<[1], [0], [0], [1], [0, 0, 1, 1], [], []>} : vector<8x64xf32>, vector<64x32xf32>, vector<8x32xf32> -> vector<8x32xf32>
    %100 = arith.addf %85, %99 : vector<8x32xf32>
    %c16_96 = arith.constant 16 : index
    %c128_97 = arith.constant 128 : index
    %101 = vector.load %arg16[%c16_96, %c128_97] : memref<64x256xf32, #tpu.memory_space<vmem>>, vector<8x128xf32>
    %c24_98 = arith.constant 24 : index
    %c128_99 = arith.constant 128 : index
    %102 = vector.load %arg16[%c24_98, %c128_99] : memref<64x256xf32, #tpu.memory_space<vmem>>, vector<8x128xf32>
    %c32_100 = arith.constant 32 : index
    %c128_101 = arith.constant 128 : index
    %103 = vector.load %arg16[%c32_100, %c128_101] : memref<64x256xf32, #tpu.memory_space<vmem>>, vector<8x128xf32>
    %c40_102 = arith.constant 40 : index
    %c128_103 = arith.constant 128 : index
    %104 = vector.load %arg16[%c40_102, %c128_103] : memref<64x256xf32, #tpu.memory_space<vmem>>, vector<8x128xf32>
    %105 = tpu.concatenate %101, %102, %103, %104 in 1 : vector<8x128xf32>, vector<8x128xf32>, vector<8x128xf32>, vector<8x128xf32> -> vector<8x512xf32>
    %c0_104 = arith.constant 0 : index
    %c0_105 = arith.constant 0 : index
    %106 = vector.load %arg4[%c0_104, %c0_105] : memref<512x64xf32, #tpu.memory_space<vmem>>, vector<512x64xf32>
    %cst_106 = arith.constant dense<0.000000e+00> : vector<8x64xf32>
    %107 = tpu.matmul %105, %106, %cst_106 {dimension_numbers = #tpu.dot_dimension_numbers<[1], [0], [0], [1], [0, 0, 1, 1], [], []>} : vector<8x512xf32>, vector<512x64xf32>, vector<8x64xf32> -> vector<8x64xf32>
    %c0_107 = arith.constant 0 : index
    %c0_108 = arith.constant 0 : index
    %108 = vector.load %arg5[%c0_107, %c0_108] : memref<1x64xf32, #tpu.memory_space<vmem>>, vector<1x64xf32>
    %109 = vector.broadcast %108 : vector<1x64xf32> to vector<8x64xf32>
    %110 = arith.addf %107, %109 : vector<8x64xf32>
    %cst_109 = arith.constant 0.000000e+00 : f32
    %111 = vector.broadcast %cst_109 : f32 to vector<8x64xf32>
    %112 = arith.maximumf %110, %111 : vector<8x64xf32>
    %c320 = arith.constant 320 : index
    %c0_110 = arith.constant 0 : index
    %113 = vector.load %arg6[%c320, %c0_110] : memref<576x32xf32, #tpu.memory_space<vmem>>, vector<64x32xf32>
    %cst_111 = arith.constant dense<0.000000e+00> : vector<8x32xf32>
    %114 = tpu.matmul %112, %113, %cst_111 {dimension_numbers = #tpu.dot_dimension_numbers<[1], [0], [0], [1], [0, 0, 1, 1], [], []>} : vector<8x64xf32>, vector<64x32xf32>, vector<8x32xf32> -> vector<8x32xf32>
    %115 = arith.addf %100, %114 : vector<8x32xf32>
    %c32_112 = arith.constant 32 : index
    %c0_113 = arith.constant 0 : index
    %116 = vector.load %arg16[%c32_112, %c0_113] : memref<64x256xf32, #tpu.memory_space<vmem>>, vector<8x128xf32>
    %c40_114 = arith.constant 40 : index
    %c0_115 = arith.constant 0 : index
    %117 = vector.load %arg16[%c40_114, %c0_115] : memref<64x256xf32, #tpu.memory_space<vmem>>, vector<8x128xf32>
    %c48 = arith.constant 48 : index
    %c0_116 = arith.constant 0 : index
    %118 = vector.load %arg16[%c48, %c0_116] : memref<64x256xf32, #tpu.memory_space<vmem>>, vector<8x128xf32>
    %c56 = arith.constant 56 : index
    %c0_117 = arith.constant 0 : index
    %119 = vector.load %arg16[%c56, %c0_117] : memref<64x256xf32, #tpu.memory_space<vmem>>, vector<8x128xf32>
    %120 = tpu.concatenate %116, %117, %118, %119 in 1 : vector<8x128xf32>, vector<8x128xf32>, vector<8x128xf32>, vector<8x128xf32> -> vector<8x512xf32>
    %c0_118 = arith.constant 0 : index
    %c0_119 = arith.constant 0 : index
    %121 = vector.load %arg4[%c0_118, %c0_119] : memref<512x64xf32, #tpu.memory_space<vmem>>, vector<512x64xf32>
    %cst_120 = arith.constant dense<0.000000e+00> : vector<8x64xf32>
    %122 = tpu.matmul %120, %121, %cst_120 {dimension_numbers = #tpu.dot_dimension_numbers<[1], [0], [0], [1], [0, 0, 1, 1], [], []>} : vector<8x512xf32>, vector<512x64xf32>, vector<8x64xf32> -> vector<8x64xf32>
    %c0_121 = arith.constant 0 : index
    %c0_122 = arith.constant 0 : index
    %123 = vector.load %arg5[%c0_121, %c0_122] : memref<1x64xf32, #tpu.memory_space<vmem>>, vector<1x64xf32>
    %124 = vector.broadcast %123 : vector<1x64xf32> to vector<8x64xf32>
    %125 = arith.addf %122, %124 : vector<8x64xf32>
    %cst_123 = arith.constant 0.000000e+00 : f32
    %126 = vector.broadcast %cst_123 : f32 to vector<8x64xf32>
    %127 = arith.maximumf %125, %126 : vector<8x64xf32>
    %c384 = arith.constant 384 : index
    %c0_124 = arith.constant 0 : index
    %128 = vector.load %arg6[%c384, %c0_124] : memref<576x32xf32, #tpu.memory_space<vmem>>, vector<64x32xf32>
    %cst_125 = arith.constant dense<0.000000e+00> : vector<8x32xf32>
    %129 = tpu.matmul %127, %128, %cst_125 {dimension_numbers = #tpu.dot_dimension_numbers<[1], [0], [0], [1], [0, 0, 1, 1], [], []>} : vector<8x64xf32>, vector<64x32xf32>, vector<8x32xf32> -> vector<8x32xf32>
    %130 = arith.addf %115, %129 : vector<8x32xf32>
    %c32_126 = arith.constant 32 : index
    %c64_127 = arith.constant 64 : index
    %131 = vector.load %arg16[%c32_126, %c64_127] : memref<64x256xf32, #tpu.memory_space<vmem>>, vector<8x128xf32>
    %c40_128 = arith.constant 40 : index
    %c64_129 = arith.constant 64 : index
    %132 = vector.load %arg16[%c40_128, %c64_129] : memref<64x256xf32, #tpu.memory_space<vmem>>, vector<8x128xf32>
    %c48_130 = arith.constant 48 : index
    %c64_131 = arith.constant 64 : index
    %133 = vector.load %arg16[%c48_130, %c64_131] : memref<64x256xf32, #tpu.memory_space<vmem>>, vector<8x128xf32>
    %c56_132 = arith.constant 56 : index
    %c64_133 = arith.constant 64 : index
    %134 = vector.load %arg16[%c56_132, %c64_133] : memref<64x256xf32, #tpu.memory_space<vmem>>, vector<8x128xf32>
    %135 = tpu.concatenate %131, %132, %133, %134 in 1 : vector<8x128xf32>, vector<8x128xf32>, vector<8x128xf32>, vector<8x128xf32> -> vector<8x512xf32>
    %c0_134 = arith.constant 0 : index
    %c0_135 = arith.constant 0 : index
    %136 = vector.load %arg4[%c0_134, %c0_135] : memref<512x64xf32, #tpu.memory_space<vmem>>, vector<512x64xf32>
    %cst_136 = arith.constant dense<0.000000e+00> : vector<8x64xf32>
    %137 = tpu.matmul %135, %136, %cst_136 {dimension_numbers = #tpu.dot_dimension_numbers<[1], [0], [0], [1], [0, 0, 1, 1], [], []>} : vector<8x512xf32>, vector<512x64xf32>, vector<8x64xf32> -> vector<8x64xf32>
    %c0_137 = arith.constant 0 : index
    %c0_138 = arith.constant 0 : index
    %138 = vector.load %arg5[%c0_137, %c0_138] : memref<1x64xf32, #tpu.memory_space<vmem>>, vector<1x64xf32>
    %139 = vector.broadcast %138 : vector<1x64xf32> to vector<8x64xf32>
    %140 = arith.addf %137, %139 : vector<8x64xf32>
    %cst_139 = arith.constant 0.000000e+00 : f32
    %141 = vector.broadcast %cst_139 : f32 to vector<8x64xf32>
    %142 = arith.maximumf %140, %141 : vector<8x64xf32>
    %c448 = arith.constant 448 : index
    %c0_140 = arith.constant 0 : index
    %143 = vector.load %arg6[%c448, %c0_140] : memref<576x32xf32, #tpu.memory_space<vmem>>, vector<64x32xf32>
    %cst_141 = arith.constant dense<0.000000e+00> : vector<8x32xf32>
    %144 = tpu.matmul %142, %143, %cst_141 {dimension_numbers = #tpu.dot_dimension_numbers<[1], [0], [0], [1], [0, 0, 1, 1], [], []>} : vector<8x64xf32>, vector<64x32xf32>, vector<8x32xf32> -> vector<8x32xf32>
    %145 = arith.addf %130, %144 : vector<8x32xf32>
    %c32_142 = arith.constant 32 : index
    %c128_143 = arith.constant 128 : index
    %146 = vector.load %arg16[%c32_142, %c128_143] : memref<64x256xf32, #tpu.memory_space<vmem>>, vector<8x128xf32>
    %c40_144 = arith.constant 40 : index
    %c128_145 = arith.constant 128 : index
    %147 = vector.load %arg16[%c40_144, %c128_145] : memref<64x256xf32, #tpu.memory_space<vmem>>, vector<8x128xf32>
    %c48_146 = arith.constant 48 : index
    %c128_147 = arith.constant 128 : index
    %148 = vector.load %arg16[%c48_146, %c128_147] : memref<64x256xf32, #tpu.memory_space<vmem>>, vector<8x128xf32>
    %c56_148 = arith.constant 56 : index
    %c128_149 = arith.constant 128 : index
    %149 = vector.load %arg16[%c56_148, %c128_149] : memref<64x256xf32, #tpu.memory_space<vmem>>, vector<8x128xf32>
    %150 = tpu.concatenate %146, %147, %148, %149 in 1 : vector<8x128xf32>, vector<8x128xf32>, vector<8x128xf32>, vector<8x128xf32> -> vector<8x512xf32>
    %c0_150 = arith.constant 0 : index
    %c0_151 = arith.constant 0 : index
    %151 = vector.load %arg4[%c0_150, %c0_151] : memref<512x64xf32, #tpu.memory_space<vmem>>, vector<512x64xf32>
    %cst_152 = arith.constant dense<0.000000e+00> : vector<8x64xf32>
    %152 = tpu.matmul %150, %151, %cst_152 {dimension_numbers = #tpu.dot_dimension_numbers<[1], [0], [0], [1], [0, 0, 1, 1], [], []>} : vector<8x512xf32>, vector<512x64xf32>, vector<8x64xf32> -> vector<8x64xf32>
    %c0_153 = arith.constant 0 : index
    %c0_154 = arith.constant 0 : index
    %153 = vector.load %arg5[%c0_153, %c0_154] : memref<1x64xf32, #tpu.memory_space<vmem>>, vector<1x64xf32>
    %154 = vector.broadcast %153 : vector<1x64xf32> to vector<8x64xf32>
    %155 = arith.addf %152, %154 : vector<8x64xf32>
    %cst_155 = arith.constant 0.000000e+00 : f32
    %156 = vector.broadcast %cst_155 : f32 to vector<8x64xf32>
    %157 = arith.maximumf %155, %156 : vector<8x64xf32>
    %c512 = arith.constant 512 : index
    %c0_156 = arith.constant 0 : index
    %158 = vector.load %arg6[%c512, %c0_156] : memref<576x32xf32, #tpu.memory_space<vmem>>, vector<64x32xf32>
    %cst_157 = arith.constant dense<0.000000e+00> : vector<8x32xf32>
    %159 = tpu.matmul %157, %158, %cst_157 {dimension_numbers = #tpu.dot_dimension_numbers<[1], [0], [0], [1], [0, 0, 1, 1], [], []>} : vector<8x64xf32>, vector<64x32xf32>, vector<8x32xf32> -> vector<8x32xf32>
    %160 = arith.addf %145, %159 : vector<8x32xf32>
    %c0_158 = arith.constant 0 : index
    %c0_159 = arith.constant 0 : index
    %161 = vector.load %arg7[%c0_158, %c0_159] : memref<1x32xf32, #tpu.memory_space<vmem>>, vector<1x32xf32>
    %162 = vector.broadcast %161 : vector<1x32xf32> to vector<8x32xf32>
    %163 = arith.addf %160, %162 : vector<8x32xf32>
    %cst_160 = arith.constant 0.000000e+00 : f32
    %164 = vector.broadcast %cst_160 : f32 to vector<8x32xf32>
    %165 = arith.maximumf %163, %164 : vector<8x32xf32>
    %c0_161 = arith.constant 0 : index
    %c0_162 = arith.constant 0 : index
    %166 = vector.load %arg8[%c0_161, %c0_162] : memref<32x64xf32, #tpu.memory_space<vmem>>, vector<32x64xf32>
    %cst_163 = arith.constant dense<0.000000e+00> : vector<8x64xf32>
    %167 = tpu.matmul %165, %166, %cst_163 {dimension_numbers = #tpu.dot_dimension_numbers<[1], [0], [0], [1], [0, 0, 1, 1], [], []>} : vector<8x32xf32>, vector<32x64xf32>, vector<8x64xf32> -> vector<8x64xf32>
    %c0_164 = arith.constant 0 : index
    %c0_165 = arith.constant 0 : index
    %168 = vector.load %arg9[%c0_164, %c0_165] : memref<1x64xf32, #tpu.memory_space<vmem>>, vector<1x64xf32>
    %169 = vector.broadcast %168 : vector<1x64xf32> to vector<8x64xf32>
    %170 = arith.addf %167, %169 : vector<8x64xf32>
    %cst_166 = arith.constant 0.000000e+00 : f32
    %171 = vector.broadcast %cst_166 : f32 to vector<8x64xf32>
    %172 = arith.maximumf %170, %171 : vector<8x64xf32>
    %173 = tpu.iota {dimensions = array<i32: 1>} : vector<8x6xi32>
    %c0_167 = arith.constant 0 : index
    %c0_168 = arith.constant 0 : index
    %174 = vector.load %arg1[%c0_167, %c0_168] : memref<8x1xi32, #tpu.memory_space<vmem>>, vector<8x1xi32>
    %175 = vector.broadcast %174 : vector<8x1xi32> to vector<8x6xi32>
    %176 = arith.cmpi eq, %173, %175 : vector<8x6xi32>
    %177 = arith.extui %176 : vector<8x6xi1> to vector<8x6xi32>
    %178 = arith.sitofp %177 : vector<8x6xi32> to vector<8x6xf32>
    %c0_169 = arith.constant 0 : index
    %c0_170 = arith.constant 0 : index
    %179 = vector.load %arg10[%c0_169, %c0_170] : memref<64x32xf32, #tpu.memory_space<vmem>>, vector<64x32xf32>
    %cst_171 = arith.constant dense<0.000000e+00> : vector<8x32xf32>
    %180 = tpu.matmul %172, %179, %cst_171 {dimension_numbers = #tpu.dot_dimension_numbers<[1], [0], [0], [1], [0, 0, 1, 1], [], []>} : vector<8x64xf32>, vector<64x32xf32>, vector<8x32xf32> -> vector<8x32xf32>
    %c0_172 = arith.constant 0 : index
    %c0_173 = arith.constant 0 : index
    %181 = vector.load %arg11[%c0_172, %c0_173] : memref<6x32xf32, #tpu.memory_space<vmem>>, vector<6x32xf32>
    %cst_174 = arith.constant dense<0.000000e+00> : vector<8x32xf32>
    %182 = tpu.matmul %178, %181, %cst_174 {dimension_numbers = #tpu.dot_dimension_numbers<[1], [0], [0], [1], [0, 0, 1, 1], [], []>} : vector<8x6xf32>, vector<6x32xf32>, vector<8x32xf32> -> vector<8x32xf32>
    %183 = arith.addf %180, %182 : vector<8x32xf32>
    %c0_175 = arith.constant 0 : index
    %c0_176 = arith.constant 0 : index
    %184 = vector.load %arg12[%c0_175, %c0_176] : memref<1x32xf32, #tpu.memory_space<vmem>>, vector<1x32xf32>
    %185 = vector.broadcast %184 : vector<1x32xf32> to vector<8x32xf32>
    %186 = arith.addf %183, %185 : vector<8x32xf32>
    %cst_177 = arith.constant 0.000000e+00 : f32
    %187 = vector.broadcast %cst_177 : f32 to vector<8x32xf32>
    %188 = arith.maximumf %186, %187 : vector<8x32xf32>
    %c0_178 = arith.constant 0 : index
    %c0_179 = arith.constant 0 : index
    %189 = vector.load %arg13[%c0_178, %c0_179] : memref<32x256xf32, #tpu.memory_space<vmem>>, vector<32x256xf32>
    %cst_180 = arith.constant dense<0.000000e+00> : vector<8x256xf32>
    %190 = tpu.matmul %188, %189, %cst_180 {dimension_numbers = #tpu.dot_dimension_numbers<[1], [0], [0], [1], [0, 0, 1, 1], [], []>} : vector<8x32xf32>, vector<32x256xf32>, vector<8x256xf32> -> vector<8x256xf32>
    %c0_181 = arith.constant 0 : index
    %c0_182 = arith.constant 0 : index
    %191 = vector.load %arg14[%c0_181, %c0_182] : memref<1x256xf32, #tpu.memory_space<vmem>>, vector<1x256xf32>
    %192 = vector.broadcast %191 : vector<1x256xf32> to vector<8x256xf32>
    %193 = arith.addf %190, %192 : vector<8x256xf32>
    %194 = vector.extract_strided_slice %193 {offsets = [0, 0], sizes = [8, 128], strides = [1, 1]} : vector<8x256xf32> to vector<8x128xf32>
    %c0_183 = arith.constant 0 : index
    %c0_184 = arith.constant 0 : index
    %195 = vector.load %arg15[%c0_183, %c0_184] : memref<8x256xf32, #tpu.memory_space<vmem>>, vector<8x128xf32>
    tpu.vector_store %arg15[%c0_183, %c0_184], %194 {strides = array<i32>} : memref<8x256xf32, #tpu.memory_space<vmem>>, vector<8x128xf32>,
    %196 = vector.extract_strided_slice %193 {offsets = [0, 128], sizes = [8, 128], strides = [1, 1]} : vector<8x256xf32> to vector<8x128xf32>
    %cst_185 = arith.constant -2.000000e+01 : f32
    %cst_186 = arith.constant 2.000000e+00 : f32
    %197 = vector.broadcast %cst_185 : f32 to vector<8x128xf32>
    %198 = arith.maximumf %197, %196 : vector<8x128xf32>
    %199 = vector.broadcast %cst_186 : f32 to vector<8x128xf32>
    %200 = arith.minimumf %199, %198 : vector<8x128xf32>
    %201 = math.exp %200 : vector<8x128xf32>
    %c0_187 = arith.constant 0 : index
    %c128_188 = arith.constant 128 : index
    %202 = vector.load %arg15[%c0_187, %c128_188] : memref<8x256xf32, #tpu.memory_space<vmem>>, vector<8x128xf32>
    tpu.vector_store %arg15[%c0_187, %c128_188], %201 {strides = array<i32>} : memref<8x256xf32, #tpu.memory_space<vmem>>, vector<8x128xf32>,
    return
  }
}

</mosaic_0001>

<llo_original>
// kernel: cnn_base_forward.1
$region0: #{cnn_base_forward.1}
  #allocation0 [shape = 'u32[]', space=smem, size = 0x4, offset = 0x4, fixed_abs, tag = 'smem constant byte address 0x4 - core index']
  #allocation1 [shape = 'u32[144,128]{1,0:T(1,128)}', space=vmem, size = 0x12000, scoped, tag = 'internal scratch']
  #allocation2 [shape = 'f32[64,256]{1,0:T(8,128)}', space=vmem, size = 0x10000, scoped, tag = 'scratch operand']
  %s0 = inlined_call_operand.vmem [shape: bf16[512,256], index: 0, kind: input, shape index: {}]
  %s1 = inlined_call_operand.vmem [shape: s32[8,1], index: 1, kind: input, shape index: {}]
  %s2 = inlined_call_operand.vmem [shape: f32[256,32], index: 2, kind: input, shape index: {}]
  %s3 = inlined_call_operand.vmem [shape: f32[1,32], index: 3, kind: input, shape index: {}]
  %s4 = inlined_call_operand.vmem [shape: f32[512,64], index: 4, kind: input, shape index: {}]
  %s5 = inlined_call_operand.vmem [shape: f32[1,64], index: 5, kind: input, shape index: {}]
  %s6 = inlined_call_operand.vmem [shape: f32[576,32], index: 6, kind: input, shape index: {}]
  %s7 = inlined_call_operand.vmem [shape: f32[1,32], index: 7, kind: input, shape index: {}]
  %s8 = inlined_call_operand.vmem [shape: f32[32,64], index: 8, kind: input, shape index: {}]
  %s9 = inlined_call_operand.vmem [shape: f32[1,64], index: 9, kind: input, shape index: {}]
  %s10 = inlined_call_operand.vmem [shape: f32[64,32], index: 10, kind: input, shape index: {}]
  %s11 = inlined_call_operand.vmem [shape: f32[6,32], index: 11, kind: input, shape index: {}]
  %s12 = inlined_call_operand.vmem [shape: f32[1,32], index: 12, kind: input, shape index: {}]
  %s13 = inlined_call_operand.vmem [shape: f32[32,256], index: 13, kind: input, shape index: {}]
  %s14 = inlined_call_operand.vmem [shape: f32[1,256], index: 14, kind: input, shape index: {}]
  %s15 = inlined_call_operand.vmem [shape: f32[8,256], index: 15, kind: output, shape index: {}]
  %s16 = sld [smem:[#allocation0]]
  $region70: #{cnn_base_forward.1} parent=0
    _
  %s18 = ssub.s32 1, %s16
  %s19 = scalar_select 0, %s18, %s16
  // Predicated region
  $region2: #{cnn_base_forward.1} parent=0 // pred_check
    _
  $region3: #{cnn_base_forward.1} parent=0 // pred_check_branch
    %21 = sbr.rel (0) target = $region5
  $region4: #{cnn_base_forward.1} parent=0 // pred_region
    _
  $region5: #{cnn_base_forward.1} parent=0 // pred_fallthru
    _
  // Predicated region
  $region6: #{cnn_base_forward.1} parent=0 // pred_check
    _
  $region7: #{cnn_base_forward.1} parent=0 // pred_check_branch
    %23 = sbr.rel (0) target = $region9
  $region8: #{cnn_base_forward.1} parent=0 // pred_region
    _
  $region9: #{cnn_base_forward.1} parent=0 // pred_fallthru
    _
  // Predicated region
  $region10: #{cnn_base_forward.1} parent=0 // pred_check
    _
  $region11: #{cnn_base_forward.1} parent=0 // pred_check_branch
    %25 = sbr.rel (0) target = $region13
  $region12: #{cnn_base_forward.1} parent=0 // pred_region
    _
  $region13: #{cnn_base_forward.1} parent=0 // pred_fallthru
    _
  // Predicated region
  $region14: #{cnn_base_forward.1} parent=0 // pred_check
    _
  $region15: #{cnn_base_forward.1} parent=0 // pred_check_branch
    %27 = sbr.rel (0) target = $region17
  $region16: #{cnn_base_forward.1} parent=0 // pred_region
    _
  $region17: #{cnn_base_forward.1} parent=0 // pred_fallthru
    _
  // Predicated region
  $region18: #{cnn_base_forward.1} parent=0 // pred_check
    _
  $region19: #{cnn_base_forward.1} parent=0 // pred_check_branch
    %29 = sbr.rel (0) target = $region21
  $region20: #{cnn_base_forward.1} parent=0 // pred_region
    _
  $region21: #{cnn_base_forward.1} parent=0 // pred_fallthru
    _
  // Predicated region
  $region22: #{cnn_base_forward.1} parent=0 // pred_check
    _
  $region23: #{cnn_base_forward.1} parent=0 // pred_check_branch
    %31 = sbr.rel (0) target = $region25
  $region24: #{cnn_base_forward.1} parent=0 // pred_region
    _
  $region25: #{cnn_base_forward.1} parent=0 // pred_fallthru
    _
  // Predicated region
  $region26: #{cnn_base_forward.1} parent=0 // pred_check
    _
  $region27: #{cnn_base_forward.1} parent=0 // pred_check_branch
    %33 = sbr.rel (0) target = $region29
  $region28: #{cnn_base_forward.1} parent=0 // pred_region
    _
  $region29: #{cnn_base_forward.1} parent=0 // pred_fallthru
    _
  // Predicated region
  $region30: #{cnn_base_forward.1} parent=0 // pred_check
    _
  $region31: #{cnn_base_forward.1} parent=0 // pred_check_branch
    %35 = sbr.rel (0) target = $region33
  $region32: #{cnn_base_forward.1} parent=0 // pred_region
    _
  $region33: #{cnn_base_forward.1} parent=0 // pred_fallthru
    _
  // Predicated region
  $region34: #{cnn_base_forward.1} parent=0 // pred_check
    _
  $region35: #{cnn_base_forward.1} parent=0 // pred_check_branch
    %37 = sbr.rel (0) target = $region37
  $region36: #{cnn_base_forward.1} parent=0 // pred_region
    _
  $region37: #{cnn_base_forward.1} parent=0 // pred_fallthru
    _
  // Predicated region
  $region38: #{cnn_base_forward.1} parent=0 // pred_check
    _
  $region39: #{cnn_base_forward.1} parent=0 // pred_check_branch
    %39 = sbr.rel (0) target = $region41
  $region40: #{cnn_base_forward.1} parent=0 // pred_region
    _
  $region41: #{cnn_base_forward.1} parent=0 // pred_fallthru
    _
  // Predicated region
  $region42: #{cnn_base_forward.1} parent=0 // pred_check
    _
  $region43: #{cnn_base_forward.1} parent=0 // pred_check_branch
    %41 = sbr.rel (0) target = $region45
  $region44: #{cnn_base_forward.1} parent=0 // pred_region
    _
  $region45: #{cnn_base_forward.1} parent=0 // pred_fallthru
    _
  // Predicated region
  $region46: #{cnn_base_forward.1} parent=0 // pred_check
    _
  $region47: #{cnn_base_forward.1} parent=0 // pred_check_branch
    %43 = sbr.rel (0) target = $region49
  $region48: #{cnn_base_forward.1} parent=0 // pred_region
    _
  $region49: #{cnn_base_forward.1} parent=0 // pred_fallthru
    _
  // Predicated region
  $region50: #{cnn_base_forward.1} parent=0 // pred_check
    _
  $region51: #{cnn_base_forward.1} parent=0 // pred_check_branch
    %45 = sbr.rel (0) target = $region53
  $region52: #{cnn_base_forward.1} parent=0 // pred_region
    _
  $region53: #{cnn_base_forward.1} parent=0 // pred_fallthru
    _
  // Predicated region
  $region54: #{cnn_base_forward.1} parent=0 // pred_check
    _
  $region55: #{cnn_base_forward.1} parent=0 // pred_check_branch
    %47 = sbr.rel (0) target = $region57
  $region56: #{cnn_base_forward.1} parent=0 // pred_region
    _
  $region57: #{cnn_base_forward.1} parent=0 // pred_fallthru
    _
  // Predicated region
  $region58: #{cnn_base_forward.1} parent=0 // pred_check
    _
  $region59: #{cnn_base_forward.1} parent=0 // pred_check_branch
    %49 = sbr.rel (0) target = $region61
  $region60: #{cnn_base_forward.1} parent=0 // pred_region
    _
  $region61: #{cnn_base_forward.1} parent=0 // pred_fallthru
    _
  %v50 = vld [vmem:[%s0] sm:$0xff]
  %v51 = vld [vmem:[%s0 + $0x8] sm:$0xff]
  %v52 = vld [vmem:[%s0 + $0x10] sm:$0xff]
  %v53 = vld [vmem:[%s0 + $0x18] sm:$0xff]
  %v54 = vld [vmem:[%s0 + $0x20] sm:$0xff]
  %v55 = vld [vmem:[%s0 + $0x28] sm:$0xff]
  %v56 = vld [vmem:[%s0 + $0x30] sm:$0xff]
  %v57 = vld [vmem:[%s0 + $0x38] sm:$0xff]
  %v58 = vld [vmem:[%s0 + $0x40] sm:$0xff]
  %v59 = vld [vmem:[%s0 + $0x48] sm:$0xff]
  %v60 = vld [vmem:[%s0 + $0x50] sm:$0xff]
  %v61 = vld [vmem:[%s0 + $0x58] sm:$0xff]
  %v62 = vld [vmem:[%s0 + $0x60] sm:$0xff]
  %v63 = vld [vmem:[%s0 + $0x68] sm:$0xff]
  %v64 = vld [vmem:[%s0 + $0x70] sm:$0xff]
  %v65 = vld [vmem:[%s0 + $0x78] sm:$0xff]
  %v66 = vld [vmem:[%s0 + $0x80] sm:$0xff]
  %v67 = vld [vmem:[%s0 + $0x88] sm:$0xff]
  %v68 = vld [vmem:[%s0 + $0x90] sm:$0xff]
  %v69 = vld [vmem:[%s0 + $0x98] sm:$0xff]
  %v70 = vld [vmem:[%s0 + $0xa0] sm:$0xff]
  %v71 = vld [vmem:[%s0 + $0xa8] sm:$0xff]
  %v72 = vld [vmem:[%s0 + $0xb0] sm:$0xff]
  %v73 = vld [vmem:[%s0 + $0xb8] sm:$0xff]
  %v74 = vld [vmem:[%s0 + $0xc0] sm:$0xff]
  %v75 = vld [vmem:[%s0 + $0xc8] sm:$0xff]
  %v76 = vld [vmem:[%s0 + $0xd0] sm:$0xff]
  %v77 = vld [vmem:[%s0 + $0xd8] sm:$0xff]
  %v78 = vld [vmem:[%s0 + $0xe0] sm:$0xff]
  %v79 = vld [vmem:[%s0 + $0xe8] sm:$0xff]
  %v80 = vld [vmem:[%s0 + $0xf0] sm:$0xff]
  %v81 = vld [vmem:[%s0 + $0xf8] sm:$0xff]
  %v82 = vld [vmem:[%s0 + $0x100] sm:$0xff]
  %v83 = vld [vmem:[%s0 + $0x108] sm:$0xff]
  %v84 = vld [vmem:[%s0 + $0x110] sm:$0xff]
  %v85 = vld [vmem:[%s0 + $0x118] sm:$0xff]
  %v86 = vld [vmem:[%s0 + $0x120] sm:$0xff]
  %v87 = vld [vmem:[%s0 + $0x128] sm:$0xff]
  %v88 = vld [vmem:[%s0 + $0x130] sm:$0xff]
  %v89 = vld [vmem:[%s0 + $0x138] sm:$0xff]
  %v90 = vld [vmem:[%s0 + $0x140] sm:$0xff]
  %v91 = vld [vmem:[%s0 + $0x148] sm:$0xff]
  %v92 = vld [vmem:[%s0 + $0x150] sm:$0xff]
  %v93 = vld [vmem:[%s0 + $0x158] sm:$0xff]
  %v94 = vld [vmem:[%s0 + $0x160] sm:$0xff]
  %v95 = vld [vmem:[%s0 + $0x168] sm:$0xff]
  %v96 = vld [vmem:[%s0 + $0x170] sm:$0xff]
  %v97 = vld [vmem:[%s0 + $0x178] sm:$0xff]
  %v98 = vld [vmem:[%s0 + $0x180] sm:$0xff]
  %v99 = vld [vmem:[%s0 + $0x188] sm:$0xff]
  %v100 = vld [vmem:[%s0 + $0x190] sm:$0xff]
  %v101 = vld [vmem:[%s0 + $0x198] sm:$0xff]
  %v102 = vld [vmem:[%s0 + $0x1a0] sm:$0xff]
  %v103 = vld [vmem:[%s0 + $0x1a8] sm:$0xff]
  %v104 = vld [vmem:[%s0 + $0x1b0] sm:$0xff]
  %v105 = vld [vmem:[%s0 + $0x1b8] sm:$0xff]
  %v106 = vld [vmem:[%s0 + $0x1c0] sm:$0xff]
  %v107 = vld [vmem:[%s0 + $0x1c8] sm:$0xff]
  %v108 = vld [vmem:[%s0 + $0x1d0] sm:$0xff]
  %v109 = vld [vmem:[%s0 + $0x1d8] sm:$0xff]
  %v110 = vld [vmem:[%s0 + $0x1e0] sm:$0xff]
  %v111 = vld [vmem:[%s0 + $0x1e8] sm:$0xff]
  %v112 = vld [vmem:[%s0 + $0x1f0] sm:$0xff]
  %v113 = vld [vmem:[%s0 + $0x1f8] sm:$0xff]
  %v114 = vunpack.c.l.bf16 %v50
  %v115 = vunpack.c.h.bf16 %v50
  %v116 = vunpack.c.l.bf16 %v51
  %v117 = vunpack.c.h.bf16 %v51
  %v118 = vunpack.c.l.bf16 %v52
  %v119 = vunpack.c.h.bf16 %v52
  %v120 = vunpack.c.l.bf16 %v53
  %v121 = vunpack.c.h.bf16 %v53
  %v122 = vunpack.c.l.bf16 %v54
  %v123 = vunpack.c.h.bf16 %v54
  %v124 = vunpack.c.l.bf16 %v55
  %v125 = vunpack.c.h.bf16 %v55
  %v126 = vunpack.c.l.bf16 %v56
  %v127 = vunpack.c.h.bf16 %v56
  %v128 = vunpack.c.l.bf16 %v57
  %v129 = vunpack.c.h.bf16 %v57
  %v130 = vunpack.c.l.bf16 %v58
  %v131 = vunpack.c.h.bf16 %v58
  %v132 = vunpack.c.l.bf16 %v59
  %v133 = vunpack.c.h.bf16 %v59
  %v134 = vunpack.c.l.bf16 %v60
  %v135 = vunpack.c.h.bf16 %v60
  %v136 = vunpack.c.l.bf16 %v61
  %v137 = vunpack.c.h.bf16 %v61
  %v138 = vunpack.c.l.bf16 %v62
  %v139 = vunpack.c.h.bf16 %v62
  %v140 = vunpack.c.l.bf16 %v63
  %v141 = vunpack.c.h.bf16 %v63
  %v142 = vunpack.c.l.bf16 %v64
  %v143 = vunpack.c.h.bf16 %v64
  %v144 = vunpack.c.l.bf16 %v65
  %v145 = vunpack.c.h.bf16 %v65
  %v146 = vunpack.c.l.bf16 %v66
  %v147 = vunpack.c.h.bf16 %v66
  %v148 = vunpack.c.l.bf16 %v67
  %v149 = vunpack.c.h.bf16 %v67
  %v150 = vunpack.c.l.bf16 %v68
  %v151 = vunpack.c.h.bf16 %v68
  %v152 = vunpack.c.l.bf16 %v69
  %v153 = vunpack.c.h.bf16 %v69
  %v154 = vunpack.c.l.bf16 %v70
  %v155 = vunpack.c.h.bf16 %v70
  %v156 = vunpack.c.l.bf16 %v71
  %v157 = vunpack.c.h.bf16 %v71
  %v158 = vunpack.c.l.bf16 %v72
  %v159 = vunpack.c.h.bf16 %v72
  %v160 = vunpack.c.l.bf16 %v73
  %v161 = vunpack.c.h.bf16 %v73
  %v162 = vunpack.c.l.bf16 %v74
  %v163 = vunpack.c.h.bf16 %v74
  %v164 = vunpack.c.l.bf16 %v75
  %v165 = vunpack.c.h.bf16 %v75
  %v166 = vunpack.c.l.bf16 %v76
  %v167 = vunpack.c.h.bf16 %v76
  %v168 = vunpack.c.l.bf16 %v77
  %v169 = vunpack.c.h.bf16 %v77
  %v170 = vunpack.c.l.bf16 %v78
  %v171 = vunpack.c.h.bf16 %v78
  %v172 = vunpack.c.l.bf16 %v79
  %v173 = vunpack.c.h.bf16 %v79
  %v174 = vunpack.c.l.bf16 %v80
  %v175 = vunpack.c.h.bf16 %v80
  %v176 = vunpack.c.l.bf16 %v81
  %v177 = vunpack.c.h.bf16 %v81
  %v178 = vunpack.c.l.bf16 %v82
  %v179 = vunpack.c.h.bf16 %v82
  %v180 = vunpack.c.l.bf16 %v83
  %v181 = vunpack.c.h.bf16 %v83
  %v182 = vunpack.c.l.bf16 %v84
  %v183 = vunpack.c.h.bf16 %v84
  %v184 = vunpack.c.l.bf16 %v85
  %v185 = vunpack.c.h.bf16 %v85
  %v186 = vunpack.c.l.bf16 %v86
  %v187 = vunpack.c.h.bf16 %v86
  %v188 = vunpack.c.l.bf16 %v87
  %v189 = vunpack.c.h.bf16 %v87
  %v190 = vunpack.c.l.bf16 %v88
  %v191 = vunpack.c.h.bf16 %v88
  %v192 = vunpack.c.l.bf16 %v89
  %v193 = vunpack.c.h.bf16 %v89
  %v194 = vunpack.c.l.bf16 %v90
  %v195 = vunpack.c.h.bf16 %v90
  %v196 = vunpack.c.l.bf16 %v91
  %v197 = vunpack.c.h.bf16 %v91
  %v198 = vunpack.c.l.bf16 %v92
  %v199 = vunpack.c.h.bf16 %v92
  %v200 = vunpack.c.l.bf16 %v93
  %v201 = vunpack.c.h.bf16 %v93
  %v202 = vunpack.c.l.bf16 %v94
  %v203 = vunpack.c.h.bf16 %v94
  %v204 = vunpack.c.l.bf16 %v95
  %v205 = vunpack.c.h.bf16 %v95
  %v206 = vunpack.c.l.bf16 %v96
  %v207 = vunpack.c.h.bf16 %v96
  %v208 = vunpack.c.l.bf16 %v97
  %v209 = vunpack.c.h.bf16 %v97
  %v210 = vunpack.c.l.bf16 %v98
  %v211 = vunpack.c.h.bf16 %v98
  %v212 = vunpack.c.l.bf16 %v99
  %v213 = vunpack.c.h.bf16 %v99
  %v214 = vunpack.c.l.bf16 %v100
  %v215 = vunpack.c.h.bf16 %v100
  %v216 = vunpack.c.l.bf16 %v101
  %v217 = vunpack.c.h.bf16 %v101
  %v218 = vunpack.c.l.bf16 %v102
  %v219 = vunpack.c.h.bf16 %v102
  %v220 = vunpack.c.l.bf16 %v103
  %v221 = vunpack.c.h.bf16 %v103
  %v222 = vunpack.c.l.bf16 %v104
  %v223 = vunpack.c.h.bf16 %v104
  %v224 = vunpack.c.l.bf16 %v105
  %v225 = vunpack.c.h.bf16 %v105
  %v226 = vunpack.c.l.bf16 %v106
  %v227 = vunpack.c.h.bf16 %v106
  %v228 = vunpack.c.l.bf16 %v107
  %v229 = vunpack.c.h.bf16 %v107
  %v230 = vunpack.c.l.bf16 %v108
  %v231 = vunpack.c.h.bf16 %v108
  %v232 = vunpack.c.l.bf16 %v109
  %v233 = vunpack.c.h.bf16 %v109
  %v234 = vunpack.c.l.bf16 %v110
  %v235 = vunpack.c.h.bf16 %v110
  %v236 = vunpack.c.l.bf16 %v111
  %v237 = vunpack.c.h.bf16 %v111
  %v238 = vunpack.c.l.bf16 %v112
  %v239 = vunpack.c.h.bf16 %v112
  %v240 = vunpack.c.l.bf16 %v113
  %v241 = vunpack.c.h.bf16 %v113
  %v242 = vld [vmem:[%s2] sm:$0xff]
  %v243 = vld [vmem:[%s2 + $0x8] sm:$0xff]
  %v244 = vld [vmem:[%s2 + $0x10] sm:$0xff]
  %v245 = vld [vmem:[%s2 + $0x18] sm:$0xff]
  %v246 = vld [vmem:[%s2 + $0x20] sm:$0xff]
  %v247 = vld [vmem:[%s2 + $0x28] sm:$0xff]
  %v248 = vld [vmem:[%s2 + $0x30] sm:$0xff]
  %v249 = vld [vmem:[%s2 + $0x38] sm:$0xff]
  %v250 = vld [vmem:[%s2 + $0x40] sm:$0xff]
  %v251 = vld [vmem:[%s2 + $0x48] sm:$0xff]
  %v252 = vld [vmem:[%s2 + $0x50] sm:$0xff]
  %v253 = vld [vmem:[%s2 + $0x58] sm:$0xff]
  %v254 = vld [vmem:[%s2 + $0x60] sm:$0xff]
  %v255 = vld [vmem:[%s2 + $0x68] sm:$0xff]
  %v256 = vld [vmem:[%s2 + $0x70] sm:$0xff]
  %v257 = vld [vmem:[%s2 + $0x78] sm:$0xff]
  %v258 = vld [vmem:[%s2 + $0x80] sm:$0xff]
  %v259 = vld [vmem:[%s2 + $0x88] sm:$0xff]
  %v260 = vld [vmem:[%s2 + $0x90] sm:$0xff]
  %v261 = vld [vmem:[%s2 + $0x98] sm:$0xff]
  %v262 = vld [vmem:[%s2 + $0xa0] sm:$0xff]
  %v263 = vld [vmem:[%s2 + $0xa8] sm:$0xff]
  %v264 = vld [vmem:[%s2 + $0xb0] sm:$0xff]
  %v265 = vld [vmem:[%s2 + $0xb8] sm:$0xff]
  %v266 = vld [vmem:[%s2 + $0xc0] sm:$0xff]
  %v267 = vld [vmem:[%s2 + $0xc8] sm:$0xff]
  %v268 = vld [vmem:[%s2 + $0xd0] sm:$0xff]
  %v269 = vld [vmem:[%s2 + $0xd8] sm:$0xff]
  %v270 = vld [vmem:[%s2 + $0xe0] sm:$0xff]
  %v271 = vld [vmem:[%s2 + $0xe8] sm:$0xff]
  %v272 = vld [vmem:[%s2 + $0xf0] sm:$0xff]
  %v273 = vld [vmem:[%s2 + $0xf8] sm:$0xff]
  %v274 = vld [vmem:[%s3] sm:$0x1]
  %v276 = vlaneseq
  %v277 = vshrl.u32 %v276, 7
  %v278 = vsub.s32 0, %v277
  %v279 = vrot.slane %v274, %v278
  %281 = vmatprep.subr.mxu0 0.0
  %282 = vmatpush1.msra.mxu0 %v242
  %283 = vmatprep.subr.mxu0 0.0
  %284 = vmatpush1.msra.mxu0 %v243
  %285 = vmatprep.subr.mxu0 0.0
  %286 = vmatpush1.msra.mxu0 %v244
  %287 = vmatprep.subr.mxu0 0.0
  %288 = vmatpush1.msra.mxu0 %v245
  %289 = vmatprep.subr.mxu0 0.0
  %290 = vmatpush1.msra.mxu0 %v246
  %291 = vmatprep.subr.mxu0 0.0
  %292 = vmatpush1.msra.mxu0 %v247
  %293 = vmatprep.subr.mxu0 0.0
  %294 = vmatpush1.msra.mxu0 %v248
  %295 = vmatprep.subr.mxu0 0.0
  %296 = vmatpush1.msra.mxu0 %v249
  %297 = vmatprep.subr.mxu0 0.0
  %298 = vmatpush1.msra.mxu0 %v250
  %299 = vmatprep.subr.mxu0 0.0
  %300 = vmatpush1.msra.mxu0 %v251
  %301 = vmatprep.subr.mxu0 0.0
  %302 = vmatpush1.msra.mxu0 %v252
  %303 = vmatprep.subr.mxu0 0.0
  %304 = vmatpush1.msra.mxu0 %v253
  %305 = vmatprep.subr.mxu0 0.0
  %306 = vmatpush1.msra.mxu0 %v254
  %307 = vmatprep.subr.mxu0 0.0
  %308 = vmatpush1.msra.mxu0 %v255
  %309 = vmatprep.subr.mxu0 0.0
  %310 = vmatpush1.msra.mxu0 %v256
  %311 = vmatprep.subr.mxu0 0.0
  %312 = vmatpush1.msra.mxu0 %v257
  %313 = vmatprep.subr.mxu0 0.0
  %314 = vmatpush1.msra.mxu0 %v258
  %315 = vmatprep.subr.mxu0 0.0
  %316 = vmatpush1.msra.mxu0 %v259
  %317 = vmatprep.subr.mxu0 0.0
  %318 = vmatpush1.msra.mxu0 %v260
  %319 = vmatprep.subr.mxu0 0.0
  %320 = vmatpush1.msra.mxu0 %v261
  %321 = vmatprep.subr.mxu0 0.0
  %322 = vmatpush1.msra.mxu0 %v262
  %323 = vmatprep.subr.mxu0 0.0
  %324 = vmatpush1.msra.mxu0 %v263
  %325 = vmatprep.subr.mxu0 0.0
  %326 = vmatpush1.msra.mxu0 %v264
  %327 = vmatprep.subr.mxu0 0.0
  %328 = vmatpush1.msra.mxu0 %v265
  %329 = vmatprep.subr.mxu0 0.0
  %330 = vmatpush1.msra.mxu0 %v266
  %331 = vmatprep.subr.mxu0 0.0
  %332 = vmatpush1.msra.mxu0 %v267
  %333 = vmatprep.subr.mxu0 0.0
  %334 = vmatpush1.msra.mxu0 %v268
  %335 = vmatprep.subr.mxu0 0.0
  %336 = vmatpush1.msra.mxu0 %v269
  %337 = vmatprep.subr.mxu0 0.0
  %338 = vmatpush1.msra.mxu0 %v270
  %339 = vmatprep.subr.mxu0 0.0
  %340 = vmatpush1.msra.mxu0 %v271
  %341 = vmatprep.subr.mxu0 0.0
  %342 = vmatpush1.msra.mxu0 %v272
  %343 = vmatprep.subr.mxu0 0.0
  %344 = vmatpush1.msra.mxu0 %v273
  %345 = vmatprep.mubr.f32.mxu0 %v115
  %346 = vmatmul.mubr.f32.gmra.mrb[0].mxu0 %v114
  %v347 = vpop.f32.mrb[0].mxu0
  %v348 = vadd.f32 %v279, %v347
  %v349 = vpop.f32.mrb[0].mxu0
  %350 = vmatprep.mubr.f32.mxu0 %v117
  %351 = vmatmul.mubr.f32.gmra.mrb[0].mxu0 %v116
  %v352 = vpop.f32.mrb[0].mxu0
  %v353 = vadd.f32 %v279, %v352
  %v354 = vpop.f32.mrb[0].mxu0
  %355 = vmatprep.mubr.f32.mxu0 %v119
  %356 = vmatmul.mubr.f32.gmra.mrb[0].mxu0 %v118
  %v357 = vpop.f32.mrb[0].mxu0
  %v358 = vadd.f32 %v279, %v357
  %v359 = vpop.f32.mrb[0].mxu0
  %360 = vmatprep.mubr.f32.mxu0 %v121
  %361 = vmatmul.mubr.f32.gmra.mrb[0].mxu0 %v120
  %v362 = vpop.f32.mrb[0].mxu0
  %v363 = vadd.f32 %v279, %v362
  %v364 = vpop.f32.mrb[0].mxu0
  %365 = vmatprep.mubr.f32.mxu0 %v123
  %366 = vmatmul.mubr.f32.gmra.mrb[0].mxu0 %v122
  %v367 = vpop.f32.mrb[0].mxu0
  %v368 = vadd.f32 %v279, %v367
  %v369 = vpop.f32.mrb[0].mxu0
  %370 = vmatprep.mubr.f32.mxu0 %v125
  %371 = vmatmul.mubr.f32.gmra.mrb[0].mxu0 %v124
  %v372 = vpop.f32.mrb[0].mxu0
  %v373 = vadd.f32 %v279, %v372
  %v374 = vpop.f32.mrb[0].mxu0
  %375 = vmatprep.mubr.f32.mxu0 %v127
  %376 = vmatmul.mubr.f32.gmra.mrb[0].mxu0 %v126
  %v377 = vpop.f32.mrb[0].mxu0
  %v378 = vadd.f32 %v279, %v377
  %v379 = vpop.f32.mrb[0].mxu0
  %380 = vmatprep.mubr.f32.mxu0 %v129
  %381 = vmatmul.mubr.f32.gmra.mrb[0].mxu0 %v128
  %v382 = vpop.f32.mrb[0].mxu0
  %v383 = vadd.f32 %v279, %v382
  %v384 = vpop.f32.mrb[0].mxu0
  %385 = vmatprep.mubr.f32.mxu0 %v131
  %386 = vmatmul.mubr.f32.gmra.mrb[0].mxu0 %v130
  %v387 = vpop.f32.mrb[0].mxu0
  %v388 = vadd.f32 %v279, %v387
  %v389 = vpop.f32.mrb[0].mxu0
  %390 = vmatprep.mubr.f32.mxu0 %v133
  %391 = vmatmul.mubr.f32.gmra.mrb[0].mxu0 %v132
  %v392 = vpop.f32.mrb[0].mxu0
  %v393 = vadd.f32 %v279, %v392
  %v394 = vpop.f32.mrb[0].mxu0
  %395 = vmatprep.mubr.f32.mxu0 %v135
  %396 = vmatmul.mubr.f32.gmra.mrb[0].mxu0 %v134
  %v397 = vpop.f32.mrb[0].mxu0
  %v398 = vadd.f32 %v279, %v397
  %v399 = vpop.f32.mrb[0].mxu0
  %400 = vmatprep.mubr.f32.mxu0 %v137
  %401 = vmatmul.mubr.f32.gmra.mrb[0].mxu0 %v136
  %v402 = vpop.f32.mrb[0].mxu0
  %v403 = vadd.f32 %v279, %v402
  %v404 = vpop.f32.mrb[0].mxu0
  %405 = vmatprep.mubr.f32.mxu0 %v139
  %406 = vmatmul.mubr.f32.gmra.mrb[0].mxu0 %v138
  %v407 = vpop.f32.mrb[0].mxu0
  %v408 = vadd.f32 %v279, %v407
  %v409 = vpop.f32.mrb[0].mxu0
  %410 = vmatprep.mubr.f32.mxu0 %v141
  %411 = vmatmul.mubr.f32.gmra.mrb[0].mxu0 %v140
  %v412 = vpop.f32.mrb[0].mxu0
  %v413 = vadd.f32 %v279, %v412
  %v414 = vpop.f32.mrb[0].mxu0
  %415 = vmatprep.mubr.f32.mxu0 %v143
  %416 = vmatmul.mubr.f32.gmra.mrb[0].mxu0 %v142
  %v417 = vpop.f32.mrb[0].mxu0
  %v418 = vadd.f32 %v279, %v417
  %v419 = vpop.f32.mrb[0].mxu0
  %420 = vmatprep.mubr.f32.mxu0 %v145
  %421 = vmatmul.mubr.f32.gmra.mrb[0].mxu0 %v144
  %v422 = vpop.f32.mrb[0].mxu0
  %v423 = vadd.f32 %v279, %v422
  %v424 = vpop.f32.mrb[0].mxu0
  %425 = vmatprep.mubr.f32.mxu0 %v147
  %426 = vmatmul.mubr.f32.gmra.mrb[0].mxu0 %v146
  %v427 = vpop.f32.mrb[0].mxu0
  %v428 = vadd.f32 %v279, %v427
  %v429 = vpop.f32.mrb[0].mxu0
  %430 = vmatprep.mubr.f32.mxu0 %v149
  %431 = vmatmul.mubr.f32.gmra.mrb[0].mxu0 %v148
  %v432 = vpop.f32.mrb[0].mxu0
  %v433 = vadd.f32 %v279, %v432
  %v434 = vpop.f32.mrb[0].mxu0
  %435 = vmatprep.mubr.f32.mxu0 %v151
  %436 = vmatmul.mubr.f32.gmra.mrb[0].mxu0 %v150
  %v437 = vpop.f32.mrb[0].mxu0
  %v438 = vadd.f32 %v279, %v437
  %v439 = vpop.f32.mrb[0].mxu0
  %440 = vmatprep.mubr.f32.mxu0 %v153
  %441 = vmatmul.mubr.f32.gmra.mrb[0].mxu0 %v152
  %v442 = vpop.f32.mrb[0].mxu0
  %v443 = vadd.f32 %v279, %v442
  %v444 = vpop.f32.mrb[0].mxu0
  %445 = vmatprep.mubr.f32.mxu0 %v155
  %446 = vmatmul.mubr.f32.gmra.mrb[0].mxu0 %v154
  %v447 = vpop.f32.mrb[0].mxu0
  %v448 = vadd.f32 %v279, %v447
  %v449 = vpop.f32.mrb[0].mxu0
  %450 = vmatprep.mubr.f32.mxu0 %v157
  %451 = vmatmul.mubr.f32.gmra.mrb[0].mxu0 %v156
  %v452 = vpop.f32.mrb[0].mxu0
  %v453 = vadd.f32 %v279, %v452
  %v454 = vpop.f32.mrb[0].mxu0
  %455 = vmatprep.mubr.f32.mxu0 %v159
  %456 = vmatmul.mubr.f32.gmra.mrb[0].mxu0 %v158
  %v457 = vpop.f32.mrb[0].mxu0
  %v458 = vadd.f32 %v279, %v457
  %v459 = vpop.f32.mrb[0].mxu0
  %460 = vmatprep.mubr.f32.mxu0 %v161
  %461 = vmatmul.mubr.f32.gmra.mrb[0].mxu0 %v160
  %v462 = vpop.f32.mrb[0].mxu0
  %v463 = vadd.f32 %v279, %v462
  %v464 = vpop.f32.mrb[0].mxu0
  %465 = vmatprep.mubr.f32.mxu0 %v163
  %466 = vmatmul.mubr.f32.gmra.mrb[0].mxu0 %v162
  %v467 = vpop.f32.mrb[0].mxu0
  %v468 = vadd.f32 %v279, %v467
  %v469 = vpop.f32.mrb[0].mxu0
  %470 = vmatprep.mubr.f32.mxu0 %v165
  %471 = vmatmul.mubr.f32.gmra.mrb[0].mxu0 %v164
  %v472 = vpop.f32.mrb[0].mxu0
  %v473 = vadd.f32 %v279, %v472
  %v474 = vpop.f32.mrb[0].mxu0
  %475 = vmatprep.mubr.f32.mxu0 %v167
  %476 = vmatmul.mubr.f32.gmra.mrb[0].mxu0 %v166
  %v477 = vpop.f32.mrb[0].mxu0
  %v478 = vadd.f32 %v279, %v477
  %v479 = vpop.f32.mrb[0].mxu0
  %480 = vmatprep.mubr.f32.mxu0 %v169
  %481 = vmatmul.mubr.f32.gmra.mrb[0].mxu0 %v168
  %v482 = vpop.f32.mrb[0].mxu0
  %v483 = vadd.f32 %v279, %v482
  %v484 = vpop.f32.mrb[0].mxu0
  %485 = vmatprep.mubr.f32.mxu0 %v171
  %486 = vmatmul.mubr.f32.gmra.mrb[0].mxu0 %v170
  %v487 = vpop.f32.mrb[0].mxu0
  %v488 = vadd.f32 %v279, %v487
  %v489 = vpop.f32.mrb[0].mxu0
  %490 = vmatprep.mubr.f32.mxu0 %v173
  %491 = vmatmul.mubr.f32.gmra.mrb[0].mxu0 %v172
  %v492 = vpop.f32.mrb[0].mxu0
  %v493 = vadd.f32 %v279, %v492
  %v494 = vpop.f32.mrb[0].mxu0
  %495 = vmatprep.mubr.f32.mxu0 %v175
  %496 = vmatmul.mubr.f32.gmra.mrb[0].mxu0 %v174
  %v497 = vpop.f32.mrb[0].mxu0
  %v498 = vadd.f32 %v279, %v497
  %v499 = vpop.f32.mrb[0].mxu0
  %500 = vmatprep.mubr.f32.mxu0 %v177
  %501 = vmatmul.mubr.f32.gmra.mrb[0].mxu0 %v176
  %v502 = vpop.f32.mrb[0].mxu0
  %v503 = vadd.f32 %v279, %v502
  %v504 = vpop.f32.mrb[0].mxu0
  %505 = vmatprep.mubr.f32.mxu0 %v179
  %506 = vmatmul.mubr.f32.gmra.mrb[0].mxu0 %v178
  %v507 = vpop.f32.mrb[0].mxu0
  %v508 = vadd.f32 %v279, %v507
  %v509 = vpop.f32.mrb[0].mxu0
  %510 = vmatprep.mubr.f32.mxu0 %v181
  %511 = vmatmul.mubr.f32.gmra.mrb[0].mxu0 %v180
  %v512 = vpop.f32.mrb[0].mxu0
  %v513 = vadd.f32 %v279, %v512
  %v514 = vpop.f32.mrb[0].mxu0
  %515 = vmatprep.mubr.f32.mxu0 %v183
  %516 = vmatmul.mubr.f32.gmra.mrb[0].mxu0 %v182
  %v517 = vpop.f32.mrb[0].mxu0
  %v518 = vadd.f32 %v279, %v517
  %v519 = vpop.f32.mrb[0].mxu0
  %520 = vmatprep.mubr.f32.mxu0 %v185
  %521 = vmatmul.mubr.f32.gmra.mrb[0].mxu0 %v184
  %v522 = vpop.f32.mrb[0].mxu0
  %v523 = vadd.f32 %v279, %v522
  %v524 = vpop.f32.mrb[0].mxu0
  %525 = vmatprep.mubr.f32.mxu0 %v187
  %526 = vmatmul.mubr.f32.gmra.mrb[0].mxu0 %v186
  %v527 = vpop.f32.mrb[0].mxu0
  %v528 = vadd.f32 %v279, %v527
  %v529 = vpop.f32.mrb[0].mxu0
  %530 = vmatprep.mubr.f32.mxu0 %v189
  %531 = vmatmul.mubr.f32.gmra.mrb[0].mxu0 %v188
  %v532 = vpop.f32.mrb[0].mxu0
  %v533 = vadd.f32 %v279, %v532
  %v534 = vpop.f32.mrb[0].mxu0
  %535 = vmatprep.mubr.f32.mxu0 %v191
  %536 = vmatmul.mubr.f32.gmra.mrb[0].mxu0 %v190
  %v537 = vpop.f32.mrb[0].mxu0
  %v538 = vadd.f32 %v279, %v537
  %v539 = vpop.f32.mrb[0].mxu0
  %540 = vmatprep.mubr.f32.mxu0 %v193
  %541 = vmatmul.mubr.f32.gmra.mrb[0].mxu0 %v192
  %v542 = vpop.f32.mrb[0].mxu0
  %v543 = vadd.f32 %v279, %v542
  %v544 = vpop.f32.mrb[0].mxu0
  %545 = vmatprep.mubr.f32.mxu0 %v195
  %546 = vmatmul.mubr.f32.gmra.mrb[0].mxu0 %v194
  %v547 = vpop.f32.mrb[0].mxu0
  %v548 = vadd.f32 %v279, %v547
  %v549 = vpop.f32.mrb[0].mxu0
  %550 = vmatprep.mubr.f32.mxu0 %v197
  %551 = vmatmul.mubr.f32.gmra.mrb[0].mxu0 %v196
  %v552 = vpop.f32.mrb[0].mxu0
  %v553 = vadd.f32 %v279, %v552
  %v554 = vpop.f32.mrb[0].mxu0
  %555 = vmatprep.mubr.f32.mxu0 %v199
  %556 = vmatmul.mubr.f32.gmra.mrb[0].mxu0 %v198
  %v557 = vpop.f32.mrb[0].mxu0
  %v558 = vadd.f32 %v279, %v557
  %v559 = vpop.f32.mrb[0].mxu0
  %560 = vmatprep.mubr.f32.mxu0 %v201
  %561 = vmatmul.mubr.f32.gmra.mrb[0].mxu0 %v200
  %v562 = vpop.f32.mrb[0].mxu0
  %v563 = vadd.f32 %v279, %v562
  %v564 = vpop.f32.mrb[0].mxu0
  %565 = vmatprep.mubr.f32.mxu0 %v203
  %566 = vmatmul.mubr.f32.gmra.mrb[0].mxu0 %v202
  %v567 = vpop.f32.mrb[0].mxu0
  %v568 = vadd.f32 %v279, %v567
  %v569 = vpop.f32.mrb[0].mxu0
  %570 = vmatprep.mubr.f32.mxu0 %v205
  %571 = vmatmul.mubr.f32.gmra.mrb[0].mxu0 %v204
  %v572 = vpop.f32.mrb[0].mxu0
  %v573 = vadd.f32 %v279, %v572
  %v574 = vpop.f32.mrb[0].mxu0
  %575 = vmatprep.mubr.f32.mxu0 %v207
  %576 = vmatmul.mubr.f32.gmra.mrb[0].mxu0 %v206
  %v577 = vpop.f32.mrb[0].mxu0
  %v578 = vadd.f32 %v279, %v577
  %v579 = vpop.f32.mrb[0].mxu0
  %580 = vmatprep.mubr.f32.mxu0 %v209
  %581 = vmatmul.mubr.f32.gmra.mrb[0].mxu0 %v208
  %v582 = vpop.f32.mrb[0].mxu0
  %v583 = vadd.f32 %v279, %v582
  %v584 = vpop.f32.mrb[0].mxu0
  %585 = vmatprep.mubr.f32.mxu0 %v211
  %586 = vmatmul.mubr.f32.gmra.mrb[0].mxu0 %v210
  %v587 = vpop.f32.mrb[0].mxu0
  %v588 = vadd.f32 %v279, %v587
  %v589 = vpop.f32.mrb[0].mxu0
  %590 = vmatprep.mubr.f32.mxu0 %v213
  %591 = vmatmul.mubr.f32.gmra.mrb[0].mxu0 %v212
  %v592 = vpop.f32.mrb[0].mxu0
  %v593 = vadd.f32 %v279, %v592
  %v594 = vpop.f32.mrb[0].mxu0
  %595 = vmatprep.mubr.f32.mxu0 %v215
  %596 = vmatmul.mubr.f32.gmra.mrb[0].mxu0 %v214
  %v597 = vpop.f32.mrb[0].mxu0
  %v598 = vadd.f32 %v279, %v597
  %v599 = vpop.f32.mrb[0].mxu0
  %600 = vmatprep.mubr.f32.mxu0 %v217
  %601 = vmatmul.mubr.f32.gmra.mrb[0].mxu0 %v216
  %v602 = vpop.f32.mrb[0].mxu0
  %v603 = vadd.f32 %v279, %v602
  %v604 = vpop.f32.mrb[0].mxu0
  %605 = vmatprep.mubr.f32.mxu0 %v219
  %606 = vmatmul.mubr.f32.gmra.mrb[0].mxu0 %v218
  %v607 = vpop.f32.mrb[0].mxu0
  %v608 = vadd.f32 %v279, %v607
  %v609 = vpop.f32.mrb[0].mxu0
  %610 = vmatprep.mubr.f32.mxu0 %v221
  %611 = vmatmul.mubr.f32.gmra.mrb[0].mxu0 %v220
  %v612 = vpop.f32.mrb[0].mxu0
  %v613 = vadd.f32 %v279, %v612
  %v614 = vpop.f32.mrb[0].mxu0
  %615 = vmatprep.mubr.f32.mxu0 %v223
  %616 = vmatmul.mubr.f32.gmra.mrb[0].mxu0 %v222
  %v617 = vpop.f32.mrb[0].mxu0
  %v618 = vadd.f32 %v279, %v617
  %v619 = vpop.f32.mrb[0].mxu0
  %620 = vmatprep.mubr.f32.mxu0 %v225
  %621 = vmatmul.mubr.f32.gmra.mrb[0].mxu0 %v224
  %v622 = vpop.f32.mrb[0].mxu0
  %v623 = vadd.f32 %v279, %v622
  %v624 = vpop.f32.mrb[0].mxu0
  %625 = vmatprep.mubr.f32.mxu0 %v227
  %626 = vmatmul.mubr.f32.gmra.mrb[0].mxu0 %v226
  %v627 = vpop.f32.mrb[0].mxu0
  %v628 = vadd.f32 %v279, %v627
  %v629 = vpop.f32.mrb[0].mxu0
  %630 = vmatprep.mubr.f32.mxu0 %v229
  %631 = vmatmul.mubr.f32.gmra.mrb[0].mxu0 %v228
  %v632 = vpop.f32.mrb[0].mxu0
  %v633 = vadd.f32 %v279, %v632
  %v634 = vpop.f32.mrb[0].mxu0
  %635 = vmatprep.mubr.f32.mxu0 %v231
  %636 = vmatmul.mubr.f32.gmra.mrb[0].mxu0 %v230
  %v637 = vpop.f32.mrb[0].mxu0
  %v638 = vadd.f32 %v279, %v637
  %v639 = vpop.f32.mrb[0].mxu0
  %640 = vmatprep.mubr.f32.mxu0 %v233
  %641 = vmatmul.mubr.f32.gmra.mrb[0].mxu0 %v232
  %v642 = vpop.f32.mrb[0].mxu0
  %v643 = vadd.f32 %v279, %v642
  %v644 = vpop.f32.mrb[0].mxu0
  %645 = vmatprep.mubr.f32.mxu0 %v235
  %646 = vmatmul.mubr.f32.gmra.mrb[0].mxu0 %v234
  %v647 = vpop.f32.mrb[0].mxu0
  %v648 = vadd.f32 %v279, %v647
  %v649 = vpop.f32.mrb[0].mxu0
  %650 = vmatprep.mubr.f32.mxu0 %v237
  %651 = vmatmul.mubr.f32.gmra.mrb[0].mxu0 %v236
  %v652 = vpop.f32.mrb[0].mxu0
  %v653 = vadd.f32 %v279, %v652
  %v654 = vpop.f32.mrb[0].mxu0
  %655 = vmatprep.mubr.f32.mxu0 %v239
  %656 = vmatmul.mubr.f32.gmra.mrb[0].mxu0 %v238
  %v657 = vpop.f32.mrb[0].mxu0
  %v658 = vadd.f32 %v279, %v657
  %v659 = vpop.f32.mrb[0].mxu0
  %660 = vmatprep.mubr.f32.mxu0 %v241
  %661 = vmatmul.mubr.f32.gmra.mrb[0].mxu0 %v240
  %v662 = vpop.f32.mrb[0].mxu0
  %v663 = vadd.f32 %v279, %v662
  %v664 = vpop.f32.mrb[0].mxu0
  %665 = vdwg.mxu0
  %v666 = vmax.f32 %v348, 0.0
  %v667 = vmax.f32 %v353, 0.0
  %v668 = vmax.f32 %v358, 0.0
  %v669 = vmax.f32 %v363, 0.0
  %v670 = vmax.f32 %v368, 0.0
  %v671 = vmax.f32 %v373, 0.0
  %v672 = vmax.f32 %v378, 0.0
  %v673 = vmax.f32 %v383, 0.0
  %v674 = vmax.f32 %v388, 0.0
  %v675 = vmax.f32 %v393, 0.0
  %v676 = vmax.f32 %v398, 0.0
  %v677 = vmax.f32 %v403, 0.0
  %v678 = vmax.f32 %v408, 0.0
  %v679 = vmax.f32 %v413, 0.0
  %v680 = vmax.f32 %v418, 0.0
  %v681 = vmax.f32 %v423, 0.0
  %v682 = vmax.f32 %v428, 0.0
  %v683 = vmax.f32 %v433, 0.0
  %v684 = vmax.f32 %v438, 0.0
  %v685 = vmax.f32 %v443, 0.0
  %v686 = vmax.f32 %v448, 0.0
  %v687 = vmax.f32 %v453, 0.0
  %v688 = vmax.f32 %v458, 0.0
  %v689 = vmax.f32 %v463, 0.0
  %v690 = vmax.f32 %v468, 0.0
  %v691 = vmax.f32 %v473, 0.0
  %v692 = vmax.f32 %v478, 0.0
  %v693 = vmax.f32 %v483, 0.0
  %v694 = vmax.f32 %v488, 0.0
  %v695 = vmax.f32 %v493, 0.0
  %v696 = vmax.f32 %v498, 0.0
  %v697 = vmax.f32 %v503, 0.0
  %v698 = vmax.f32 %v508, 0.0
  %v699 = vmax.f32 %v513, 0.0
  %v700 = vmax.f32 %v518, 0.0
  %v701 = vmax.f32 %v523, 0.0
  %v702 = vmax.f32 %v528, 0.0
  %v703 = vmax.f32 %v533, 0.0
  %v704 = vmax.f32 %v538, 0.0
  %v705 = vmax.f32 %v543, 0.0
  %v706 = vmax.f32 %v548, 0.0
  %v707 = vmax.f32 %v553, 0.0
  %v708 = vmax.f32 %v558, 0.0
  %v709 = vmax.f32 %v563, 0.0
  %v710 = vmax.f32 %v568, 0.0
  %v711 = vmax.f32 %v573, 0.0
  %v712 = vmax.f32 %v578, 0.0
  %v713 = vmax.f32 %v583, 0.0
  %v714 = vmax.f32 %v588, 0.0
  %v715 = vmax.f32 %v593, 0.0
  %v716 = vmax.f32 %v598, 0.0
  %v717 = vmax.f32 %v603, 0.0
  %v718 = vmax.f32 %v608, 0.0
  %v719 = vmax.f32 %v613, 0.0
  %v720 = vmax.f32 %v618, 0.0
  %v721 = vmax.f32 %v623, 0.0
  %v722 = vmax.f32 %v628, 0.0
  %v723 = vmax.f32 %v633, 0.0
  %v724 = vmax.f32 %v638, 0.0
  %v725 = vmax.f32 %v643, 0.0
  %v726 = vmax.f32 %v648, 0.0
  %v727 = vmax.f32 %v653, 0.0
  %v728 = vmax.f32 %v658, 0.0
  %v729 = vmax.f32 %v663, 0.0
  %vm730 = vcmask 261120
  %731 = vst.msk [vmem:[#allocation2] sm:$0xff] %vm730, %v666
  %732 = vst.msk [vmem:[#allocation2 + $0x10] sm:$0xff] %vm730, %v667
  %733 = vst.msk [vmem:[#allocation2 + $0x20] sm:$0xff] %vm730, %v668
  %734 = vst.msk [vmem:[#allocation2 + $0x30] sm:$0xff] %vm730, %v669
  %735 = vst.msk [vmem:[#allocation2 + $0x40] sm:$0xff] %vm730, %v670
  %736 = vst.msk [vmem:[#allocation2 + $0x50] sm:$0xff] %vm730, %v671
  %737 = vst.msk [vmem:[#allocation2 + $0x60] sm:$0xff] %vm730, %v672
  %738 = vst.msk [vmem:[#allocation2 + $0x70] sm:$0xff] %vm730, %v673
  %747 = vrot.lane.b32.xlu0 %v674, 32
  %v748 = vpop.permute.xlu0 %747
  %749 = vrot.lane.b32.xlu0 %v675, 32
  %v750 = vpop.permute.xlu0 %749
  %751 = vrot.lane.b32.xlu0 %v676, 32
  %v752 = vpop.permute.xlu0 %751
  %753 = vrot.lane.b32.xlu0 %v677, 32
  %v754 = vpop.permute.xlu0 %753
  %755 = vrot.lane.b32.xlu0 %v678, 32
  %v756 = vpop.permute.xlu0 %755
  %757 = vrot.lane.b32.xlu0 %v679, 32
  %v758 = vpop.permute.xlu0 %757
  %759 = vrot.lane.b32.xlu0 %v680, 32
  %v760 = vpop.permute.xlu0 %759
  %761 = vrot.lane.b32.xlu0 %v681, 32
  %v762 = vpop.permute.xlu0 %761
  %vm771 = vcmask 523520
  %772 = vst.msk [vmem:[#allocation2] sm:$0xff] %vm771, %v748
  %773 = vst.msk [vmem:[#allocation2 + $0x10] sm:$0xff] %vm771, %v750
  %774 = vst.msk [vmem:[#allocation2 + $0x20] sm:$0xff] %vm771, %v752
  %775 = vst.msk [vmem:[#allocation2 + $0x30] sm:$0xff] %vm771, %v754
  %776 = vst.msk [vmem:[#allocation2 + $0x40] sm:$0xff] %vm771, %v756
  %777 = vst.msk [vmem:[#allocation2 + $0x50] sm:$0xff] %vm771, %v758
  %778 = vst.msk [vmem:[#allocation2 + $0x60] sm:$0xff] %vm771, %v760
  %779 = vst.msk [vmem:[#allocation2 + $0x70] sm:$0xff] %vm771, %v762
  %788 = vrot.lane.b32.xlu0 %v682, 64
  %v789 = vpop.permute.xlu0 %788
  %790 = vrot.lane.b32.xlu0 %v683, 64
  %v791 = vpop.permute.xlu0 %790
  %792 = vrot.lane.b32.xlu0 %v684, 64
  %v793 = vpop.permute.xlu0 %792
  %794 = vrot.lane.b32.xlu0 %v685, 64
  %v795 = vpop.permute.xlu0 %794
  %796 = vrot.lane.b32.xlu0 %v686, 64
  %v797 = vpop.permute.xlu0 %796
  %798 = vrot.lane.b32.xlu0 %v687, 64
  %v799 = vpop.permute.xlu0 %798
  %800 = vrot.lane.b32.xlu0 %v688, 64
  %v801 = vpop.permute.xlu0 %800
  %802 = vrot.lane.b32.xlu0 %v689, 64
  %v803 = vpop.permute.xlu0 %802
  %vm812 = vcmask 785920
  %813 = vst.msk [vmem:[#allocation2] sm:$0xff] %vm812, %v789
  %814 = vst.msk [vmem:[#allocation2 + $0x10] sm:$0xff] %vm812, %v791
  %815 = vst.msk [vmem:[#allocation2 + $0x20] sm:$0xff] %vm812, %v793
  %816 = vst.msk [vmem:[#allocation2 + $0x30] sm:$0xff] %vm812, %v795
  %817 = vst.msk [vmem:[#allocation2 + $0x40] sm:$0xff] %vm812, %v797
  %818 = vst.msk [vmem:[#allocation2 + $0x50] sm:$0xff] %vm812, %v799
  %819 = vst.msk [vmem:[#allocation2 + $0x60] sm:$0xff] %vm812, %v801
  %820 = vst.msk [vmem:[#allocation2 + $0x70] sm:$0xff] %vm812, %v803
  %829 = vrot.lane.b32.xlu0 %v690, 96
  %v830 = vpop.permute.xlu0 %829
  %831 = vrot.lane.b32.xlu0 %v691, 96
  %v832 = vpop.permute.xlu0 %831
  %833 = vrot.lane.b32.xlu0 %v692, 96
  %v834 = vpop.permute.xlu0 %833
  %835 = vrot.lane.b32.xlu0 %v693, 96
  %v836 = vpop.permute.xlu0 %835
  %837 = vrot.lane.b32.xlu0 %v694, 96
  %v838 = vpop.permute.xlu0 %837
  %839 = vrot.lane.b32.xlu0 %v695, 96
  %v840 = vpop.permute.xlu0 %839
  %841 = vrot.lane.b32.xlu0 %v696, 96
  %v842 = vpop.permute.xlu0 %841
  %843 = vrot.lane.b32.xlu0 %v697, 96
  %v844 = vpop.permute.xlu0 %843
  %vm853 = vcmask 1048320
  %854 = vst.msk [vmem:[#allocation2] sm:$0xff] %vm853, %v830
  %855 = vst.msk [vmem:[#allocation2 + $0x10] sm:$0xff] %vm853, %v832
  %856 = vst.msk [vmem:[#allocation2 + $0x20] sm:$0xff] %vm853, %v834
  %857 = vst.msk [vmem:[#allocation2 + $0x30] sm:$0xff] %vm853, %v836
  %858 = vst.msk [vmem:[#allocation2 + $0x40] sm:$0xff] %vm853, %v838
  %859 = vst.msk [vmem:[#allocation2 + $0x50] sm:$0xff] %vm853, %v840
  %860 = vst.msk [vmem:[#allocation2 + $0x60] sm:$0xff] %vm853, %v842
  %861 = vst.msk [vmem:[#allocation2 + $0x70] sm:$0xff] %vm853, %v844
  %862 = vst.msk [vmem:[#allocation2 + $0x8] sm:$0xff] %vm730, %v698
  %863 = vst.msk [vmem:[#allocation2 + $0x18] sm:$0xff] %vm730, %v699
  %864 = vst.msk [vmem:[#allocation2 + $0x28] sm:$0xff] %vm730, %v700
  %865 = vst.msk [vmem:[#allocation2 + $0x38] sm:$0xff] %vm730, %v701
  %866 = vst.msk [vmem:[#allocation2 + $0x48] sm:$0xff] %vm730, %v702
  %867 = vst.msk [vmem:[#allocation2 + $0x58] sm:$0xff] %vm730, %v703
  %868 = vst.msk [vmem:[#allocation2 + $0x68] sm:$0xff] %vm730, %v704
  %869 = vst.msk [vmem:[#allocation2 + $0x78] sm:$0xff] %vm730, %v705
  %878 = vrot.lane.b32.xlu0 %v706, 32
  %v879 = vpop.permute.xlu0 %878
  %880 = vrot.lane.b32.xlu0 %v707, 32
  %v881 = vpop.permute.xlu0 %880
  %882 = vrot.lane.b32.xlu0 %v708, 32
  %v883 = vpop.permute.xlu0 %882
  %884 = vrot.lane.b32.xlu0 %v709, 32
  %v885 = vpop.permute.xlu0 %884
  %886 = vrot.lane.b32.xlu0 %v710, 32
  %v887 = vpop.permute.xlu0 %886
  %888 = vrot.lane.b32.xlu0 %v711, 32
  %v889 = vpop.permute.xlu0 %888
  %890 = vrot.lane.b32.xlu0 %v712, 32
  %v891 = vpop.permute.xlu0 %890
  %892 = vrot.lane.b32.xlu0 %v713, 32
  %v893 = vpop.permute.xlu0 %892
  %902 = vst.msk [vmem:[#allocation2 + $0x8] sm:$0xff] %vm771, %v879
  %903 = vst.msk [vmem:[#allocation2 + $0x18] sm:$0xff] %vm771, %v881
  %904 = vst.msk [vmem:[#allocation2 + $0x28] sm:$0xff] %vm771, %v883
  %905 = vst.msk [vmem:[#allocation2 + $0x38] sm:$0xff] %vm771, %v885
  %906 = vst.msk [vmem:[#allocation2 + $0x48] sm:$0xff] %vm771, %v887
  %907 = vst.msk [vmem:[#allocation2 + $0x58] sm:$0xff] %vm771, %v889
  %908 = vst.msk [vmem:[#allocation2 + $0x68] sm:$0xff] %vm771, %v891
  %909 = vst.msk [vmem:[#allocation2 + $0x78] sm:$0xff] %vm771, %v893
  %918 = vrot.lane.b32.xlu0 %v714, 64
  %v919 = vpop.permute.xlu0 %918
  %920 = vrot.lane.b32.xlu0 %v715, 64
  %v921 = vpop.permute.xlu0 %920
  %922 = vrot.lane.b32.xlu0 %v716, 64
  %v923 = vpop.permute.xlu0 %922
  %924 = vrot.lane.b32.xlu0 %v717, 64
  %v925 = vpop.permute.xlu0 %924
  %926 = vrot.lane.b32.xlu0 %v718, 64
  %v927 = vpop.permute.xlu0 %926
  %928 = vrot.lane.b32.xlu0 %v719, 64
  %v929 = vpop.permute.xlu0 %928
  %930 = vrot.lane.b32.xlu0 %v720, 64
  %v931 = vpop.permute.xlu0 %930
  %932 = vrot.lane.b32.xlu0 %v721, 64
  %v933 = vpop.permute.xlu0 %932
  %942 = vst.msk [vmem:[#allocation2 + $0x8] sm:$0xff] %vm812, %v919
  %943 = vst.msk [vmem:[#allocation2 + $0x18] sm:$0xff] %vm812, %v921
  %944 = vst.msk [vmem:[#allocation2 + $0x28] sm:$0xff] %vm812, %v923
  %945 = vst.msk [vmem:[#allocation2 + $0x38] sm:$0xff] %vm812, %v925
  %946 = vst.msk [vmem:[#allocation2 + $0x48] sm:$0xff] %vm812, %v927
  %947 = vst.msk [vmem:[#allocation2 + $0x58] sm:$0xff] %vm812, %v929
  %948 = vst.msk [vmem:[#allocation2 + $0x68] sm:$0xff] %vm812, %v931
  %949 = vst.msk [vmem:[#allocation2 + $0x78] sm:$0xff] %vm812, %v933
  %958 = vrot.lane.b32.xlu0 %v722, 96
  %v959 = vpop.permute.xlu0 %958
  %960 = vrot.lane.b32.xlu0 %v723, 96
  %v961 = vpop.permute.xlu0 %960
  %962 = vrot.lane.b32.xlu0 %v724, 96
  %v963 = vpop.permute.xlu0 %962
  %964 = vrot.lane.b32.xlu0 %v725, 96
  %v965 = vpop.permute.xlu0 %964
  %966 = vrot.lane.b32.xlu0 %v726, 96
  %v967 = vpop.permute.xlu0 %966
  %968 = vrot.lane.b32.xlu0 %v727, 96
  %v969 = vpop.permute.xlu0 %968
  %970 = vrot.lane.b32.xlu0 %v728, 96
  %v971 = vpop.permute.xlu0 %970
  %972 = vrot.lane.b32.xlu0 %v729, 96
  %v973 = vpop.permute.xlu0 %972
  %982 = vst.msk [vmem:[#allocation2 + $0x8] sm:$0xff] %vm853, %v959
  %983 = vst.msk [vmem:[#allocation2 + $0x18] sm:$0xff] %vm853, %v961
  %984 = vst.msk [vmem:[#allocation2 + $0x28] sm:$0xff] %vm853, %v963
  %985 = vst.msk [vmem:[#allocation2 + $0x38] sm:$0xff] %vm853, %v965
  %986 = vst.msk [vmem:[#allocation2 + $0x48] sm:$0xff] %vm853, %v967
  %987 = vst.msk [vmem:[#allocation2 + $0x58] sm:$0xff] %vm853, %v969
  %988 = vst.msk [vmem:[#allocation2 + $0x68] sm:$0xff] %vm853, %v971
  %989 = vst.msk [vmem:[#allocation2 + $0x78] sm:$0xff] %vm853, %v973
  %v990 = vld [vmem:[#allocation2] sm:$0xff]
  %v991 = vld [vmem:[#allocation2 + $0x10] sm:$0xff]
  %v992 = vld [vmem:[#allocation2 + $0x20] sm:$0xff]
  %v993 = vld [vmem:[#allocation2 + $0x30] sm:$0xff]
  %v994 = vld [vmem:[%s4] sm:$0xff]
  %v995 = vld [vmem:[%s4 + $0x8] sm:$0xff]
  %v996 = vld [vmem:[%s4 + $0x10] sm:$0xff]
  %v997 = vld [vmem:[%s4 + $0x18] sm:$0xff]
  %v998 = vld [vmem:[%s4 + $0x20] sm:$0xff]
  %v999 = vld [vmem:[%s4 + $0x28] sm:$0xff]
  %v1000 = vld [vmem:[%s4 + $0x30] sm:$0xff]
  %v1001 = vld [vmem:[%s4 + $0x38] sm:$0xff]
  %v1002 = vld [vmem:[%s4 + $0x40] sm:$0xff]
  %v1003 = vld [vmem:[%s4 + $0x48] sm:$0xff]
  %v1004 = vld [vmem:[%s4 + $0x50] sm:$0xff]
  %v1005 = vld [vmem:[%s4 + $0x58] sm:$0xff]
  %v1006 = vld [vmem:[%s4 + $0x60] sm:$0xff]
  %v1007 = vld [vmem:[%s4 + $0x68] sm:$0xff]
  %v1008 = vld [vmem:[%s4 + $0x70] sm:$0xff]
  %v1009 = vld [vmem:[%s4 + $0x78] sm:$0xff]
  %v1010 = vld [vmem:[%s4 + $0x80] sm:$0xff]
  %v1011 = vld [vmem:[%s4 + $0x88] sm:$0xff]
  %v1012 = vld [vmem:[%s4 + $0x90] sm:$0xff]
  %v1013 = vld [vmem:[%s4 + $0x98] sm:$0xff]
  %v1014 = vld [vmem:[%s4 + $0xa0] sm:$0xff]
  %v1015 = vld [vmem:[%s4 + $0xa8] sm:$0xff]
  %v1016 = vld [vmem:[%s4 + $0xb0] sm:$0xff]
  %v1017 = vld [vmem:[%s4 + $0xb8] sm:$0xff]
  %v1018 = vld [vmem:[%s4 + $0xc0] sm:$0xff]
  %v1019 = vld [vmem:[%s4 + $0xc8] sm:$0xff]
  %v1020 = vld [vmem:[%s4 + $0xd0] sm:$0xff]
  %v1021 = vld [vmem:[%s4 + $0xd8] sm:$0xff]
  %v1022 = vld [vmem:[%s4 + $0xe0] sm:$0xff]
  %v1023 = vld [vmem:[%s4 + $0xe8] sm:$0xff]
  %v1024 = vld [vmem:[%s4 + $0xf0] sm:$0xff]
  %v1025 = vld [vmem:[%s4 + $0xf8] sm:$0xff]
  %v1026 = vld [vmem:[%s4 + $0x100] sm:$0xff]
  %v1027 = vld [vmem:[%s4 + $0x108] sm:$0xff]
  %v1028 = vld [vmem:[%s4 + $0x110] sm:$0xff]
  %v1029 = vld [vmem:[%s4 + $0x118] sm:$0xff]
  %v1030 = vld [vmem:[%s4 + $0x120] sm:$0xff]
  %v1031 = vld [vmem:[%s4 + $0x128] sm:$0xff]
  %v1032 = vld [vmem:[%s4 + $0x130] sm:$0xff]
  %v1033 = vld [vmem:[%s4 + $0x138] sm:$0xff]
  %v1034 = vld [vmem:[%s4 + $0x140] sm:$0xff]
  %v1035 = vld [vmem:[%s4 + $0x148] sm:$0xff]
  %v1036 = vld [vmem:[%s4 + $0x150] sm:$0xff]
  %v1037 = vld [vmem:[%s4 + $0x158] sm:$0xff]
  %v1038 = vld [vmem:[%s4 + $0x160] sm:$0xff]
  %v1039 = vld [vmem:[%s4 + $0x168] sm:$0xff]
  %v1040 = vld [vmem:[%s4 + $0x170] sm:$0xff]
  %v1041 = vld [vmem:[%s4 + $0x178] sm:$0xff]
  %v1042 = vld [vmem:[%s4 + $0x180] sm:$0xff]
  %v1043 = vld [vmem:[%s4 + $0x188] sm:$0xff]
  %v1044 = vld [vmem:[%s4 + $0x190] sm:$0xff]
  %v1045 = vld [vmem:[%s4 + $0x198] sm:$0xff]
  %v1046 = vld [vmem:[%s4 + $0x1a0] sm:$0xff]
  %v1047 = vld [vmem:[%s4 + $0x1a8] sm:$0xff]
  %v1048 = vld [vmem:[%s4 + $0x1b0] sm:$0xff]
  %v1049 = vld [vmem:[%s4 + $0x1b8] sm:$0xff]
  %v1050 = vld [vmem:[%s4 + $0x1c0] sm:$0xff]
  %v1051 = vld [vmem:[%s4 + $0x1c8] sm:$0xff]
  %v1052 = vld [vmem:[%s4 + $0x1d0] sm:$0xff]
  %v1053 = vld [vmem:[%s4 + $0x1d8] sm:$0xff]
  %v1054 = vld [vmem:[%s4 + $0x1e0] sm:$0xff]
  %v1055 = vld [vmem:[%s4 + $0x1e8] sm:$0xff]
  %v1056 = vld [vmem:[%s4 + $0x1f0] sm:$0xff]
  %v1057 = vld [vmem:[%s4 + $0x1f8] sm:$0xff]
  %v1058 = vld [vmem:[%s5] sm:$0x1]
  %v1060 = vlaneseq
  %v1061 = vshrl.u32 %v1060, 7
  %v1062 = vsub.s32 0, %v1061
  %v1063 = vrot.slane %v1058, %v1062
  %1065 = vmatprep.subr.mxu0 0.0
  %1066 = vmatpush1.msra.mxu0 %v994
  %1067 = vmatprep.subr.mxu0 0.0
  %1068 = vmatpush1.msra.mxu0 %v995
  %1069 = vmatprep.subr.mxu0 0.0
  %1070 = vmatpush1.msra.mxu0 %v996
  %1071 = vmatprep.subr.mxu0 0.0
  %1072 = vmatpush1.msra.mxu0 %v997
  %1073 = vmatprep.subr.mxu0 0.0
  %1074 = vmatpush1.msra.mxu0 %v998
  %1075 = vmatprep.subr.mxu0 0.0
  %1076 = vmatpush1.msra.mxu0 %v999
  %1077 = vmatprep.subr.mxu0 0.0
  %1078 = vmatpush1.msra.mxu0 %v1000
  %1079 = vmatprep.subr.mxu0 0.0
  %1080 = vmatpush1.msra.mxu0 %v1001
  %1081 = vmatprep.subr.mxu0 0.0
  %1082 = vmatpush1.msra.mxu0 %v1002
  %1083 = vmatprep.subr.mxu0 0.0
  %1084 = vmatpush1.msra.mxu0 %v1003
  %1085 = vmatprep.subr.mxu0 0.0
  %1086 = vmatpush1.msra.mxu0 %v1004
  %1087 = vmatprep.subr.mxu0 0.0
  %1088 = vmatpush1.msra.mxu0 %v1005
  %1089 = vmatprep.subr.mxu0 0.0
  %1090 = vmatpush1.msra.mxu0 %v1006
  %1091 = vmatprep.subr.mxu0 0.0
  %1092 = vmatpush1.msra.mxu0 %v1007
  %1093 = vmatprep.subr.mxu0 0.0
  %1094 = vmatpush1.msra.mxu0 %v1008
  %1095 = vmatprep.subr.mxu0 0.0
  %1096 = vmatpush1.msra.mxu0 %v1009
  %1097 = vmatprep.subr.mxu0 0.0
  %1098 = vmatpush1.msra.mxu0 %v1010
  %1099 = vmatprep.subr.mxu0 0.0
  %1100 = vmatpush1.msra.mxu0 %v1011
  %1101 = vmatprep.subr.mxu0 0.0
  %1102 = vmatpush1.msra.mxu0 %v1012
  %1103 = vmatprep.subr.mxu0 0.0
  %1104 = vmatpush1.msra.mxu0 %v1013
  %1105 = vmatprep.subr.mxu0 0.0
  %1106 = vmatpush1.msra.mxu0 %v1014
  %1107 = vmatprep.subr.mxu0 0.0
  %1108 = vmatpush1.msra.mxu0 %v1015
  %1109 = vmatprep.subr.mxu0 0.0
  %1110 = vmatpush1.msra.mxu0 %v1016
  %1111 = vmatprep.subr.mxu0 0.0
  %1112 = vmatpush1.msra.mxu0 %v1017
  %1113 = vmatprep.subr.mxu0 0.0
  %1114 = vmatpush1.msra.mxu0 %v1018
  %1115 = vmatprep.subr.mxu0 0.0
  %1116 = vmatpush1.msra.mxu0 %v1019
  %1117 = vmatprep.subr.mxu0 0.0
  %1118 = vmatpush1.msra.mxu0 %v1020
  %1119 = vmatprep.subr.mxu0 0.0
  %1120 = vmatpush1.msra.mxu0 %v1021
  %1121 = vmatprep.subr.mxu0 0.0
  %1122 = vmatpush1.msra.mxu0 %v1022
  %1123 = vmatprep.subr.mxu0 0.0
  %1124 = vmatpush1.msra.mxu0 %v1023
  %1125 = vmatprep.subr.mxu0 0.0
  %1126 = vmatpush1.msra.mxu0 %v1024
  %1127 = vmatprep.subr.mxu0 0.0
  %1128 = vmatpush1.msra.mxu0 %v1025
  %1129 = vmatprep.mubr.f32.mxu0 %v991
  %1130 = vmatmul.mubr.f32.gmra.mrb[0].mxu0 %v990
  %v1131 = vpop.f32.mrb[0].mxu0
  %v1132 = vadd.f32 %v1063, %v1131
  %v1133 = vpop.f32.mrb[0].mxu0
  %1134 = vdwg.mxu0
  %1135 = vmatprep.subr.mxu0 0.0
  %1136 = vmatpush1.msra.mxu0 %v1026
  %1137 = vmatprep.subr.mxu0 0.0
  %1138 = vmatpush1.msra.mxu0 %v1027
  %1139 = vmatprep.subr.mxu0 0.0
  %1140 = vmatpush1.msra.mxu0 %v1028
  %1141 = vmatprep.subr.mxu0 0.0
  %1142 = vmatpush1.msra.mxu0 %v1029
  %1143 = vmatprep.subr.mxu0 0.0
  %1144 = vmatpush1.msra.mxu0 %v1030
  %1145 = vmatprep.subr.mxu0 0.0
  %1146 = vmatpush1.msra.mxu0 %v1031
  %1147 = vmatprep.subr.mxu0 0.0
  %1148 = vmatpush1.msra.mxu0 %v1032
  %1149 = vmatprep.subr.mxu0 0.0
  %1150 = vmatpush1.msra.mxu0 %v1033
  %1151 = vmatprep.subr.mxu0 0.0
  %1152 = vmatpush1.msra.mxu0 %v1034
  %1153 = vmatprep.subr.mxu0 0.0
  %1154 = vmatpush1.msra.mxu0 %v1035
  %1155 = vmatprep.subr.mxu0 0.0
  %1156 = vmatpush1.msra.mxu0 %v1036
  %1157 = vmatprep.subr.mxu0 0.0
  %1158 = vmatpush1.msra.mxu0 %v1037
  %1159 = vmatprep.subr.mxu0 0.0
  %1160 = vmatpush1.msra.mxu0 %v1038
  %1161 = vmatprep.subr.mxu0 0.0
  %1162 = vmatpush1.msra.mxu0 %v1039
  %1163 = vmatprep.subr.mxu0 0.0
  %1164 = vmatpush1.msra.mxu0 %v1040
  %1165 = vmatprep.subr.mxu0 0.0
  %1166 = vmatpush1.msra.mxu0 %v1041
  %1167 = vmatprep.subr.mxu0 0.0
  %1168 = vmatpush1.msra.mxu0 %v1042
  %1169 = vmatprep.subr.mxu0 0.0
  %1170 = vmatpush1.msra.mxu0 %v1043
  %1171 = vmatprep.subr.mxu0 0.0
  %1172 = vmatpush1.msra.mxu0 %v1044
  %1173 = vmatprep.subr.mxu0 0.0
  %1174 = vmatpush1.msra.mxu0 %v1045
  %1175 = vmatprep.subr.mxu0 0.0
  %1176 = vmatpush1.msra.mxu0 %v1046
  %1177 = vmatprep.subr.mxu0 0.0
  %1178 = vmatpush1.msra.mxu0 %v1047
  %1179 = vmatprep.subr.mxu0 0.0
  %1180 = vmatpush1.msra.mxu0 %v1048
  %1181 = vmatprep.subr.mxu0 0.0
  %1182 = vmatpush1.msra.mxu0 %v1049
  %1183 = vmatprep.subr.mxu0 0.0
  %1184 = vmatpush1.msra.mxu0 %v1050
  %1185 = vmatprep.subr.mxu0 0.0
  %1186 = vmatpush1.msra.mxu0 %v1051
  %1187 = vmatprep.subr.mxu0 0.0
  %1188 = vmatpush1.msra.mxu0 %v1052
  %1189 = vmatprep.subr.mxu0 0.0
  %1190 = vmatpush1.msra.mxu0 %v1053
  %1191 = vmatprep.subr.mxu0 0.0
  %1192 = vmatpush1.msra.mxu0 %v1054
  %1193 = vmatprep.subr.mxu0 0.0
  %1194 = vmatpush1.msra.mxu0 %v1055
  %1195 = vmatprep.subr.mxu0 0.0
  %1196 = vmatpush1.msra.mxu0 %v1056
  %1197 = vmatprep.subr.mxu0 0.0
  %1198 = vmatpush1.msra.mxu0 %v1057
  %1199 = vmatprep.mubr.f32.mxu0 %v993
  %1200 = vmatmul.mubr.f32.gmra.mrb[0].mxu0 %v992
  %v1201 = vpop.f32.mrb[0].mxu0
  %v1202 = vadd.f32 %v1132, %v1201
  %v1203 = vpop.f32.mrb[0].mxu0
  %1204 = vdwg.mxu0
  %v1205 = vmax.f32 %v1202, 0.0
  %v1206 = vld [vmem:[%s6] sm:$0xff]
  %v1207 = vld [vmem:[%s6 + $0x8] sm:$0xff]
  %v1208 = vld [vmem:[%s6 + $0x10] sm:$0xff]
  %v1209 = vld [vmem:[%s6 + $0x18] sm:$0xff]
  %v1210 = vld [vmem:[%s6 + $0x20] sm:$0xff]
  %v1211 = vld [vmem:[%s6 + $0x28] sm:$0xff]
  %v1212 = vld [vmem:[%s6 + $0x30] sm:$0xff]
  %v1213 = vld [vmem:[%s6 + $0x38] sm:$0xff]
  %v1214 = vld [vmem:[#allocation2] sm:$0xff]
  %v1215 = vld [vmem:[#allocation2 + $0x8] sm:$0xff]
  %v1216 = vld [vmem:[#allocation2 + $0x10] sm:$0xff]
  %v1217 = vld [vmem:[#allocation2 + $0x18] sm:$0xff]
  %v1218 = vld [vmem:[#allocation2 + $0x20] sm:$0xff]
  %v1219 = vld [vmem:[#allocation2 + $0x28] sm:$0xff]
  %v1220 = vld [vmem:[#allocation2 + $0x30] sm:$0xff]
  %v1221 = vld [vmem:[#allocation2 + $0x38] sm:$0xff]
  %1224 = vrot.lane.b32.xlu0 %v1214, 64
  %v1225 = vpop.permute.xlu0 %1224
  %1226 = vrot.lane.b32.xlu0 %v1215, 64
  %v1227 = vpop.permute.xlu0 %1226
  %vm1228 = vcmask 523264
  %v1229 = vsel %vm1228, %v1225, %v1227
  %1233 = vrot.lane.b32.xlu0 %v1216, 64
  %v1234 = vpop.permute.xlu0 %1233
  %1235 = vrot.lane.b32.xlu0 %v1217, 64
  %v1236 = vpop.permute.xlu0 %1235
  %v1237 = vsel %vm1228, %v1234, %v1236
  %1241 = vrot.lane.b32.xlu0 %v1218, 64
  %v1242 = vpop.permute.xlu0 %1241
  %1243 = vrot.lane.b32.xlu0 %v1219, 64
  %v1244 = vpop.permute.xlu0 %1243
  %v1245 = vsel %vm1228, %v1242, %v1244
  %1249 = vrot.lane.b32.xlu0 %v1220, 64
  %v1250 = vpop.permute.xlu0 %1249
  %1251 = vrot.lane.b32.xlu0 %v1221, 64
  %v1252 = vpop.permute.xlu0 %1251
  %v1253 = vsel %vm1228, %v1250, %v1252
  %1255 = vmatprep.subr.mxu0 0.0
  %1256 = vmatpush1.msra.mxu0 %v994
  %1257 = vmatprep.subr.mxu0 0.0
  %1258 = vmatpush1.msra.mxu0 %v995
  %1259 = vmatprep.subr.mxu0 0.0
  %1260 = vmatpush1.msra.mxu0 %v996
  %1261 = vmatprep.subr.mxu0 0.0
  %1262 = vmatpush1.msra.mxu0 %v997
  %1263 = vmatprep.subr.mxu0 0.0
  %1264 = vmatpush1.msra.mxu0 %v998
  %1265 = vmatprep.subr.mxu0 0.0
  %1266 = vmatpush1.msra.mxu0 %v999
  %1267 = vmatprep.subr.mxu0 0.0
  %1268 = vmatpush1.msra.mxu0 %v1000
  %1269 = vmatprep.subr.mxu0 0.0
  %1270 = vmatpush1.msra.mxu0 %v1001
  %1271 = vmatprep.subr.mxu0 0.0
  %1272 = vmatpush1.msra.mxu0 %v1002
  %1273 = vmatprep.subr.mxu0 0.0
  %1274 = vmatpush1.msra.mxu0 %v1003
  %1275 = vmatprep.subr.mxu0 0.0
  %1276 = vmatpush1.msra.mxu0 %v1004
  %1277 = vmatprep.subr.mxu0 0.0
  %1278 = vmatpush1.msra.mxu0 %v1005
  %1279 = vmatprep.subr.mxu0 0.0
  %1280 = vmatpush1.msra.mxu0 %v1006
  %1281 = vmatprep.subr.mxu0 0.0
  %1282 = vmatpush1.msra.mxu0 %v1007
  %1283 = vmatprep.subr.mxu0 0.0
  %1284 = vmatpush1.msra.mxu0 %v1008
  %1285 = vmatprep.subr.mxu0 0.0
  %1286 = vmatpush1.msra.mxu0 %v1009
  %1287 = vmatprep.subr.mxu0 0.0
  %1288 = vmatpush1.msra.mxu0 %v1010
  %1289 = vmatprep.subr.mxu0 0.0
  %1290 = vmatpush1.msra.mxu0 %v1011
  %1291 = vmatprep.subr.mxu0 0.0
  %1292 = vmatpush1.msra.mxu0 %v1012
  %1293 = vmatprep.subr.mxu0 0.0
  %1294 = vmatpush1.msra.mxu0 %v1013
  %1295 = vmatprep.subr.mxu0 0.0
  %1296 = vmatpush1.msra.mxu0 %v1014
  %1297 = vmatprep.subr.mxu0 0.0
  %1298 = vmatpush1.msra.mxu0 %v1015
  %1299 = vmatprep.subr.mxu0 0.0
  %1300 = vmatpush1.msra.mxu0 %v1016
  %1301 = vmatprep.subr.mxu0 0.0
  %1302 = vmatpush1.msra.mxu0 %v1017
  %1303 = vmatprep.subr.mxu0 0.0
  %1304 = vmatpush1.msra.mxu0 %v1018
  %1305 = vmatprep.subr.mxu0 0.0
  %1306 = vmatpush1.msra.mxu0 %v1019
  %1307 = vmatprep.subr.mxu0 0.0
  %1308 = vmatpush1.msra.mxu0 %v1020
  %1309 = vmatprep.subr.mxu0 0.0
  %1310 = vmatpush1.msra.mxu0 %v1021
  %1311 = vmatprep.subr.mxu0 0.0
  %1312 = vmatpush1.msra.mxu0 %v1022
  %1313 = vmatprep.subr.mxu0 0.0
  %1314 = vmatpush1.msra.mxu0 %v1023
  %1315 = vmatprep.subr.mxu0 0.0
  %1316 = vmatpush1.msra.mxu0 %v1024
  %1317 = vmatprep.subr.mxu0 0.0
  %1318 = vmatpush1.msra.mxu0 %v1025
  %1319 = vmatprep.mubr.f32.mxu0 %v1237
  %1320 = vmatmul.mubr.f32.gmra.mrb[0].mxu0 %v1229
  %v1321 = vpop.f32.mrb[0].mxu0
  %v1322 = vadd.f32 %v1063, %v1321
  %v1323 = vpop.f32.mrb[0].mxu0
  %1324 = vdwg.mxu0
  %1325 = vmatprep.subr.mxu0 0.0
  %1326 = vmatpush1.msra.mxu0 %v1026
  %1327 = vmatprep.subr.mxu0 0.0
  %1328 = vmatpush1.msra.mxu0 %v1027
  %1329 = vmatprep.subr.mxu0 0.0
  %1330 = vmatpush1.msra.mxu0 %v1028
  %1331 = vmatprep.subr.mxu0 0.0
  %1332 = vmatpush1.msra.mxu0 %v1029
  %1333 = vmatprep.subr.mxu0 0.0
  %1334 = vmatpush1.msra.mxu0 %v1030
  %1335 = vmatprep.subr.mxu0 0.0
  %1336 = vmatpush1.msra.mxu0 %v1031
  %1337 = vmatprep.subr.mxu0 0.0
  %1338 = vmatpush1.msra.mxu0 %v1032
  %1339 = vmatprep.subr.mxu0 0.0
  %1340 = vmatpush1.msra.mxu0 %v1033
  %1341 = vmatprep.subr.mxu0 0.0
  %1342 = vmatpush1.msra.mxu0 %v1034
  %1343 = vmatprep.subr.mxu0 0.0
  %1344 = vmatpush1.msra.mxu0 %v1035
  %1345 = vmatprep.subr.mxu0 0.0
  %1346 = vmatpush1.msra.mxu0 %v1036
  %1347 = vmatprep.subr.mxu0 0.0
  %1348 = vmatpush1.msra.mxu0 %v1037
  %1349 = vmatprep.subr.mxu0 0.0
  %1350 = vmatpush1.msra.mxu0 %v1038
  %1351 = vmatprep.subr.mxu0 0.0
  %1352 = vmatpush1.msra.mxu0 %v1039
  %1353 = vmatprep.subr.mxu0 0.0
  %1354 = vmatpush1.msra.mxu0 %v1040
  %1355 = vmatprep.subr.mxu0 0.0
  %1356 = vmatpush1.msra.mxu0 %v1041
  %1357 = vmatprep.subr.mxu0 0.0
  %1358 = vmatpush1.msra.mxu0 %v1042
  %1359 = vmatprep.subr.mxu0 0.0
  %1360 = vmatpush1.msra.mxu0 %v1043
  %1361 = vmatprep.subr.mxu0 0.0
  %1362 = vmatpush1.msra.mxu0 %v1044
  %1363 = vmatprep.subr.mxu0 0.0
  %1364 = vmatpush1.msra.mxu0 %v1045
  %1365 = vmatprep.subr.mxu0 0.0
  %1366 = vmatpush1.msra.mxu0 %v1046
  %1367 = vmatprep.subr.mxu0 0.0
  %1368 = vmatpush1.msra.mxu0 %v1047
  %1369 = vmatprep.subr.mxu0 0.0
  %1370 = vmatpush1.msra.mxu0 %v1048
  %1371 = vmatprep.subr.mxu0 0.0
  %1372 = vmatpush1.msra.mxu0 %v1049
  %1373 = vmatprep.subr.mxu0 0.0
  %1374 = vmatpush1.msra.mxu0 %v1050
  %1375 = vmatprep.subr.mxu0 0.0
  %1376 = vmatpush1.msra.mxu0 %v1051
  %1377 = vmatprep.subr.mxu0 0.0
  %1378 = vmatpush1.msra.mxu0 %v1052
  %1379 = vmatprep.subr.mxu0 0.0
  %1380 = vmatpush1.msra.mxu0 %v1053
  %1381 = vmatprep.subr.mxu0 0.0
  %1382 = vmatpush1.msra.mxu0 %v1054
  %1383 = vmatprep.subr.mxu0 0.0
  %1384 = vmatpush1.msra.mxu0 %v1055
  %1385 = vmatprep.subr.mxu0 0.0
  %1386 = vmatpush1.msra.mxu0 %v1056
  %1387 = vmatprep.subr.mxu0 0.0
  %1388 = vmatpush1.msra.mxu0 %v1057
  %1389 = vmatprep.mubr.f32.mxu0 %v1253
  %1390 = vmatmul.mubr.f32.gmra.mrb[0].mxu0 %v1245
  %v1391 = vpop.f32.mrb[0].mxu0
  %v1392 = vadd.f32 %v1322, %v1391
  %v1393 = vpop.f32.mrb[0].mxu0
  %1394 = vdwg.mxu0
  %v1395 = vmax.f32 %v1392, 0.0
  %v1396 = vld [vmem:[%s6 + $0x40] sm:$0xff]
  %v1397 = vld [vmem:[%s6 + $0x48] sm:$0xff]
  %v1398 = vld [vmem:[%s6 + $0x50] sm:$0xff]
  %v1399 = vld [vmem:[%s6 + $0x58] sm:$0xff]
  %v1400 = vld [vmem:[%s6 + $0x60] sm:$0xff]
  %v1401 = vld [vmem:[%s6 + $0x68] sm:$0xff]
  %v1402 = vld [vmem:[%s6 + $0x70] sm:$0xff]
  %v1403 = vld [vmem:[%s6 + $0x78] sm:$0xff]
  %v1405 = vsel %vm1228, %v1395, 0
  %1407 = vmatprep.subr.mxu0 0.0
  %1408 = vmatpush1.msra.mxu0 %v1396
  %1409 = vmatprep.subr.mxu0 0.0
  %1410 = vmatpush1.msra.mxu0 %v1397
  %1411 = vmatprep.subr.mxu0 0.0
  %1412 = vmatpush1.msra.mxu0 %v1398
  %1413 = vmatprep.subr.mxu0 0.0
  %1414 = vmatpush1.msra.mxu0 %v1399
  %1415 = vmatprep.subr.mxu0 0.0
  %1416 = vmatpush1.msra.mxu0 %v1400
  %1417 = vmatprep.subr.mxu0 0.0
  %1418 = vmatpush1.msra.mxu0 %v1401
  %1419 = vmatprep.subr.mxu0 0.0
  %1420 = vmatpush1.msra.mxu0 %v1402
  %1421 = vmatprep.subr.mxu0 0.0
  %1422 = vmatpush1.msra.mxu0 %v1403
  %1423 = vmatprep.subr.mxu0 0.0
  %1424 = vmatpush1.msra.mxu0 0.0
  %1425 = vmatprep.subr.mxu0 0.0
  %1426 = vmatpush1.msra.mxu0 0.0
  %1427 = vmatprep.subr.mxu0 0.0
  %1428 = vmatpush1.msra.mxu0 0.0
  %1429 = vmatprep.subr.mxu0 0.0
  %1430 = vmatpush1.msra.mxu0 0.0
  %1431 = vmatprep.subr.mxu0 0.0
  %1432 = vmatpush1.msra.mxu0 0.0
  %1433 = vmatprep.subr.mxu0 0.0
  %1434 = vmatpush1.msra.mxu0 0.0
  %1435 = vmatprep.subr.mxu0 0.0
  %1436 = vmatpush1.msra.mxu0 0.0
  %1437 = vmatprep.subr.mxu0 0.0
  %1438 = vmatpush1.msra.mxu0 0.0
  %1439 = vmatprep.subr.mxu0 0.0
  %1440 = vmatpush1.msra.mxu0 0.0
  %1441 = vmatprep.subr.mxu0 0.0
  %1442 = vmatpush1.msra.mxu0 0.0
  %1443 = vmatprep.subr.mxu0 0.0
  %1444 = vmatpush1.msra.mxu0 0.0
  %1445 = vmatprep.subr.mxu0 0.0
  %1446 = vmatpush1.msra.mxu0 0.0
  %1447 = vmatprep.subr.mxu0 0.0
  %1448 = vmatpush1.msra.mxu0 0.0
  %1449 = vmatprep.subr.mxu0 0.0
  %1450 = vmatpush1.msra.mxu0 0.0
  %1451 = vmatprep.subr.mxu0 0.0
  %1452 = vmatpush1.msra.mxu0 0.0
  %1453 = vmatprep.subr.mxu0 0.0
  %1454 = vmatpush1.msra.mxu0 0.0
  %1455 = vmatprep.subr.mxu0 0.0
  %1456 = vmatpush1.msra.mxu0 0.0
  %1457 = vmatprep.subr.mxu0 0.0
  %1458 = vmatpush1.msra.mxu0 0.0
  %1459 = vmatprep.subr.mxu0 0.0
  %1460 = vmatpush1.msra.mxu0 0.0
  %1461 = vmatprep.subr.mxu0 0.0
  %1462 = vmatpush1.msra.mxu0 0.0
  %1463 = vmatprep.subr.mxu0 0.0
  %1464 = vmatpush1.msra.mxu0 0.0
  %1465 = vmatprep.subr.mxu0 0.0
  %1466 = vmatpush1.msra.mxu0 0.0
  %1467 = vmatprep.subr.mxu0 0.0
  %1468 = vmatpush1.msra.mxu0 0.0
  %1469 = vmatprep.subr.mxu0 0.0
  %1470 = vmatpush1.msra.mxu0 0.0
  %1471 = vmatprep.mubr.f32.mxu0 0.0
  %1472 = vmatmul.mubr.f32.gmra.mrb[0].mxu0 %v1405
  %v1473 = vpop.f32.mrb[0].mxu0
  %v1474 = vadd.f32 0.0, %v1473
  %v1475 = vpop.f32.mrb[0].mxu0
  %1476 = vdwg.mxu0
  %v1478 = vsel %vm1228, %v1205, 0
  %1480 = vmatprep.subr.mxu0 0.0
  %1481 = vmatpush1.msra.mxu0 %v1206
  %1482 = vmatprep.subr.mxu0 0.0
  %1483 = vmatpush1.msra.mxu0 %v1207
  %1484 = vmatprep.subr.mxu0 0.0
  %1485 = vmatpush1.msra.mxu0 %v1208
  %1486 = vmatprep.subr.mxu0 0.0
  %1487 = vmatpush1.msra.mxu0 %v1209
  %1488 = vmatprep.subr.mxu0 0.0
  %1489 = vmatpush1.msra.mxu0 %v1210
  %1490 = vmatprep.subr.mxu0 0.0
  %1491 = vmatpush1.msra.mxu0 %v1211
  %1492 = vmatprep.subr.mxu0 0.0
  %1493 = vmatpush1.msra.mxu0 %v1212
  %1494 = vmatprep.subr.mxu0 0.0
  %1495 = vmatpush1.msra.mxu0 %v1213
  %1496 = vmatprep.subr.mxu0 0.0
  %1497 = vmatpush1.msra.mxu0 0.0
  %1498 = vmatprep.subr.mxu0 0.0
  %1499 = vmatpush1.msra.mxu0 0.0
  %1500 = vmatprep.subr.mxu0 0.0
  %1501 = vmatpush1.msra.mxu0 0.0
  %1502 = vmatprep.subr.mxu0 0.0
  %1503 = vmatpush1.msra.mxu0 0.0
  %1504 = vmatprep.subr.mxu0 0.0
  %1505 = vmatpush1.msra.mxu0 0.0
  %1506 = vmatprep.subr.mxu0 0.0
  %1507 = vmatpush1.msra.mxu0 0.0
  %1508 = vmatprep.subr.mxu0 0.0
  %1509 = vmatpush1.msra.mxu0 0.0
  %1510 = vmatprep.subr.mxu0 0.0
  %1511 = vmatpush1.msra.mxu0 0.0
  %1512 = vmatprep.subr.mxu0 0.0
  %1513 = vmatpush1.msra.mxu0 0.0
  %1514 = vmatprep.subr.mxu0 0.0
  %1515 = vmatpush1.msra.mxu0 0.0
  %1516 = vmatprep.subr.mxu0 0.0
  %1517 = vmatpush1.msra.mxu0 0.0
  %1518 = vmatprep.subr.mxu0 0.0
  %1519 = vmatpush1.msra.mxu0 0.0
  %1520 = vmatprep.subr.mxu0 0.0
  %1521 = vmatpush1.msra.mxu0 0.0
  %1522 = vmatprep.subr.mxu0 0.0
  %1523 = vmatpush1.msra.mxu0 0.0
  %1524 = vmatprep.subr.mxu0 0.0
  %1525 = vmatpush1.msra.mxu0 0.0
  %1526 = vmatprep.subr.mxu0 0.0
  %1527 = vmatpush1.msra.mxu0 0.0
  %1528 = vmatprep.subr.mxu0 0.0
  %1529 = vmatpush1.msra.mxu0 0.0
  %1530 = vmatprep.subr.mxu0 0.0
  %1531 = vmatpush1.msra.mxu0 0.0
  %1532 = vmatprep.subr.mxu0 0.0
  %1533 = vmatpush1.msra.mxu0 0.0
  %1534 = vmatprep.subr.mxu0 0.0
  %1535 = vmatpush1.msra.mxu0 0.0
  %1536 = vmatprep.subr.mxu0 0.0
  %1537 = vmatpush1.msra.mxu0 0.0
  %1538 = vmatprep.subr.mxu0 0.0
  %1539 = vmatpush1.msra.mxu0 0.0
  %1540 = vmatprep.subr.mxu0 0.0
  %1541 = vmatpush1.msra.mxu0 0.0
  %1542 = vmatprep.subr.mxu0 0.0
  %1543 = vmatpush1.msra.mxu0 0.0
  %1544 = vmatprep.mubr.f32.mxu0 0.0
  %1545 = vmatmul.mubr.f32.gmra.mrb[0].mxu0 %v1478
  %v1546 = vpop.f32.mrb[0].mxu0
  %v1547 = vadd.f32 %v1474, %v1546
  %v1548 = vpop.f32.mrb[0].mxu0
  %1549 = vdwg.mxu0
  %1550 = vmatprep.subr.mxu0 0.0
  %1551 = vmatpush1.msra.mxu0 %v994
  %1552 = vmatprep.subr.mxu0 0.0
  %1553 = vmatpush1.msra.mxu0 %v995
  %1554 = vmatprep.subr.mxu0 0.0
  %1555 = vmatpush1.msra.mxu0 %v996
  %1556 = vmatprep.subr.mxu0 0.0
  %1557 = vmatpush1.msra.mxu0 %v997
  %1558 = vmatprep.subr.mxu0 0.0
  %1559 = vmatpush1.msra.mxu0 %v998
  %1560 = vmatprep.subr.mxu0 0.0
  %1561 = vmatpush1.msra.mxu0 %v999
  %1562 = vmatprep.subr.mxu0 0.0
  %1563 = vmatpush1.msra.mxu0 %v1000
  %1564 = vmatprep.subr.mxu0 0.0
  %1565 = vmatpush1.msra.mxu0 %v1001
  %1566 = vmatprep.subr.mxu0 0.0
  %1567 = vmatpush1.msra.mxu0 %v1002
  %1568 = vmatprep.subr.mxu0 0.0
  %1569 = vmatpush1.msra.mxu0 %v1003
  %1570 = vmatprep.subr.mxu0 0.0
  %1571 = vmatpush1.msra.mxu0 %v1004
  %1572 = vmatprep.subr.mxu0 0.0
  %1573 = vmatpush1.msra.mxu0 %v1005
  %1574 = vmatprep.subr.mxu0 0.0
  %1575 = vmatpush1.msra.mxu0 %v1006
  %1576 = vmatprep.subr.mxu0 0.0
  %1577 = vmatpush1.msra.mxu0 %v1007
  %1578 = vmatprep.subr.mxu0 0.0
  %1579 = vmatpush1.msra.mxu0 %v1008
  %1580 = vmatprep.subr.mxu0 0.0
  %1581 = vmatpush1.msra.mxu0 %v1009
  %1582 = vmatprep.subr.mxu0 0.0
  %1583 = vmatpush1.msra.mxu0 %v1010
  %1584 = vmatprep.subr.mxu0 0.0
  %1585 = vmatpush1.msra.mxu0 %v1011
  %1586 = vmatprep.subr.mxu0 0.0
  %1587 = vmatpush1.msra.mxu0 %v1012
  %1588 = vmatprep.subr.mxu0 0.0
  %1589 = vmatpush1.msra.mxu0 %v1013
  %1590 = vmatprep.subr.mxu0 0.0
  %1591 = vmatpush1.msra.mxu0 %v1014
  %1592 = vmatprep.subr.mxu0 0.0
  %1593 = vmatpush1.msra.mxu0 %v1015
  %1594 = vmatprep.subr.mxu0 0.0
  %1595 = vmatpush1.msra.mxu0 %v1016
  %1596 = vmatprep.subr.mxu0 0.0
  %1597 = vmatpush1.msra.mxu0 %v1017
  %1598 = vmatprep.subr.mxu0 0.0
  %1599 = vmatpush1.msra.mxu0 %v1018
  %1600 = vmatprep.subr.mxu0 0.0
  %1601 = vmatpush1.msra.mxu0 %v1019
  %1602 = vmatprep.subr.mxu0 0.0
  %1603 = vmatpush1.msra.mxu0 %v1020
  %1604 = vmatprep.subr.mxu0 0.0
  %1605 = vmatpush1.msra.mxu0 %v1021
  %1606 = vmatprep.subr.mxu0 0.0
  %1607 = vmatpush1.msra.mxu0 %v1022
  %1608 = vmatprep.subr.mxu0 0.0
  %1609 = vmatpush1.msra.mxu0 %v1023
  %1610 = vmatprep.subr.mxu0 0.0
  %1611 = vmatpush1.msra.mxu0 %v1024
  %1612 = vmatprep.subr.mxu0 0.0
  %1613 = vmatpush1.msra.mxu0 %v1025
  %1614 = vmatprep.mubr.f32.mxu0 %v1217
  %1615 = vmatmul.mubr.f32.gmra.mrb[0].mxu0 %v1215
  %v1616 = vpop.f32.mrb[0].mxu0
  %v1617 = vadd.f32 %v1063, %v1616
  %v1618 = vpop.f32.mrb[0].mxu0
  %1619 = vdwg.mxu0
  %1620 = vmatprep.subr.mxu0 0.0
  %1621 = vmatpush1.msra.mxu0 %v1026
  %1622 = vmatprep.subr.mxu0 0.0
  %1623 = vmatpush1.msra.mxu0 %v1027
  %1624 = vmatprep.subr.mxu0 0.0
  %1625 = vmatpush1.msra.mxu0 %v1028
  %1626 = vmatprep.subr.mxu0 0.0
  %1627 = vmatpush1.msra.mxu0 %v1029
  %1628 = vmatprep.subr.mxu0 0.0
  %1629 = vmatpush1.msra.mxu0 %v1030
  %1630 = vmatprep.subr.mxu0 0.0
  %1631 = vmatpush1.msra.mxu0 %v1031
  %1632 = vmatprep.subr.mxu0 0.0
  %1633 = vmatpush1.msra.mxu0 %v1032
  %1634 = vmatprep.subr.mxu0 0.0
  %1635 = vmatpush1.msra.mxu0 %v1033
  %1636 = vmatprep.subr.mxu0 0.0
  %1637 = vmatpush1.msra.mxu0 %v1034
  %1638 = vmatprep.subr.mxu0 0.0
  %1639 = vmatpush1.msra.mxu0 %v1035
  %1640 = vmatprep.subr.mxu0 0.0
  %1641 = vmatpush1.msra.mxu0 %v1036
  %1642 = vmatprep.subr.mxu0 0.0
  %1643 = vmatpush1.msra.mxu0 %v1037
  %1644 = vmatprep.subr.mxu0 0.0
  %1645 = vmatpush1.msra.mxu0 %v1038
  %1646 = vmatprep.subr.mxu0 0.0
  %1647 = vmatpush1.msra.mxu0 %v1039
  %1648 = vmatprep.subr.mxu0 0.0
  %1649 = vmatpush1.msra.mxu0 %v1040
  %1650 = vmatprep.subr.mxu0 0.0
  %1651 = vmatpush1.msra.mxu0 %v1041
  %1652 = vmatprep.subr.mxu0 0.0
  %1653 = vmatpush1.msra.mxu0 %v1042
  %1654 = vmatprep.subr.mxu0 0.0
  %1655 = vmatpush1.msra.mxu0 %v1043
  %1656 = vmatprep.subr.mxu0 0.0
  %1657 = vmatpush1.msra.mxu0 %v1044
  %1658 = vmatprep.subr.mxu0 0.0
  %1659 = vmatpush1.msra.mxu0 %v1045
  %1660 = vmatprep.subr.mxu0 0.0
  %1661 = vmatpush1.msra.mxu0 %v1046
  %1662 = vmatprep.subr.mxu0 0.0
  %1663 = vmatpush1.msra.mxu0 %v1047
  %1664 = vmatprep.subr.mxu0 0.0
  %1665 = vmatpush1.msra.mxu0 %v1048
  %1666 = vmatprep.subr.mxu0 0.0
  %1667 = vmatpush1.msra.mxu0 %v1049
  %1668 = vmatprep.subr.mxu0 0.0
  %1669 = vmatpush1.msra.mxu0 %v1050
  %1670 = vmatprep.subr.mxu0 0.0
  %1671 = vmatpush1.msra.mxu0 %v1051
  %1672 = vmatprep.subr.mxu0 0.0
  %1673 = vmatpush1.msra.mxu0 %v1052
  %1674 = vmatprep.subr.mxu0 0.0
  %1675 = vmatpush1.msra.mxu0 %v1053
  %1676 = vmatprep.subr.mxu0 0.0
  %1677 = vmatpush1.msra.mxu0 %v1054
  %1678 = vmatprep.subr.mxu0 0.0
  %1679 = vmatpush1.msra.mxu0 %v1055
  %1680 = vmatprep.subr.mxu0 0.0
  %1681 = vmatpush1.msra.mxu0 %v1056
  %1682 = vmatprep.subr.mxu0 0.0
  %1683 = vmatpush1.msra.mxu0 %v1057
  %1684 = vmatprep.mubr.f32.mxu0 %v1221
  %1685 = vmatmul.mubr.f32.gmra.mrb[0].mxu0 %v1219
  %v1686 = vpop.f32.mrb[0].mxu0
  %v1687 = vadd.f32 %v1617, %v1686
  %v1688 = vpop.f32.mrb[0].mxu0
  %1689 = vdwg.mxu0
  %v1690 = vmax.f32 %v1687, 0.0
  %v1691 = vld [vmem:[%s6 + $0x80] sm:$0xff]
  %v1692 = vld [vmem:[%s6 + $0x88] sm:$0xff]
  %v1693 = vld [vmem:[%s6 + $0x90] sm:$0xff]
  %v1694 = vld [vmem:[%s6 + $0x98] sm:$0xff]
  %v1695 = vld [vmem:[%s6 + $0xa0] sm:$0xff]
  %v1696 = vld [vmem:[%s6 + $0xa8] sm:$0xff]
  %v1697 = vld [vmem:[%s6 + $0xb0] sm:$0xff]
  %v1698 = vld [vmem:[%s6 + $0xb8] sm:$0xff]
  %v1700 = vsel %vm1228, %v1690, 0
  %1702 = vmatprep.subr.mxu0 0.0
  %1703 = vmatpush1.msra.mxu0 %v1691
  %1704 = vmatprep.subr.mxu0 0.0
  %1705 = vmatpush1.msra.mxu0 %v1692
  %1706 = vmatprep.subr.mxu0 0.0
  %1707 = vmatpush1.msra.mxu0 %v1693
  %1708 = vmatprep.subr.mxu0 0.0
  %1709 = vmatpush1.msra.mxu0 %v1694
  %1710 = vmatprep.subr.mxu0 0.0
  %1711 = vmatpush1.msra.mxu0 %v1695
  %1712 = vmatprep.subr.mxu0 0.0
  %1713 = vmatpush1.msra.mxu0 %v1696
  %1714 = vmatprep.subr.mxu0 0.0
  %1715 = vmatpush1.msra.mxu0 %v1697
  %1716 = vmatprep.subr.mxu0 0.0
  %1717 = vmatpush1.msra.mxu0 %v1698
  %1718 = vmatprep.subr.mxu0 0.0
  %1719 = vmatpush1.msra.mxu0 0.0
  %1720 = vmatprep.subr.mxu0 0.0
  %1721 = vmatpush1.msra.mxu0 0.0
  %1722 = vmatprep.subr.mxu0 0.0
  %1723 = vmatpush1.msra.mxu0 0.0
  %1724 = vmatprep.subr.mxu0 0.0
  %1725 = vmatpush1.msra.mxu0 0.0
  %1726 = vmatprep.subr.mxu0 0.0
  %1727 = vmatpush1.msra.mxu0 0.0
  %1728 = vmatprep.subr.mxu0 0.0
  %1729 = vmatpush1.msra.mxu0 0.0
  %1730 = vmatprep.subr.mxu0 0.0
  %1731 = vmatpush1.msra.mxu0 0.0
  %1732 = vmatprep.subr.mxu0 0.0
  %1733 = vmatpush1.msra.mxu0 0.0
  %1734 = vmatprep.subr.mxu0 0.0
  %1735 = vmatpush1.msra.mxu0 0.0
  %1736 = vmatprep.subr.mxu0 0.0
  %1737 = vmatpush1.msra.mxu0 0.0
  %1738 = vmatprep.subr.mxu0 0.0
  %1739 = vmatpush1.msra.mxu0 0.0
  %1740 = vmatprep.subr.mxu0 0.0
  %1741 = vmatpush1.msra.mxu0 0.0
  %1742 = vmatprep.subr.mxu0 0.0
  %1743 = vmatpush1.msra.mxu0 0.0
  %1744 = vmatprep.subr.mxu0 0.0
  %1745 = vmatpush1.msra.mxu0 0.0
  %1746 = vmatprep.subr.mxu0 0.0
  %1747 = vmatpush1.msra.mxu0 0.0
  %1748 = vmatprep.subr.mxu0 0.0
  %1749 = vmatpush1.msra.mxu0 0.0
  %1750 = vmatprep.subr.mxu0 0.0
  %1751 = vmatpush1.msra.mxu0 0.0
  %1752 = vmatprep.subr.mxu0 0.0
  %1753 = vmatpush1.msra.mxu0 0.0
  %1754 = vmatprep.subr.mxu0 0.0
  %1755 = vmatpush1.msra.mxu0 0.0
  %1756 = vmatprep.subr.mxu0 0.0
  %1757 = vmatpush1.msra.mxu0 0.0
  %1758 = vmatprep.subr.mxu0 0.0
  %1759 = vmatpush1.msra.mxu0 0.0
  %1760 = vmatprep.subr.mxu0 0.0
  %1761 = vmatpush1.msra.mxu0 0.0
  %1762 = vmatprep.subr.mxu0 0.0
  %1763 = vmatpush1.msra.mxu0 0.0
  %1764 = vmatprep.subr.mxu0 0.0
  %1765 = vmatpush1.msra.mxu0 0.0
  %1766 = vmatprep.mubr.f32.mxu0 0.0
  %1767 = vmatmul.mubr.f32.gmra.mrb[0].mxu0 %v1700
  %v1768 = vpop.f32.mrb[0].mxu0
  %v1769 = vadd.f32 0.0, %v1768
  %v1770 = vpop.f32.mrb[0].mxu0
  %1771 = vdwg.mxu0
  %v1772 = vadd.f32 %v1547, %v1769
  %v1773 = vld [vmem:[#allocation2 + $0x40] sm:$0xff]
  %v1774 = vld [vmem:[#allocation2 + $0x50] sm:$0xff]
  %1775 = vmatprep.subr.mxu0 0.0
  %1776 = vmatpush1.msra.mxu0 %v994
  %1777 = vmatprep.subr.mxu0 0.0
  %1778 = vmatpush1.msra.mxu0 %v995
  %1779 = vmatprep.subr.mxu0 0.0
  %1780 = vmatpush1.msra.mxu0 %v996
  %1781 = vmatprep.subr.mxu0 0.0
  %1782 = vmatpush1.msra.mxu0 %v997
  %1783 = vmatprep.subr.mxu0 0.0
  %1784 = vmatpush1.msra.mxu0 %v998
  %1785 = vmatprep.subr.mxu0 0.0
  %1786 = vmatpush1.msra.mxu0 %v999
  %1787 = vmatprep.subr.mxu0 0.0
  %1788 = vmatpush1.msra.mxu0 %v1000
  %1789 = vmatprep.subr.mxu0 0.0
  %1790 = vmatpush1.msra.mxu0 %v1001
  %1791 = vmatprep.subr.mxu0 0.0
  %1792 = vmatpush1.msra.mxu0 %v1002
  %1793 = vmatprep.subr.mxu0 0.0
  %1794 = vmatpush1.msra.mxu0 %v1003
  %1795 = vmatprep.subr.mxu0 0.0
  %1796 = vmatpush1.msra.mxu0 %v1004
  %1797 = vmatprep.subr.mxu0 0.0
  %1798 = vmatpush1.msra.mxu0 %v1005
  %1799 = vmatprep.subr.mxu0 0.0
  %1800 = vmatpush1.msra.mxu0 %v1006
  %1801 = vmatprep.subr.mxu0 0.0
  %1802 = vmatpush1.msra.mxu0 %v1007
  %1803 = vmatprep.subr.mxu0 0.0
  %1804 = vmatpush1.msra.mxu0 %v1008
  %1805 = vmatprep.subr.mxu0 0.0
  %1806 = vmatpush1.msra.mxu0 %v1009
  %1807 = vmatprep.subr.mxu0 0.0
  %1808 = vmatpush1.msra.mxu0 %v1010
  %1809 = vmatprep.subr.mxu0 0.0
  %1810 = vmatpush1.msra.mxu0 %v1011
  %1811 = vmatprep.subr.mxu0 0.0
  %1812 = vmatpush1.msra.mxu0 %v1012
  %1813 = vmatprep.subr.mxu0 0.0
  %1814 = vmatpush1.msra.mxu0 %v1013
  %1815 = vmatprep.subr.mxu0 0.0
  %1816 = vmatpush1.msra.mxu0 %v1014
  %1817 = vmatprep.subr.mxu0 0.0
  %1818 = vmatpush1.msra.mxu0 %v1015
  %1819 = vmatprep.subr.mxu0 0.0
  %1820 = vmatpush1.msra.mxu0 %v1016
  %1821 = vmatprep.subr.mxu0 0.0
  %1822 = vmatpush1.msra.mxu0 %v1017
  %1823 = vmatprep.subr.mxu0 0.0
  %1824 = vmatpush1.msra.mxu0 %v1018
  %1825 = vmatprep.subr.mxu0 0.0
  %1826 = vmatpush1.msra.mxu0 %v1019
  %1827 = vmatprep.subr.mxu0 0.0
  %1828 = vmatpush1.msra.mxu0 %v1020
  %1829 = vmatprep.subr.mxu0 0.0
  %1830 = vmatpush1.msra.mxu0 %v1021
  %1831 = vmatprep.subr.mxu0 0.0
  %1832 = vmatpush1.msra.mxu0 %v1022
  %1833 = vmatprep.subr.mxu0 0.0
  %1834 = vmatpush1.msra.mxu0 %v1023
  %1835 = vmatprep.subr.mxu0 0.0
  %1836 = vmatpush1.msra.mxu0 %v1024
  %1837 = vmatprep.subr.mxu0 0.0
  %1838 = vmatpush1.msra.mxu0 %v1025
  %1839 = vmatprep.mubr.f32.mxu0 %v993
  %1840 = vmatmul.mubr.f32.gmra.mrb[0].mxu0 %v992
  %v1841 = vpop.f32.mrb[0].mxu0
  %v1842 = vadd.f32 %v1063, %v1841
  %v1843 = vpop.f32.mrb[0].mxu0
  %1844 = vdwg.mxu0
  %1845 = vmatprep.subr.mxu0 0.0
  %1846 = vmatpush1.msra.mxu0 %v1026
  %1847 = vmatprep.subr.mxu0 0.0
  %1848 = vmatpush1.msra.mxu0 %v1027
  %1849 = vmatprep.subr.mxu0 0.0
  %1850 = vmatpush1.msra.mxu0 %v1028
  %1851 = vmatprep.subr.mxu0 0.0
  %1852 = vmatpush1.msra.mxu0 %v1029
  %1853 = vmatprep.subr.mxu0 0.0
  %1854 = vmatpush1.msra.mxu0 %v1030
  %1855 = vmatprep.subr.mxu0 0.0
  %1856 = vmatpush1.msra.mxu0 %v1031
  %1857 = vmatprep.subr.mxu0 0.0
  %1858 = vmatpush1.msra.mxu0 %v1032
  %1859 = vmatprep.subr.mxu0 0.0
  %1860 = vmatpush1.msra.mxu0 %v1033
  %1861 = vmatprep.subr.mxu0 0.0
  %1862 = vmatpush1.msra.mxu0 %v1034
  %1863 = vmatprep.subr.mxu0 0.0
  %1864 = vmatpush1.msra.mxu0 %v1035
  %1865 = vmatprep.subr.mxu0 0.0
  %1866 = vmatpush1.msra.mxu0 %v1036
  %1867 = vmatprep.subr.mxu0 0.0
  %1868 = vmatpush1.msra.mxu0 %v1037
  %1869 = vmatprep.subr.mxu0 0.0
  %1870 = vmatpush1.msra.mxu0 %v1038
  %1871 = vmatprep.subr.mxu0 0.0
  %1872 = vmatpush1.msra.mxu0 %v1039
  %1873 = vmatprep.subr.mxu0 0.0
  %1874 = vmatpush1.msra.mxu0 %v1040
  %1875 = vmatprep.subr.mxu0 0.0
  %1876 = vmatpush1.msra.mxu0 %v1041
  %1877 = vmatprep.subr.mxu0 0.0
  %1878 = vmatpush1.msra.mxu0 %v1042
  %1879 = vmatprep.subr.mxu0 0.0
  %1880 = vmatpush1.msra.mxu0 %v1043
  %1881 = vmatprep.subr.mxu0 0.0
  %1882 = vmatpush1.msra.mxu0 %v1044
  %1883 = vmatprep.subr.mxu0 0.0
  %1884 = vmatpush1.msra.mxu0 %v1045
  %1885 = vmatprep.subr.mxu0 0.0
  %1886 = vmatpush1.msra.mxu0 %v1046
  %1887 = vmatprep.subr.mxu0 0.0
  %1888 = vmatpush1.msra.mxu0 %v1047
  %1889 = vmatprep.subr.mxu0 0.0
  %1890 = vmatpush1.msra.mxu0 %v1048
  %1891 = vmatprep.subr.mxu0 0.0
  %1892 = vmatpush1.msra.mxu0 %v1049
  %1893 = vmatprep.subr.mxu0 0.0
  %1894 = vmatpush1.msra.mxu0 %v1050
  %1895 = vmatprep.subr.mxu0 0.0
  %1896 = vmatpush1.msra.mxu0 %v1051
  %1897 = vmatprep.subr.mxu0 0.0
  %1898 = vmatpush1.msra.mxu0 %v1052
  %1899 = vmatprep.subr.mxu0 0.0
  %1900 = vmatpush1.msra.mxu0 %v1053
  %1901 = vmatprep.subr.mxu0 0.0
  %1902 = vmatpush1.msra.mxu0 %v1054
  %1903 = vmatprep.subr.mxu0 0.0
  %1904 = vmatpush1.msra.mxu0 %v1055
  %1905 = vmatprep.subr.mxu0 0.0
  %1906 = vmatpush1.msra.mxu0 %v1056
  %1907 = vmatprep.subr.mxu0 0.0
  %1908 = vmatpush1.msra.mxu0 %v1057
  %1909 = vmatprep.mubr.f32.mxu0 %v1774
  %1910 = vmatmul.mubr.f32.gmra.mrb[0].mxu0 %v1773
  %v1911 = vpop.f32.mrb[0].mxu0
  %v1912 = vadd.f32 %v1842, %v1911
  %v1913 = vpop.f32.mrb[0].mxu0
  %1914 = vdwg.mxu0
  %v1915 = vmax.f32 %v1912, 0.0
  %v1916 = vld [vmem:[%s6 + $0xc0] sm:$0xff]
  %v1917 = vld [vmem:[%s6 + $0xc8] sm:$0xff]
  %v1918 = vld [vmem:[%s6 + $0xd0] sm:$0xff]
  %v1919 = vld [vmem:[%s6 + $0xd8] sm:$0xff]
  %v1920 = vld [vmem:[%s6 + $0xe0] sm:$0xff]
  %v1921 = vld [vmem:[%s6 + $0xe8] sm:$0xff]
  %v1922 = vld [vmem:[%s6 + $0xf0] sm:$0xff]
  %v1923 = vld [vmem:[%s6 + $0xf8] sm:$0xff]
  %v1925 = vsel %vm1228, %v1915, 0
  %1927 = vmatprep.subr.mxu0 0.0
  %1928 = vmatpush1.msra.mxu0 %v1916
  %1929 = vmatprep.subr.mxu0 0.0
  %1930 = vmatpush1.msra.mxu0 %v1917
  %1931 = vmatprep.subr.mxu0 0.0
  %1932 = vmatpush1.msra.mxu0 %v1918
  %1933 = vmatprep.subr.mxu0 0.0
  %1934 = vmatpush1.msra.mxu0 %v1919
  %1935 = vmatprep.subr.mxu0 0.0
  %1936 = vmatpush1.msra.mxu0 %v1920
  %1937 = vmatprep.subr.mxu0 0.0
  %1938 = vmatpush1.msra.mxu0 %v1921
  %1939 = vmatprep.subr.mxu0 0.0
  %1940 = vmatpush1.msra.mxu0 %v1922
  %1941 = vmatprep.subr.mxu0 0.0
  %1942 = vmatpush1.msra.mxu0 %v1923
  %1943 = vmatprep.subr.mxu0 0.0
  %1944 = vmatpush1.msra.mxu0 0.0
  %1945 = vmatprep.subr.mxu0 0.0
  %1946 = vmatpush1.msra.mxu0 0.0
  %1947 = vmatprep.subr.mxu0 0.0
  %1948 = vmatpush1.msra.mxu0 0.0
  %1949 = vmatprep.subr.mxu0 0.0
  %1950 = vmatpush1.msra.mxu0 0.0
  %1951 = vmatprep.subr.mxu0 0.0
  %1952 = vmatpush1.msra.mxu0 0.0
  %1953 = vmatprep.subr.mxu0 0.0
  %1954 = vmatpush1.msra.mxu0 0.0
  %1955 = vmatprep.subr.mxu0 0.0
  %1956 = vmatpush1.msra.mxu0 0.0
  %1957 = vmatprep.subr.mxu0 0.0
  %1958 = vmatpush1.msra.mxu0 0.0
  %1959 = vmatprep.subr.mxu0 0.0
  %1960 = vmatpush1.msra.mxu0 0.0
  %1961 = vmatprep.subr.mxu0 0.0
  %1962 = vmatpush1.msra.mxu0 0.0
  %1963 = vmatprep.subr.mxu0 0.0
  %1964 = vmatpush1.msra.mxu0 0.0
  %1965 = vmatprep.subr.mxu0 0.0
  %1966 = vmatpush1.msra.mxu0 0.0
  %1967 = vmatprep.subr.mxu0 0.0
  %1968 = vmatpush1.msra.mxu0 0.0
  %1969 = vmatprep.subr.mxu0 0.0
  %1970 = vmatpush1.msra.mxu0 0.0
  %1971 = vmatprep.subr.mxu0 0.0
  %1972 = vmatpush1.msra.mxu0 0.0
  %1973 = vmatprep.subr.mxu0 0.0
  %1974 = vmatpush1.msra.mxu0 0.0
  %1975 = vmatprep.subr.mxu0 0.0
  %1976 = vmatpush1.msra.mxu0 0.0
  %1977 = vmatprep.subr.mxu0 0.0
  %1978 = vmatpush1.msra.mxu0 0.0
  %1979 = vmatprep.subr.mxu0 0.0
  %1980 = vmatpush1.msra.mxu0 0.0
  %1981 = vmatprep.subr.mxu0 0.0
  %1982 = vmatpush1.msra.mxu0 0.0
  %1983 = vmatprep.subr.mxu0 0.0
  %1984 = vmatpush1.msra.mxu0 0.0
  %1985 = vmatprep.subr.mxu0 0.0
  %1986 = vmatpush1.msra.mxu0 0.0
  %1987 = vmatprep.subr.mxu0 0.0
  %1988 = vmatpush1.msra.mxu0 0.0
  %1989 = vmatprep.subr.mxu0 0.0
  %1990 = vmatpush1.msra.mxu0 0.0
  %1991 = vmatprep.mubr.f32.mxu0 0.0
  %1992 = vmatmul.mubr.f32.gmra.mrb[0].mxu0 %v1925
  %v1993 = vpop.f32.mrb[0].mxu0
  %v1994 = vadd.f32 0.0, %v1993
  %v1995 = vpop.f32.mrb[0].mxu0
  %1996 = vdwg.mxu0
  %v1997 = vadd.f32 %v1772, %v1994
  %v1998 = vld [vmem:[#allocation2 + $0x40] sm:$0xff]
  %v1999 = vld [vmem:[#allocation2 + $0x48] sm:$0xff]
  %v2000 = vld [vmem:[#allocation2 + $0x50] sm:$0xff]
  %v2001 = vld [vmem:[#allocation2 + $0x58] sm:$0xff]
  %2004 = vrot.lane.b32.xlu0 %v1998, 64
  %v2005 = vpop.permute.xlu0 %2004
  %2006 = vrot.lane.b32.xlu0 %v1999, 64
  %v2007 = vpop.permute.xlu0 %2006
  %v2008 = vsel %vm1228, %v2005, %v2007
  %2012 = vrot.lane.b32.xlu0 %v2000, 64
  %v2013 = vpop.permute.xlu0 %2012
  %2014 = vrot.lane.b32.xlu0 %v2001, 64
  %v2015 = vpop.permute.xlu0 %2014
  %v2016 = vsel %vm1228, %v2013, %v2015
  %2018 = vmatprep.subr.mxu0 0.0
  %2019 = vmatpush1.msra.mxu0 %v994
  %2020 = vmatprep.subr.mxu0 0.0
  %2021 = vmatpush1.msra.mxu0 %v995
  %2022 = vmatprep.subr.mxu0 0.0
  %2023 = vmatpush1.msra.mxu0 %v996
  %2024 = vmatprep.subr.mxu0 0.0
  %2025 = vmatpush1.msra.mxu0 %v997
  %2026 = vmatprep.subr.mxu0 0.0
  %2027 = vmatpush1.msra.mxu0 %v998
  %2028 = vmatprep.subr.mxu0 0.0
  %2029 = vmatpush1.msra.mxu0 %v999
  %2030 = vmatprep.subr.mxu0 0.0
  %2031 = vmatpush1.msra.mxu0 %v1000
  %2032 = vmatprep.subr.mxu0 0.0
  %2033 = vmatpush1.msra.mxu0 %v1001
  %2034 = vmatprep.subr.mxu0 0.0
  %2035 = vmatpush1.msra.mxu0 %v1002
  %2036 = vmatprep.subr.mxu0 0.0
  %2037 = vmatpush1.msra.mxu0 %v1003
  %2038 = vmatprep.subr.mxu0 0.0
  %2039 = vmatpush1.msra.mxu0 %v1004
  %2040 = vmatprep.subr.mxu0 0.0
  %2041 = vmatpush1.msra.mxu0 %v1005
  %2042 = vmatprep.subr.mxu0 0.0
  %2043 = vmatpush1.msra.mxu0 %v1006
  %2044 = vmatprep.subr.mxu0 0.0
  %2045 = vmatpush1.msra.mxu0 %v1007
  %2046 = vmatprep.subr.mxu0 0.0
  %2047 = vmatpush1.msra.mxu0 %v1008
  %2048 = vmatprep.subr.mxu0 0.0
  %2049 = vmatpush1.msra.mxu0 %v1009
  %2050 = vmatprep.subr.mxu0 0.0
  %2051 = vmatpush1.msra.mxu0 %v1010
  %2052 = vmatprep.subr.mxu0 0.0
  %2053 = vmatpush1.msra.mxu0 %v1011
  %2054 = vmatprep.subr.mxu0 0.0
  %2055 = vmatpush1.msra.mxu0 %v1012
  %2056 = vmatprep.subr.mxu0 0.0
  %2057 = vmatpush1.msra.mxu0 %v1013
  %2058 = vmatprep.subr.mxu0 0.0
  %2059 = vmatpush1.msra.mxu0 %v1014
  %2060 = vmatprep.subr.mxu0 0.0
  %2061 = vmatpush1.msra.mxu0 %v1015
  %2062 = vmatprep.subr.mxu0 0.0
  %2063 = vmatpush1.msra.mxu0 %v1016
  %2064 = vmatprep.subr.mxu0 0.0
  %2065 = vmatpush1.msra.mxu0 %v1017
  %2066 = vmatprep.subr.mxu0 0.0
  %2067 = vmatpush1.msra.mxu0 %v1018
  %2068 = vmatprep.subr.mxu0 0.0
  %2069 = vmatpush1.msra.mxu0 %v1019
  %2070 = vmatprep.subr.mxu0 0.0
  %2071 = vmatpush1.msra.mxu0 %v1020
  %2072 = vmatprep.subr.mxu0 0.0
  %2073 = vmatpush1.msra.mxu0 %v1021
  %2074 = vmatprep.subr.mxu0 0.0
  %2075 = vmatpush1.msra.mxu0 %v1022
  %2076 = vmatprep.subr.mxu0 0.0
  %2077 = vmatpush1.msra.mxu0 %v1023
  %2078 = vmatprep.subr.mxu0 0.0
  %2079 = vmatpush1.msra.mxu0 %v1024
  %2080 = vmatprep.subr.mxu0 0.0
  %2081 = vmatpush1.msra.mxu0 %v1025
  %2082 = vmatprep.mubr.f32.mxu0 %v1253
  %2083 = vmatmul.mubr.f32.gmra.mrb[0].mxu0 %v1245
  %v2084 = vpop.f32.mrb[0].mxu0
  %v2085 = vadd.f32 %v1063, %v2084
  %v2086 = vpop.f32.mrb[0].mxu0
  %2087 = vdwg.mxu0
  %2088 = vmatprep.subr.mxu0 0.0
  %2089 = vmatpush1.msra.mxu0 %v1026
  %2090 = vmatprep.subr.mxu0 0.0
  %2091 = vmatpush1.msra.mxu0 %v1027
  %2092 = vmatprep.subr.mxu0 0.0
  %2093 = vmatpush1.msra.mxu0 %v1028
  %2094 = vmatprep.subr.mxu0 0.0
  %2095 = vmatpush1.msra.mxu0 %v1029
  %2096 = vmatprep.subr.mxu0 0.0
  %2097 = vmatpush1.msra.mxu0 %v1030
  %2098 = vmatprep.subr.mxu0 0.0
  %2099 = vmatpush1.msra.mxu0 %v1031
  %2100 = vmatprep.subr.mxu0 0.0
  %2101 = vmatpush1.msra.mxu0 %v1032
  %2102 = vmatprep.subr.mxu0 0.0
  %2103 = vmatpush1.msra.mxu0 %v1033
  %2104 = vmatprep.subr.mxu0 0.0
  %2105 = vmatpush1.msra.mxu0 %v1034
  %2106 = vmatprep.subr.mxu0 0.0
  %2107 = vmatpush1.msra.mxu0 %v1035
  %2108 = vmatprep.subr.mxu0 0.0
  %2109 = vmatpush1.msra.mxu0 %v1036
  %2110 = vmatprep.subr.mxu0 0.0
  %2111 = vmatpush1.msra.mxu0 %v1037
  %2112 = vmatprep.subr.mxu0 0.0
  %2113 = vmatpush1.msra.mxu0 %v1038
  %2114 = vmatprep.subr.mxu0 0.0
  %2115 = vmatpush1.msra.mxu0 %v1039
  %2116 = vmatprep.subr.mxu0 0.0
  %2117 = vmatpush1.msra.mxu0 %v1040
  %2118 = vmatprep.subr.mxu0 0.0
  %2119 = vmatpush1.msra.mxu0 %v1041
  %2120 = vmatprep.subr.mxu0 0.0
  %2121 = vmatpush1.msra.mxu0 %v1042
  %2122 = vmatprep.subr.mxu0 0.0
  %2123 = vmatpush1.msra.mxu0 %v1043
  %2124 = vmatprep.subr.mxu0 0.0
  %2125 = vmatpush1.msra.mxu0 %v1044
  %2126 = vmatprep.subr.mxu0 0.0
  %2127 = vmatpush1.msra.mxu0 %v1045
  %2128 = vmatprep.subr.mxu0 0.0
  %2129 = vmatpush1.msra.mxu0 %v1046
  %2130 = vmatprep.subr.mxu0 0.0
  %2131 = vmatpush1.msra.mxu0 %v1047
  %2132 = vmatprep.subr.mxu0 0.0
  %2133 = vmatpush1.msra.mxu0 %v1048
  %2134 = vmatprep.subr.mxu0 0.0
  %2135 = vmatpush1.msra.mxu0 %v1049
  %2136 = vmatprep.subr.mxu0 0.0
  %2137 = vmatpush1.msra.mxu0 %v1050
  %2138 = vmatprep.subr.mxu0 0.0
  %2139 = vmatpush1.msra.mxu0 %v1051
  %2140 = vmatprep.subr.mxu0 0.0
  %2141 = vmatpush1.msra.mxu0 %v1052
  %2142 = vmatprep.subr.mxu0 0.0
  %2143 = vmatpush1.msra.mxu0 %v1053
  %2144 = vmatprep.subr.mxu0 0.0
  %2145 = vmatpush1.msra.mxu0 %v1054
  %2146 = vmatprep.subr.mxu0 0.0
  %2147 = vmatpush1.msra.mxu0 %v1055
  %2148 = vmatprep.subr.mxu0 0.0
  %2149 = vmatpush1.msra.mxu0 %v1056
  %2150 = vmatprep.subr.mxu0 0.0
  %2151 = vmatpush1.msra.mxu0 %v1057
  %2152 = vmatprep.mubr.f32.mxu0 %v2016
  %2153 = vmatmul.mubr.f32.gmra.mrb[0].mxu0 %v2008
  %v2154 = vpop.f32.mrb[0].mxu0
  %v2155 = vadd.f32 %v2085, %v2154
  %v2156 = vpop.f32.mrb[0].mxu0
  %2157 = vdwg.mxu0
  %v2158 = vmax.f32 %v2155, 0.0
  %v2159 = vld [vmem:[%s6 + $0x100] sm:$0xff]
  %v2160 = vld [vmem:[%s6 + $0x108] sm:$0xff]
  %v2161 = vld [vmem:[%s6 + $0x110] sm:$0xff]
  %v2162 = vld [vmem:[%s6 + $0x118] sm:$0xff]
  %v2163 = vld [vmem:[%s6 + $0x120] sm:$0xff]
  %v2164 = vld [vmem:[%s6 + $0x128] sm:$0xff]
  %v2165 = vld [vmem:[%s6 + $0x130] sm:$0xff]
  %v2166 = vld [vmem:[%s6 + $0x138] sm:$0xff]
  %v2168 = vsel %vm1228, %v2158, 0
  %2170 = vmatprep.subr.mxu0 0.0
  %2171 = vmatpush1.msra.mxu0 %v2159
  %2172 = vmatprep.subr.mxu0 0.0
  %2173 = vmatpush1.msra.mxu0 %v2160
  %2174 = vmatprep.subr.mxu0 0.0
  %2175 = vmatpush1.msra.mxu0 %v2161
  %2176 = vmatprep.subr.mxu0 0.0
  %2177 = vmatpush1.msra.mxu0 %v2162
  %2178 = vmatprep.subr.mxu0 0.0
  %2179 = vmatpush1.msra.mxu0 %v2163
  %2180 = vmatprep.subr.mxu0 0.0
  %2181 = vmatpush1.msra.mxu0 %v2164
  %2182 = vmatprep.subr.mxu0 0.0
  %2183 = vmatpush1.msra.mxu0 %v2165
  %2184 = vmatprep.subr.mxu0 0.0
  %2185 = vmatpush1.msra.mxu0 %v2166
  %2186 = vmatprep.subr.mxu0 0.0
  %2187 = vmatpush1.msra.mxu0 0.0
  %2188 = vmatprep.subr.mxu0 0.0
  %2189 = vmatpush1.msra.mxu0 0.0
  %2190 = vmatprep.subr.mxu0 0.0
  %2191 = vmatpush1.msra.mxu0 0.0
  %2192 = vmatprep.subr.mxu0 0.0
  %2193 = vmatpush1.msra.mxu0 0.0
  %2194 = vmatprep.subr.mxu0 0.0
  %2195 = vmatpush1.msra.mxu0 0.0
  %2196 = vmatprep.subr.mxu0 0.0
  %2197 = vmatpush1.msra.mxu0 0.0
  %2198 = vmatprep.subr.mxu0 0.0
  %2199 = vmatpush1.msra.mxu0 0.0
  %2200 = vmatprep.subr.mxu0 0.0
  %2201 = vmatpush1.msra.mxu0 0.0
  %2202 = vmatprep.subr.mxu0 0.0
  %2203 = vmatpush1.msra.mxu0 0.0
  %2204 = vmatprep.subr.mxu0 0.0
  %2205 = vmatpush1.msra.mxu0 0.0
  %2206 = vmatprep.subr.mxu0 0.0
  %2207 = vmatpush1.msra.mxu0 0.0
  %2208 = vmatprep.subr.mxu0 0.0
  %2209 = vmatpush1.msra.mxu0 0.0
  %2210 = vmatprep.subr.mxu0 0.0
  %2211 = vmatpush1.msra.mxu0 0.0
  %2212 = vmatprep.subr.mxu0 0.0
  %2213 = vmatpush1.msra.mxu0 0.0
  %2214 = vmatprep.subr.mxu0 0.0
  %2215 = vmatpush1.msra.mxu0 0.0
  %2216 = vmatprep.subr.mxu0 0.0
  %2217 = vmatpush1.msra.mxu0 0.0
  %2218 = vmatprep.subr.mxu0 0.0
  %2219 = vmatpush1.msra.mxu0 0.0
  %2220 = vmatprep.subr.mxu0 0.0
  %2221 = vmatpush1.msra.mxu0 0.0
  %2222 = vmatprep.subr.mxu0 0.0
  %2223 = vmatpush1.msra.mxu0 0.0
  %2224 = vmatprep.subr.mxu0 0.0
  %2225 = vmatpush1.msra.mxu0 0.0
  %2226 = vmatprep.subr.mxu0 0.0
  %2227 = vmatpush1.msra.mxu0 0.0
  %2228 = vmatprep.subr.mxu0 0.0
  %2229 = vmatpush1.msra.mxu0 0.0
  %2230 = vmatprep.subr.mxu0 0.0
  %2231 = vmatpush1.msra.mxu0 0.0
  %2232 = vmatprep.subr.mxu0 0.0
  %2233 = vmatpush1.msra.mxu0 0.0
  %2234 = vmatprep.mubr.f32.mxu0 0.0
  %2235 = vmatmul.mubr.f32.gmra.mrb[0].mxu0 %v2168
  %v2236 = vpop.f32.mrb[0].mxu0
  %v2237 = vadd.f32 0.0, %v2236
  %v2238 = vpop.f32.mrb[0].mxu0
  %2239 = vdwg.mxu0
  %v2240 = vadd.f32 %v1997, %v2237
  %2241 = vmatprep.subr.mxu0 0.0
  %2242 = vmatpush1.msra.mxu0 %v994
  %2243 = vmatprep.subr.mxu0 0.0
  %2244 = vmatpush1.msra.mxu0 %v995
  %2245 = vmatprep.subr.mxu0 0.0
  %2246 = vmatpush1.msra.mxu0 %v996
  %2247 = vmatprep.subr.mxu0 0.0
  %2248 = vmatpush1.msra.mxu0 %v997
  %2249 = vmatprep.subr.mxu0 0.0
  %2250 = vmatpush1.msra.mxu0 %v998
  %2251 = vmatprep.subr.mxu0 0.0
  %2252 = vmatpush1.msra.mxu0 %v999
  %2253 = vmatprep.subr.mxu0 0.0
  %2254 = vmatpush1.msra.mxu0 %v1000
  %2255 = vmatprep.subr.mxu0 0.0
  %2256 = vmatpush1.msra.mxu0 %v1001
  %2257 = vmatprep.subr.mxu0 0.0
  %2258 = vmatpush1.msra.mxu0 %v1002
  %2259 = vmatprep.subr.mxu0 0.0
  %2260 = vmatpush1.msra.mxu0 %v1003
  %2261 = vmatprep.subr.mxu0 0.0
  %2262 = vmatpush1.msra.mxu0 %v1004
  %2263 = vmatprep.subr.mxu0 0.0
  %2264 = vmatpush1.msra.mxu0 %v1005
  %2265 = vmatprep.subr.mxu0 0.0
  %2266 = vmatpush1.msra.mxu0 %v1006
  %2267 = vmatprep.subr.mxu0 0.0
  %2268 = vmatpush1.msra.mxu0 %v1007
  %2269 = vmatprep.subr.mxu0 0.0
  %2270 = vmatpush1.msra.mxu0 %v1008
  %2271 = vmatprep.subr.mxu0 0.0
  %2272 = vmatpush1.msra.mxu0 %v1009
  %2273 = vmatprep.subr.mxu0 0.0
  %2274 = vmatpush1.msra.mxu0 %v1010
  %2275 = vmatprep.subr.mxu0 0.0
  %2276 = vmatpush1.msra.mxu0 %v1011
  %2277 = vmatprep.subr.mxu0 0.0
  %2278 = vmatpush1.msra.mxu0 %v1012
  %2279 = vmatprep.subr.mxu0 0.0
  %2280 = vmatpush1.msra.mxu0 %v1013
  %2281 = vmatprep.subr.mxu0 0.0
  %2282 = vmatpush1.msra.mxu0 %v1014
  %2283 = vmatprep.subr.mxu0 0.0
  %2284 = vmatpush1.msra.mxu0 %v1015
  %2285 = vmatprep.subr.mxu0 0.0
  %2286 = vmatpush1.msra.mxu0 %v1016
  %2287 = vmatprep.subr.mxu0 0.0
  %2288 = vmatpush1.msra.mxu0 %v1017
  %2289 = vmatprep.subr.mxu0 0.0
  %2290 = vmatpush1.msra.mxu0 %v1018
  %2291 = vmatprep.subr.mxu0 0.0
  %2292 = vmatpush1.msra.mxu0 %v1019
  %2293 = vmatprep.subr.mxu0 0.0
  %2294 = vmatpush1.msra.mxu0 %v1020
  %2295 = vmatprep.subr.mxu0 0.0
  %2296 = vmatpush1.msra.mxu0 %v1021
  %2297 = vmatprep.subr.mxu0 0.0
  %2298 = vmatpush1.msra.mxu0 %v1022
  %2299 = vmatprep.subr.mxu0 0.0
  %2300 = vmatpush1.msra.mxu0 %v1023
  %2301 = vmatprep.subr.mxu0 0.0
  %2302 = vmatpush1.msra.mxu0 %v1024
  %2303 = vmatprep.subr.mxu0 0.0
  %2304 = vmatpush1.msra.mxu0 %v1025
  %2305 = vmatprep.mubr.f32.mxu0 %v1221
  %2306 = vmatmul.mubr.f32.gmra.mrb[0].mxu0 %v1219
  %v2307 = vpop.f32.mrb[0].mxu0
  %v2308 = vadd.f32 %v1063, %v2307
  %v2309 = vpop.f32.mrb[0].mxu0
  %2310 = vdwg.mxu0
  %2311 = vmatprep.subr.mxu0 0.0
  %2312 = vmatpush1.msra.mxu0 %v1026
  %2313 = vmatprep.subr.mxu0 0.0
  %2314 = vmatpush1.msra.mxu0 %v1027
  %2315 = vmatprep.subr.mxu0 0.0
  %2316 = vmatpush1.msra.mxu0 %v1028
  %2317 = vmatprep.subr.mxu0 0.0
  %2318 = vmatpush1.msra.mxu0 %v1029
  %2319 = vmatprep.subr.mxu0 0.0
  %2320 = vmatpush1.msra.mxu0 %v1030
  %2321 = vmatprep.subr.mxu0 0.0
  %2322 = vmatpush1.msra.mxu0 %v1031
  %2323 = vmatprep.subr.mxu0 0.0
  %2324 = vmatpush1.msra.mxu0 %v1032
  %2325 = vmatprep.subr.mxu0 0.0
  %2326 = vmatpush1.msra.mxu0 %v1033
  %2327 = vmatprep.subr.mxu0 0.0
  %2328 = vmatpush1.msra.mxu0 %v1034
  %2329 = vmatprep.subr.mxu0 0.0
  %2330 = vmatpush1.msra.mxu0 %v1035
  %2331 = vmatprep.subr.mxu0 0.0
  %2332 = vmatpush1.msra.mxu0 %v1036
  %2333 = vmatprep.subr.mxu0 0.0
  %2334 = vmatpush1.msra.mxu0 %v1037
  %2335 = vmatprep.subr.mxu0 0.0
  %2336 = vmatpush1.msra.mxu0 %v1038
  %2337 = vmatprep.subr.mxu0 0.0
  %2338 = vmatpush1.msra.mxu0 %v1039
  %2339 = vmatprep.subr.mxu0 0.0
  %2340 = vmatpush1.msra.mxu0 %v1040
  %2341 = vmatprep.subr.mxu0 0.0
  %2342 = vmatpush1.msra.mxu0 %v1041
  %2343 = vmatprep.subr.mxu0 0.0
  %2344 = vmatpush1.msra.mxu0 %v1042
  %2345 = vmatprep.subr.mxu0 0.0
  %2346 = vmatpush1.msra.mxu0 %v1043
  %2347 = vmatprep.subr.mxu0 0.0
  %2348 = vmatpush1.msra.mxu0 %v1044
  %2349 = vmatprep.subr.mxu0 0.0
  %2350 = vmatpush1.msra.mxu0 %v1045
  %2351 = vmatprep.subr.mxu0 0.0
  %2352 = vmatpush1.msra.mxu0 %v1046
  %2353 = vmatprep.subr.mxu0 0.0
  %2354 = vmatpush1.msra.mxu0 %v1047
  %2355 = vmatprep.subr.mxu0 0.0
  %2356 = vmatpush1.msra.mxu0 %v1048
  %2357 = vmatprep.subr.mxu0 0.0
  %2358 = vmatpush1.msra.mxu0 %v1049
  %2359 = vmatprep.subr.mxu0 0.0
  %2360 = vmatpush1.msra.mxu0 %v1050
  %2361 = vmatprep.subr.mxu0 0.0
  %2362 = vmatpush1.msra.mxu0 %v1051
  %2363 = vmatprep.subr.mxu0 0.0
  %2364 = vmatpush1.msra.mxu0 %v1052
  %2365 = vmatprep.subr.mxu0 0.0
  %2366 = vmatpush1.msra.mxu0 %v1053
  %2367 = vmatprep.subr.mxu0 0.0
  %2368 = vmatpush1.msra.mxu0 %v1054
  %2369 = vmatprep.subr.mxu0 0.0
  %2370 = vmatpush1.msra.mxu0 %v1055
  %2371 = vmatprep.subr.mxu0 0.0
  %2372 = vmatpush1.msra.mxu0 %v1056
  %2373 = vmatprep.subr.mxu0 0.0
  %2374 = vmatpush1.msra.mxu0 %v1057
  %2375 = vmatprep.mubr.f32.mxu0 %v2001
  %2376 = vmatmul.mubr.f32.gmra.mrb[0].mxu0 %v1999
  %v2377 = vpop.f32.mrb[0].mxu0
  %v2378 = vadd.f32 %v2308, %v2377
  %v2379 = vpop.f32.mrb[0].mxu0
  %2380 = vdwg.mxu0
  %v2381 = vmax.f32 %v2378, 0.0
  %v2382 = vld [vmem:[%s6 + $0x140] sm:$0xff]
  %v2383 = vld [vmem:[%s6 + $0x148] sm:$0xff]
  %v2384 = vld [vmem:[%s6 + $0x150] sm:$0xff]
  %v2385 = vld [vmem:[%s6 + $0x158] sm:$0xff]
  %v2386 = vld [vmem:[%s6 + $0x160] sm:$0xff]
  %v2387 = vld [vmem:[%s6 + $0x168] sm:$0xff]
  %v2388 = vld [vmem:[%s6 + $0x170] sm:$0xff]
  %v2389 = vld [vmem:[%s6 + $0x178] sm:$0xff]
  %v2391 = vsel %vm1228, %v2381, 0
  %2393 = vmatprep.subr.mxu0 0.0
  %2394 = vmatpush1.msra.mxu0 %v2382
  %2395 = vmatprep.subr.mxu0 0.0
  %2396 = vmatpush1.msra.mxu0 %v2383
  %2397 = vmatprep.subr.mxu0 0.0
  %2398 = vmatpush1.msra.mxu0 %v2384
  %2399 = vmatprep.subr.mxu0 0.0
  %2400 = vmatpush1.msra.mxu0 %v2385
  %2401 = vmatprep.subr.mxu0 0.0
  %2402 = vmatpush1.msra.mxu0 %v2386
  %2403 = vmatprep.subr.mxu0 0.0
  %2404 = vmatpush1.msra.mxu0 %v2387
  %2405 = vmatprep.subr.mxu0 0.0
  %2406 = vmatpush1.msra.mxu0 %v2388
  %2407 = vmatprep.subr.mxu0 0.0
  %2408 = vmatpush1.msra.mxu0 %v2389
  %2409 = vmatprep.subr.mxu0 0.0
  %2410 = vmatpush1.msra.mxu0 0.0
  %2411 = vmatprep.subr.mxu0 0.0
  %2412 = vmatpush1.msra.mxu0 0.0
  %2413 = vmatprep.subr.mxu0 0.0
  %2414 = vmatpush1.msra.mxu0 0.0
  %2415 = vmatprep.subr.mxu0 0.0
  %2416 = vmatpush1.msra.mxu0 0.0
  %2417 = vmatprep.subr.mxu0 0.0
  %2418 = vmatpush1.msra.mxu0 0.0
  %2419 = vmatprep.subr.mxu0 0.0
  %2420 = vmatpush1.msra.mxu0 0.0
  %2421 = vmatprep.subr.mxu0 0.0
  %2422 = vmatpush1.msra.mxu0 0.0
  %2423 = vmatprep.subr.mxu0 0.0
  %2424 = vmatpush1.msra.mxu0 0.0
  %2425 = vmatprep.subr.mxu0 0.0
  %2426 = vmatpush1.msra.mxu0 0.0
  %2427 = vmatprep.subr.mxu0 0.0
  %2428 = vmatpush1.msra.mxu0 0.0
  %2429 = vmatprep.subr.mxu0 0.0
  %2430 = vmatpush1.msra.mxu0 0.0
  %2431 = vmatprep.subr.mxu0 0.0
  %2432 = vmatpush1.msra.mxu0 0.0
  %2433 = vmatprep.subr.mxu0 0.0
  %2434 = vmatpush1.msra.mxu0 0.0
  %2435 = vmatprep.subr.mxu0 0.0
  %2436 = vmatpush1.msra.mxu0 0.0
  %2437 = vmatprep.subr.mxu0 0.0
  %2438 = vmatpush1.msra.mxu0 0.0
  %2439 = vmatprep.subr.mxu0 0.0
  %2440 = vmatpush1.msra.mxu0 0.0
  %2441 = vmatprep.subr.mxu0 0.0
  %2442 = vmatpush1.msra.mxu0 0.0
  %2443 = vmatprep.subr.mxu0 0.0
  %2444 = vmatpush1.msra.mxu0 0.0
  %2445 = vmatprep.subr.mxu0 0.0
  %2446 = vmatpush1.msra.mxu0 0.0
  %2447 = vmatprep.subr.mxu0 0.0
  %2448 = vmatpush1.msra.mxu0 0.0
  %2449 = vmatprep.subr.mxu0 0.0
  %2450 = vmatpush1.msra.mxu0 0.0
  %2451 = vmatprep.subr.mxu0 0.0
  %2452 = vmatpush1.msra.mxu0 0.0
  %2453 = vmatprep.subr.mxu0 0.0
  %2454 = vmatpush1.msra.mxu0 0.0
  %2455 = vmatprep.subr.mxu0 0.0
  %2456 = vmatpush1.msra.mxu0 0.0
  %2457 = vmatprep.mubr.f32.mxu0 0.0
  %2458 = vmatmul.mubr.f32.gmra.mrb[0].mxu0 %v2391
  %v2459 = vpop.f32.mrb[0].mxu0
  %v2460 = vadd.f32 0.0, %v2459
  %v2461 = vpop.f32.mrb[0].mxu0
  %2462 = vdwg.mxu0
  %v2463 = vadd.f32 %v2240, %v2460
  %v2464 = vld [vmem:[#allocation2 + $0x60] sm:$0xff]
  %v2465 = vld [vmem:[#allocation2 + $0x70] sm:$0xff]
  %2466 = vmatprep.subr.mxu0 0.0
  %2467 = vmatpush1.msra.mxu0 %v994
  %2468 = vmatprep.subr.mxu0 0.0
  %2469 = vmatpush1.msra.mxu0 %v995
  %2470 = vmatprep.subr.mxu0 0.0
  %2471 = vmatpush1.msra.mxu0 %v996
  %2472 = vmatprep.subr.mxu0 0.0
  %2473 = vmatpush1.msra.mxu0 %v997
  %2474 = vmatprep.subr.mxu0 0.0
  %2475 = vmatpush1.msra.mxu0 %v998
  %2476 = vmatprep.subr.mxu0 0.0
  %2477 = vmatpush1.msra.mxu0 %v999
  %2478 = vmatprep.subr.mxu0 0.0
  %2479 = vmatpush1.msra.mxu0 %v1000
  %2480 = vmatprep.subr.mxu0 0.0
  %2481 = vmatpush1.msra.mxu0 %v1001
  %2482 = vmatprep.subr.mxu0 0.0
  %2483 = vmatpush1.msra.mxu0 %v1002
  %2484 = vmatprep.subr.mxu0 0.0
  %2485 = vmatpush1.msra.mxu0 %v1003
  %2486 = vmatprep.subr.mxu0 0.0
  %2487 = vmatpush1.msra.mxu0 %v1004
  %2488 = vmatprep.subr.mxu0 0.0
  %2489 = vmatpush1.msra.mxu0 %v1005
  %2490 = vmatprep.subr.mxu0 0.0
  %2491 = vmatpush1.msra.mxu0 %v1006
  %2492 = vmatprep.subr.mxu0 0.0
  %2493 = vmatpush1.msra.mxu0 %v1007
  %2494 = vmatprep.subr.mxu0 0.0
  %2495 = vmatpush1.msra.mxu0 %v1008
  %2496 = vmatprep.subr.mxu0 0.0
  %2497 = vmatpush1.msra.mxu0 %v1009
  %2498 = vmatprep.subr.mxu0 0.0
  %2499 = vmatpush1.msra.mxu0 %v1010
  %2500 = vmatprep.subr.mxu0 0.0
  %2501 = vmatpush1.msra.mxu0 %v1011
  %2502 = vmatprep.subr.mxu0 0.0
  %2503 = vmatpush1.msra.mxu0 %v1012
  %2504 = vmatprep.subr.mxu0 0.0
  %2505 = vmatpush1.msra.mxu0 %v1013
  %2506 = vmatprep.subr.mxu0 0.0
  %2507 = vmatpush1.msra.mxu0 %v1014
  %2508 = vmatprep.subr.mxu0 0.0
  %2509 = vmatpush1.msra.mxu0 %v1015
  %2510 = vmatprep.subr.mxu0 0.0
  %2511 = vmatpush1.msra.mxu0 %v1016
  %2512 = vmatprep.subr.mxu0 0.0
  %2513 = vmatpush1.msra.mxu0 %v1017
  %2514 = vmatprep.subr.mxu0 0.0
  %2515 = vmatpush1.msra.mxu0 %v1018
  %2516 = vmatprep.subr.mxu0 0.0
  %2517 = vmatpush1.msra.mxu0 %v1019
  %2518 = vmatprep.subr.mxu0 0.0
  %2519 = vmatpush1.msra.mxu0 %v1020
  %2520 = vmatprep.subr.mxu0 0.0
  %2521 = vmatpush1.msra.mxu0 %v1021
  %2522 = vmatprep.subr.mxu0 0.0
  %2523 = vmatpush1.msra.mxu0 %v1022
  %2524 = vmatprep.subr.mxu0 0.0
  %2525 = vmatpush1.msra.mxu0 %v1023
  %2526 = vmatprep.subr.mxu0 0.0
  %2527 = vmatpush1.msra.mxu0 %v1024
  %2528 = vmatprep.subr.mxu0 0.0
  %2529 = vmatpush1.msra.mxu0 %v1025
  %2530 = vmatprep.mubr.f32.mxu0 %v1774
  %2531 = vmatmul.mubr.f32.gmra.mrb[0].mxu0 %v1773
  %v2532 = vpop.f32.mrb[0].mxu0
  %v2533 = vadd.f32 %v1063, %v2532
  %v2534 = vpop.f32.mrb[0].mxu0
  %2535 = vdwg.mxu0
  %2536 = vmatprep.subr.mxu0 0.0
  %2537 = vmatpush1.msra.mxu0 %v1026
  %2538 = vmatprep.subr.mxu0 0.0
  %2539 = vmatpush1.msra.mxu0 %v1027
  %2540 = vmatprep.subr.mxu0 0.0
  %2541 = vmatpush1.msra.mxu0 %v1028
  %2542 = vmatprep.subr.mxu0 0.0
  %2543 = vmatpush1.msra.mxu0 %v1029
  %2544 = vmatprep.subr.mxu0 0.0
  %2545 = vmatpush1.msra.mxu0 %v1030
  %2546 = vmatprep.subr.mxu0 0.0
  %2547 = vmatpush1.msra.mxu0 %v1031
  %2548 = vmatprep.subr.mxu0 0.0
  %2549 = vmatpush1.msra.mxu0 %v1032
  %2550 = vmatprep.subr.mxu0 0.0
  %2551 = vmatpush1.msra.mxu0 %v1033
  %2552 = vmatprep.subr.mxu0 0.0
  %2553 = vmatpush1.msra.mxu0 %v1034
  %2554 = vmatprep.subr.mxu0 0.0
  %2555 = vmatpush1.msra.mxu0 %v1035
  %2556 = vmatprep.subr.mxu0 0.0
  %2557 = vmatpush1.msra.mxu0 %v1036
  %2558 = vmatprep.subr.mxu0 0.0
  %2559 = vmatpush1.msra.mxu0 %v1037
  %2560 = vmatprep.subr.mxu0 0.0
  %2561 = vmatpush1.msra.mxu0 %v1038
  %2562 = vmatprep.subr.mxu0 0.0
  %2563 = vmatpush1.msra.mxu0 %v1039
  %2564 = vmatprep.subr.mxu0 0.0
  %2565 = vmatpush1.msra.mxu0 %v1040
  %2566 = vmatprep.subr.mxu0 0.0
  %2567 = vmatpush1.msra.mxu0 %v1041
  %2568 = vmatprep.subr.mxu0 0.0
  %2569 = vmatpush1.msra.mxu0 %v1042
  %2570 = vmatprep.subr.mxu0 0.0
  %2571 = vmatpush1.msra.mxu0 %v1043
  %2572 = vmatprep.subr.mxu0 0.0
  %2573 = vmatpush1.msra.mxu0 %v1044
  %2574 = vmatprep.subr.mxu0 0.0
  %2575 = vmatpush1.msra.mxu0 %v1045
  %2576 = vmatprep.subr.mxu0 0.0
  %2577 = vmatpush1.msra.mxu0 %v1046
  %2578 = vmatprep.subr.mxu0 0.0
  %2579 = vmatpush1.msra.mxu0 %v1047
  %2580 = vmatprep.subr.mxu0 0.0
  %2581 = vmatpush1.msra.mxu0 %v1048
  %2582 = vmatprep.subr.mxu0 0.0
  %2583 = vmatpush1.msra.mxu0 %v1049
  %2584 = vmatprep.subr.mxu0 0.0
  %2585 = vmatpush1.msra.mxu0 %v1050
  %2586 = vmatprep.subr.mxu0 0.0
  %2587 = vmatpush1.msra.mxu0 %v1051
  %2588 = vmatprep.subr.mxu0 0.0
  %2589 = vmatpush1.msra.mxu0 %v1052
  %2590 = vmatprep.subr.mxu0 0.0
  %2591 = vmatpush1.msra.mxu0 %v1053
  %2592 = vmatprep.subr.mxu0 0.0
  %2593 = vmatpush1.msra.mxu0 %v1054
  %2594 = vmatprep.subr.mxu0 0.0
  %2595 = vmatpush1.msra.mxu0 %v1055
  %2596 = vmatprep.subr.mxu0 0.0
  %2597 = vmatpush1.msra.mxu0 %v1056
  %2598 = vmatprep.subr.mxu0 0.0
  %2599 = vmatpush1.msra.mxu0 %v1057
  %2600 = vmatprep.mubr.f32.mxu0 %v2465
  %2601 = vmatmul.mubr.f32.gmra.mrb[0].mxu0 %v2464
  %v2602 = vpop.f32.mrb[0].mxu0
  %v2603 = vadd.f32 %v2533, %v2602
  %v2604 = vpop.f32.mrb[0].mxu0
  %2605 = vdwg.mxu0
  %v2606 = vmax.f32 %v2603, 0.0
  %v2607 = vld [vmem:[%s6 + $0x180] sm:$0xff]
  %v2608 = vld [vmem:[%s6 + $0x188] sm:$0xff]
  %v2609 = vld [vmem:[%s6 + $0x190] sm:$0xff]
  %v2610 = vld [vmem:[%s6 + $0x198] sm:$0xff]
  %v2611 = vld [vmem:[%s6 + $0x1a0] sm:$0xff]
  %v2612 = vld [vmem:[%s6 + $0x1a8] sm:$0xff]
  %v2613 = vld [vmem:[%s6 + $0x1b0] sm:$0xff]
  %v2614 = vld [vmem:[%s6 + $0x1b8] sm:$0xff]
  %v2616 = vsel %vm1228, %v2606, 0
  %2618 = vmatprep.subr.mxu0 0.0
  %2619 = vmatpush1.msra.mxu0 %v2607
  %2620 = vmatprep.subr.mxu0 0.0
  %2621 = vmatpush1.msra.mxu0 %v2608
  %2622 = vmatprep.subr.mxu0 0.0
  %2623 = vmatpush1.msra.mxu0 %v2609
  %2624 = vmatprep.subr.mxu0 0.0
  %2625 = vmatpush1.msra.mxu0 %v2610
  %2626 = vmatprep.subr.mxu0 0.0
  %2627 = vmatpush1.msra.mxu0 %v2611
  %2628 = vmatprep.subr.mxu0 0.0
  %2629 = vmatpush1.msra.mxu0 %v2612
  %2630 = vmatprep.subr.mxu0 0.0
  %2631 = vmatpush1.msra.mxu0 %v2613
  %2632 = vmatprep.subr.mxu0 0.0
  %2633 = vmatpush1.msra.mxu0 %v2614
  %2634 = vmatprep.subr.mxu0 0.0
  %2635 = vmatpush1.msra.mxu0 0.0
  %2636 = vmatprep.subr.mxu0 0.0
  %2637 = vmatpush1.msra.mxu0 0.0
  %2638 = vmatprep.subr.mxu0 0.0
  %2639 = vmatpush1.msra.mxu0 0.0
  %2640 = vmatprep.subr.mxu0 0.0
  %2641 = vmatpush1.msra.mxu0 0.0
  %2642 = vmatprep.subr.mxu0 0.0
  %2643 = vmatpush1.msra.mxu0 0.0
  %2644 = vmatprep.subr.mxu0 0.0
  %2645 = vmatpush1.msra.mxu0 0.0
  %2646 = vmatprep.subr.mxu0 0.0
  %2647 = vmatpush1.msra.mxu0 0.0
  %2648 = vmatprep.subr.mxu0 0.0
  %2649 = vmatpush1.msra.mxu0 0.0
  %2650 = vmatprep.subr.mxu0 0.0
  %2651 = vmatpush1.msra.mxu0 0.0
  %2652 = vmatprep.subr.mxu0 0.0
  %2653 = vmatpush1.msra.mxu0 0.0
  %2654 = vmatprep.subr.mxu0 0.0
  %2655 = vmatpush1.msra.mxu0 0.0
  %2656 = vmatprep.subr.mxu0 0.0
  %2657 = vmatpush1.msra.mxu0 0.0
  %2658 = vmatprep.subr.mxu0 0.0
  %2659 = vmatpush1.msra.mxu0 0.0
  %2660 = vmatprep.subr.mxu0 0.0
  %2661 = vmatpush1.msra.mxu0 0.0
  %2662 = vmatprep.subr.mxu0 0.0
  %2663 = vmatpush1.msra.mxu0 0.0
  %2664 = vmatprep.subr.mxu0 0.0
  %2665 = vmatpush1.msra.mxu0 0.0
  %2666 = vmatprep.subr.mxu0 0.0
  %2667 = vmatpush1.msra.mxu0 0.0
  %2668 = vmatprep.subr.mxu0 0.0
  %2669 = vmatpush1.msra.mxu0 0.0
  %2670 = vmatprep.subr.mxu0 0.0
  %2671 = vmatpush1.msra.mxu0 0.0
  %2672 = vmatprep.subr.mxu0 0.0
  %2673 = vmatpush1.msra.mxu0 0.0
  %2674 = vmatprep.subr.mxu0 0.0
  %2675 = vmatpush1.msra.mxu0 0.0
  %2676 = vmatprep.subr.mxu0 0.0
  %2677 = vmatpush1.msra.mxu0 0.0
  %2678 = vmatprep.subr.mxu0 0.0
  %2679 = vmatpush1.msra.mxu0 0.0
  %2680 = vmatprep.subr.mxu0 0.0
  %2681 = vmatpush1.msra.mxu0 0.0
  %2682 = vmatprep.mubr.f32.mxu0 0.0
  %2683 = vmatmul.mubr.f32.gmra.mrb[0].mxu0 %v2616
  %v2684 = vpop.f32.mrb[0].mxu0
  %v2685 = vadd.f32 0.0, %v2684
  %v2686 = vpop.f32.mrb[0].mxu0
  %2687 = vdwg.mxu0
  %v2688 = vadd.f32 %v2463, %v2685
  %v2689 = vld [vmem:[#allocation2 + $0x60] sm:$0xff]
  %v2690 = vld [vmem:[#allocation2 + $0x68] sm:$0xff]
  %v2691 = vld [vmem:[#allocation2 + $0x70] sm:$0xff]
  %v2692 = vld [vmem:[#allocation2 + $0x78] sm:$0xff]
  %2695 = vrot.lane.b32.xlu0 %v2689, 64
  %v2696 = vpop.permute.xlu0 %2695
  %2697 = vrot.lane.b32.xlu0 %v2690, 64
  %v2698 = vpop.permute.xlu0 %2697
  %v2699 = vsel %vm1228, %v2696, %v2698
  %2703 = vrot.lane.b32.xlu0 %v2691, 64
  %v2704 = vpop.permute.xlu0 %2703
  %2705 = vrot.lane.b32.xlu0 %v2692, 64
  %v2706 = vpop.permute.xlu0 %2705
  %v2707 = vsel %vm1228, %v2704, %v2706
  %2709 = vmatprep.subr.mxu0 0.0
  %2710 = vmatpush1.msra.mxu0 %v994
  %2711 = vmatprep.subr.mxu0 0.0
  %2712 = vmatpush1.msra.mxu0 %v995
  %2713 = vmatprep.subr.mxu0 0.0
  %2714 = vmatpush1.msra.mxu0 %v996
  %2715 = vmatprep.subr.mxu0 0.0
  %2716 = vmatpush1.msra.mxu0 %v997
  %2717 = vmatprep.subr.mxu0 0.0
  %2718 = vmatpush1.msra.mxu0 %v998
  %2719 = vmatprep.subr.mxu0 0.0
  %2720 = vmatpush1.msra.mxu0 %v999
  %2721 = vmatprep.subr.mxu0 0.0
  %2722 = vmatpush1.msra.mxu0 %v1000
  %2723 = vmatprep.subr.mxu0 0.0
  %2724 = vmatpush1.msra.mxu0 %v1001
  %2725 = vmatprep.subr.mxu0 0.0
  %2726 = vmatpush1.msra.mxu0 %v1002
  %2727 = vmatprep.subr.mxu0 0.0
  %2728 = vmatpush1.msra.mxu0 %v1003
  %2729 = vmatprep.subr.mxu0 0.0
  %2730 = vmatpush1.msra.mxu0 %v1004
  %2731 = vmatprep.subr.mxu0 0.0
  %2732 = vmatpush1.msra.mxu0 %v1005
  %2733 = vmatprep.subr.mxu0 0.0
  %2734 = vmatpush1.msra.mxu0 %v1006
  %2735 = vmatprep.subr.mxu0 0.0
  %2736 = vmatpush1.msra.mxu0 %v1007
  %2737 = vmatprep.subr.mxu0 0.0
  %2738 = vmatpush1.msra.mxu0 %v1008
  %2739 = vmatprep.subr.mxu0 0.0
  %2740 = vmatpush1.msra.mxu0 %v1009
  %2741 = vmatprep.subr.mxu0 0.0
  %2742 = vmatpush1.msra.mxu0 %v1010
  %2743 = vmatprep.subr.mxu0 0.0
  %2744 = vmatpush1.msra.mxu0 %v1011
  %2745 = vmatprep.subr.mxu0 0.0
  %2746 = vmatpush1.msra.mxu0 %v1012
  %2747 = vmatprep.subr.mxu0 0.0
  %2748 = vmatpush1.msra.mxu0 %v1013
  %2749 = vmatprep.subr.mxu0 0.0
  %2750 = vmatpush1.msra.mxu0 %v1014
  %2751 = vmatprep.subr.mxu0 0.0
  %2752 = vmatpush1.msra.mxu0 %v1015
  %2753 = vmatprep.subr.mxu0 0.0
  %2754 = vmatpush1.msra.mxu0 %v1016
  %2755 = vmatprep.subr.mxu0 0.0
  %2756 = vmatpush1.msra.mxu0 %v1017
  %2757 = vmatprep.subr.mxu0 0.0
  %2758 = vmatpush1.msra.mxu0 %v1018
  %2759 = vmatprep.subr.mxu0 0.0
  %2760 = vmatpush1.msra.mxu0 %v1019
  %2761 = vmatprep.subr.mxu0 0.0
  %2762 = vmatpush1.msra.mxu0 %v1020
  %2763 = vmatprep.subr.mxu0 0.0
  %2764 = vmatpush1.msra.mxu0 %v1021
  %2765 = vmatprep.subr.mxu0 0.0
  %2766 = vmatpush1.msra.mxu0 %v1022
  %2767 = vmatprep.subr.mxu0 0.0
  %2768 = vmatpush1.msra.mxu0 %v1023
  %2769 = vmatprep.subr.mxu0 0.0
  %2770 = vmatpush1.msra.mxu0 %v1024
  %2771 = vmatprep.subr.mxu0 0.0
  %2772 = vmatpush1.msra.mxu0 %v1025
  %2773 = vmatprep.mubr.f32.mxu0 %v2016
  %2774 = vmatmul.mubr.f32.gmra.mrb[0].mxu0 %v2008
  %v2775 = vpop.f32.mrb[0].mxu0
  %v2776 = vadd.f32 %v1063, %v2775
  %v2777 = vpop.f32.mrb[0].mxu0
  %2778 = vdwg.mxu0
  %2779 = vmatprep.subr.mxu0 0.0
  %2780 = vmatpush1.msra.mxu0 %v1026
  %2781 = vmatprep.subr.mxu0 0.0
  %2782 = vmatpush1.msra.mxu0 %v1027
  %2783 = vmatprep.subr.mxu0 0.0
  %2784 = vmatpush1.msra.mxu0 %v1028
  %2785 = vmatprep.subr.mxu0 0.0
  %2786 = vmatpush1.msra.mxu0 %v1029
  %2787 = vmatprep.subr.mxu0 0.0
  %2788 = vmatpush1.msra.mxu0 %v1030
  %2789 = vmatprep.subr.mxu0 0.0
  %2790 = vmatpush1.msra.mxu0 %v1031
  %2791 = vmatprep.subr.mxu0 0.0
  %2792 = vmatpush1.msra.mxu0 %v1032
  %2793 = vmatprep.subr.mxu0 0.0
  %2794 = vmatpush1.msra.mxu0 %v1033
  %2795 = vmatprep.subr.mxu0 0.0
  %2796 = vmatpush1.msra.mxu0 %v1034
  %2797 = vmatprep.subr.mxu0 0.0
  %2798 = vmatpush1.msra.mxu0 %v1035
  %2799 = vmatprep.subr.mxu0 0.0
  %2800 = vmatpush1.msra.mxu0 %v1036
  %2801 = vmatprep.subr.mxu0 0.0
  %2802 = vmatpush1.msra.mxu0 %v1037
  %2803 = vmatprep.subr.mxu0 0.0
  %2804 = vmatpush1.msra.mxu0 %v1038
  %2805 = vmatprep.subr.mxu0 0.0
  %2806 = vmatpush1.msra.mxu0 %v1039
  %2807 = vmatprep.subr.mxu0 0.0
  %2808 = vmatpush1.msra.mxu0 %v1040
  %2809 = vmatprep.subr.mxu0 0.0
  %2810 = vmatpush1.msra.mxu0 %v1041
  %2811 = vmatprep.subr.mxu0 0.0
  %2812 = vmatpush1.msra.mxu0 %v1042
  %2813 = vmatprep.subr.mxu0 0.0
  %2814 = vmatpush1.msra.mxu0 %v1043
  %2815 = vmatprep.subr.mxu0 0.0
  %2816 = vmatpush1.msra.mxu0 %v1044
  %2817 = vmatprep.subr.mxu0 0.0
  %2818 = vmatpush1.msra.mxu0 %v1045
  %2819 = vmatprep.subr.mxu0 0.0
  %2820 = vmatpush1.msra.mxu0 %v1046
  %2821 = vmatprep.subr.mxu0 0.0
  %2822 = vmatpush1.msra.mxu0 %v1047
  %2823 = vmatprep.subr.mxu0 0.0
  %2824 = vmatpush1.msra.mxu0 %v1048
  %2825 = vmatprep.subr.mxu0 0.0
  %2826 = vmatpush1.msra.mxu0 %v1049
  %2827 = vmatprep.subr.mxu0 0.0
  %2828 = vmatpush1.msra.mxu0 %v1050
  %2829 = vmatprep.subr.mxu0 0.0
  %2830 = vmatpush1.msra.mxu0 %v1051
  %2831 = vmatprep.subr.mxu0 0.0
  %2832 = vmatpush1.msra.mxu0 %v1052
  %2833 = vmatprep.subr.mxu0 0.0
  %2834 = vmatpush1.msra.mxu0 %v1053
  %2835 = vmatprep.subr.mxu0 0.0
  %2836 = vmatpush1.msra.mxu0 %v1054
  %2837 = vmatprep.subr.mxu0 0.0
  %2838 = vmatpush1.msra.mxu0 %v1055
  %2839 = vmatprep.subr.mxu0 0.0
  %2840 = vmatpush1.msra.mxu0 %v1056
  %2841 = vmatprep.subr.mxu0 0.0
  %2842 = vmatpush1.msra.mxu0 %v1057
  %2843 = vmatprep.mubr.f32.mxu0 %v2707
  %2844 = vmatmul.mubr.f32.gmra.mrb[0].mxu0 %v2699
  %v2845 = vpop.f32.mrb[0].mxu0
  %v2846 = vadd.f32 %v2776, %v2845
  %v2847 = vpop.f32.mrb[0].mxu0
  %2848 = vdwg.mxu0
  %v2849 = vmax.f32 %v2846, 0.0
  %v2850 = vld [vmem:[%s6 + $0x1c0] sm:$0xff]
  %v2851 = vld [vmem:[%s6 + $0x1c8] sm:$0xff]
  %v2852 = vld [vmem:[%s6 + $0x1d0] sm:$0xff]
  %v2853 = vld [vmem:[%s6 + $0x1d8] sm:$0xff]
  %v2854 = vld [vmem:[%s6 + $0x1e0] sm:$0xff]
  %v2855 = vld [vmem:[%s6 + $0x1e8] sm:$0xff]
  %v2856 = vld [vmem:[%s6 + $0x1f0] sm:$0xff]
  %v2857 = vld [vmem:[%s6 + $0x1f8] sm:$0xff]
  %v2859 = vsel %vm1228, %v2849, 0
  %2861 = vmatprep.subr.mxu0 0.0
  %2862 = vmatpush1.msra.mxu0 %v2850
  %2863 = vmatprep.subr.mxu0 0.0
  %2864 = vmatpush1.msra.mxu0 %v2851
  %2865 = vmatprep.subr.mxu0 0.0
  %2866 = vmatpush1.msra.mxu0 %v2852
  %2867 = vmatprep.subr.mxu0 0.0
  %2868 = vmatpush1.msra.mxu0 %v2853
  %2869 = vmatprep.subr.mxu0 0.0
  %2870 = vmatpush1.msra.mxu0 %v2854
  %2871 = vmatprep.subr.mxu0 0.0
  %2872 = vmatpush1.msra.mxu0 %v2855
  %2873 = vmatprep.subr.mxu0 0.0
  %2874 = vmatpush1.msra.mxu0 %v2856
  %2875 = vmatprep.subr.mxu0 0.0
  %2876 = vmatpush1.msra.mxu0 %v2857
  %2877 = vmatprep.subr.mxu0 0.0
  %2878 = vmatpush1.msra.mxu0 0.0
  %2879 = vmatprep.subr.mxu0 0.0
  %2880 = vmatpush1.msra.mxu0 0.0
  %2881 = vmatprep.subr.mxu0 0.0
  %2882 = vmatpush1.msra.mxu0 0.0
  %2883 = vmatprep.subr.mxu0 0.0
  %2884 = vmatpush1.msra.mxu0 0.0
  %2885 = vmatprep.subr.mxu0 0.0
  %2886 = vmatpush1.msra.mxu0 0.0
  %2887 = vmatprep.subr.mxu0 0.0
  %2888 = vmatpush1.msra.mxu0 0.0
  %2889 = vmatprep.subr.mxu0 0.0
  %2890 = vmatpush1.msra.mxu0 0.0
  %2891 = vmatprep.subr.mxu0 0.0
  %2892 = vmatpush1.msra.mxu0 0.0
  %2893 = vmatprep.subr.mxu0 0.0
  %2894 = vmatpush1.msra.mxu0 0.0
  %2895 = vmatprep.subr.mxu0 0.0
  %2896 = vmatpush1.msra.mxu0 0.0
  %2897 = vmatprep.subr.mxu0 0.0
  %2898 = vmatpush1.msra.mxu0 0.0
  %2899 = vmatprep.subr.mxu0 0.0
  %2900 = vmatpush1.msra.mxu0 0.0
  %2901 = vmatprep.subr.mxu0 0.0
  %2902 = vmatpush1.msra.mxu0 0.0
  %2903 = vmatprep.subr.mxu0 0.0
  %2904 = vmatpush1.msra.mxu0 0.0
  %2905 = vmatprep.subr.mxu0 0.0
  %2906 = vmatpush1.msra.mxu0 0.0
  %2907 = vmatprep.subr.mxu0 0.0
  %2908 = vmatpush1.msra.mxu0 0.0
  %2909 = vmatprep.subr.mxu0 0.0
  %2910 = vmatpush1.msra.mxu0 0.0
  %2911 = vmatprep.subr.mxu0 0.0
  %2912 = vmatpush1.msra.mxu0 0.0
  %2913 = vmatprep.subr.mxu0 0.0
  %2914 = vmatpush1.msra.mxu0 0.0
  %2915 = vmatprep.subr.mxu0 0.0
  %2916 = vmatpush1.msra.mxu0 0.0
  %2917 = vmatprep.subr.mxu0 0.0
  %2918 = vmatpush1.msra.mxu0 0.0
  %2919 = vmatprep.subr.mxu0 0.0
  %2920 = vmatpush1.msra.mxu0 0.0
  %2921 = vmatprep.subr.mxu0 0.0
  %2922 = vmatpush1.msra.mxu0 0.0
  %2923 = vmatprep.subr.mxu0 0.0
  %2924 = vmatpush1.msra.mxu0 0.0
  %2925 = vmatprep.mubr.f32.mxu0 0.0
  %2926 = vmatmul.mubr.f32.gmra.mrb[0].mxu0 %v2859
  %v2927 = vpop.f32.mrb[0].mxu0
  %v2928 = vadd.f32 0.0, %v2927
  %v2929 = vpop.f32.mrb[0].mxu0
  %2930 = vdwg.mxu0
  %v2931 = vadd.f32 %v2688, %v2928
  %2932 = vmatprep.subr.mxu0 0.0
  %2933 = vmatpush1.msra.mxu0 %v994
  %2934 = vmatprep.subr.mxu0 0.0
  %2935 = vmatpush1.msra.mxu0 %v995
  %2936 = vmatprep.subr.mxu0 0.0
  %2937 = vmatpush1.msra.mxu0 %v996
  %2938 = vmatprep.subr.mxu0 0.0
  %2939 = vmatpush1.msra.mxu0 %v997
  %2940 = vmatprep.subr.mxu0 0.0
  %2941 = vmatpush1.msra.mxu0 %v998
  %2942 = vmatprep.subr.mxu0 0.0
  %2943 = vmatpush1.msra.mxu0 %v999
  %2944 = vmatprep.subr.mxu0 0.0
  %2945 = vmatpush1.msra.mxu0 %v1000
  %2946 = vmatprep.subr.mxu0 0.0
  %2947 = vmatpush1.msra.mxu0 %v1001
  %2948 = vmatprep.subr.mxu0 0.0
  %2949 = vmatpush1.msra.mxu0 %v1002
  %2950 = vmatprep.subr.mxu0 0.0
  %2951 = vmatpush1.msra.mxu0 %v1003
  %2952 = vmatprep.subr.mxu0 0.0
  %2953 = vmatpush1.msra.mxu0 %v1004
  %2954 = vmatprep.subr.mxu0 0.0
  %2955 = vmatpush1.msra.mxu0 %v1005
  %2956 = vmatprep.subr.mxu0 0.0
  %2957 = vmatpush1.msra.mxu0 %v1006
  %2958 = vmatprep.subr.mxu0 0.0
  %2959 = vmatpush1.msra.mxu0 %v1007
  %2960 = vmatprep.subr.mxu0 0.0
  %2961 = vmatpush1.msra.mxu0 %v1008
  %2962 = vmatprep.subr.mxu0 0.0
  %2963 = vmatpush1.msra.mxu0 %v1009
  %2964 = vmatprep.subr.mxu0 0.0
  %2965 = vmatpush1.msra.mxu0 %v1010
  %2966 = vmatprep.subr.mxu0 0.0
  %2967 = vmatpush1.msra.mxu0 %v1011
  %2968 = vmatprep.subr.mxu0 0.0
  %2969 = vmatpush1.msra.mxu0 %v1012
  %2970 = vmatprep.subr.mxu0 0.0
  %2971 = vmatpush1.msra.mxu0 %v1013
  %2972 = vmatprep.subr.mxu0 0.0
  %2973 = vmatpush1.msra.mxu0 %v1014
  %2974 = vmatprep.subr.mxu0 0.0
  %2975 = vmatpush1.msra.mxu0 %v1015
  %2976 = vmatprep.subr.mxu0 0.0
  %2977 = vmatpush1.msra.mxu0 %v1016
  %2978 = vmatprep.subr.mxu0 0.0
  %2979 = vmatpush1.msra.mxu0 %v1017
  %2980 = vmatprep.subr.mxu0 0.0
  %2981 = vmatpush1.msra.mxu0 %v1018
  %2982 = vmatprep.subr.mxu0 0.0
  %2983 = vmatpush1.msra.mxu0 %v1019
  %2984 = vmatprep.subr.mxu0 0.0
  %2985 = vmatpush1.msra.mxu0 %v1020
  %2986 = vmatprep.subr.mxu0 0.0
  %2987 = vmatpush1.msra.mxu0 %v1021
  %2988 = vmatprep.subr.mxu0 0.0
  %2989 = vmatpush1.msra.mxu0 %v1022
  %2990 = vmatprep.subr.mxu0 0.0
  %2991 = vmatpush1.msra.mxu0 %v1023
  %2992 = vmatprep.subr.mxu0 0.0
  %2993 = vmatpush1.msra.mxu0 %v1024
  %2994 = vmatprep.subr.mxu0 0.0
  %2995 = vmatpush1.msra.mxu0 %v1025
  %2996 = vmatprep.mubr.f32.mxu0 %v2001
  %2997 = vmatmul.mubr.f32.gmra.mrb[0].mxu0 %v1999
  %v2998 = vpop.f32.mrb[0].mxu0
  %v2999 = vadd.f32 %v1063, %v2998
  %v3000 = vpop.f32.mrb[0].mxu0
  %3001 = vdwg.mxu0
  %3002 = vmatprep.subr.mxu0 0.0
  %3003 = vmatpush1.msra.mxu0 %v1026
  %3004 = vmatprep.subr.mxu0 0.0
  %3005 = vmatpush1.msra.mxu0 %v1027
  %3006 = vmatprep.subr.mxu0 0.0
  %3007 = vmatpush1.msra.mxu0 %v1028
  %3008 = vmatprep.subr.mxu0 0.0
  %3009 = vmatpush1.msra.mxu0 %v1029
  %3010 = vmatprep.subr.mxu0 0.0
  %3011 = vmatpush1.msra.mxu0 %v1030
  %3012 = vmatprep.subr.mxu0 0.0
  %3013 = vmatpush1.msra.mxu0 %v1031
  %3014 = vmatprep.subr.mxu0 0.0
  %3015 = vmatpush1.msra.mxu0 %v1032
  %3016 = vmatprep.subr.mxu0 0.0
  %3017 = vmatpush1.msra.mxu0 %v1033
  %3018 = vmatprep.subr.mxu0 0.0
  %3019 = vmatpush1.msra.mxu0 %v1034
  %3020 = vmatprep.subr.mxu0 0.0
  %3021 = vmatpush1.msra.mxu0 %v1035
  %3022 = vmatprep.subr.mxu0 0.0
  %3023 = vmatpush1.msra.mxu0 %v1036
  %3024 = vmatprep.subr.mxu0 0.0
  %3025 = vmatpush1.msra.mxu0 %v1037
  %3026 = vmatprep.subr.mxu0 0.0
  %3027 = vmatpush1.msra.mxu0 %v1038
  %3028 = vmatprep.subr.mxu0 0.0
  %3029 = vmatpush1.msra.mxu0 %v1039
  %3030 = vmatprep.subr.mxu0 0.0
  %3031 = vmatpush1.msra.mxu0 %v1040
  %3032 = vmatprep.subr.mxu0 0.0
  %3033 = vmatpush1.msra.mxu0 %v1041
  %3034 = vmatprep.subr.mxu0 0.0
  %3035 = vmatpush1.msra.mxu0 %v1042
  %3036 = vmatprep.subr.mxu0 0.0
  %3037 = vmatpush1.msra.mxu0 %v1043
  %3038 = vmatprep.subr.mxu0 0.0
  %3039 = vmatpush1.msra.mxu0 %v1044
  %3040 = vmatprep.subr.mxu0 0.0
  %3041 = vmatpush1.msra.mxu0 %v1045
  %3042 = vmatprep.subr.mxu0 0.0
  %3043 = vmatpush1.msra.mxu0 %v1046
  %3044 = vmatprep.subr.mxu0 0.0
  %3045 = vmatpush1.msra.mxu0 %v1047
  %3046 = vmatprep.subr.mxu0 0.0
  %3047 = vmatpush1.msra.mxu0 %v1048
  %3048 = vmatprep.subr.mxu0 0.0
  %3049 = vmatpush1.msra.mxu0 %v1049
  %3050 = vmatprep.subr.mxu0 0.0
  %3051 = vmatpush1.msra.mxu0 %v1050
  %3052 = vmatprep.subr.mxu0 0.0
  %3053 = vmatpush1.msra.mxu0 %v1051
  %3054 = vmatprep.subr.mxu0 0.0
  %3055 = vmatpush1.msra.mxu0 %v1052
  %3056 = vmatprep.subr.mxu0 0.0
  %3057 = vmatpush1.msra.mxu0 %v1053
  %3058 = vmatprep.subr.mxu0 0.0
  %3059 = vmatpush1.msra.mxu0 %v1054
  %3060 = vmatprep.subr.mxu0 0.0
  %3061 = vmatpush1.msra.mxu0 %v1055
  %3062 = vmatprep.subr.mxu0 0.0
  %3063 = vmatpush1.msra.mxu0 %v1056
  %3064 = vmatprep.subr.mxu0 0.0
  %3065 = vmatpush1.msra.mxu0 %v1057
  %3066 = vmatprep.mubr.f32.mxu0 %v2692
  %3067 = vmatmul.mubr.f32.gmra.mrb[0].mxu0 %v2690
  %v3068 = vpop.f32.mrb[0].mxu0
  %v3069 = vadd.f32 %v2999, %v3068
  %v3070 = vpop.f32.mrb[0].mxu0
  %3071 = vdwg.mxu0
  %v3072 = vmax.f32 %v3069, 0.0
  %v3073 = vld [vmem:[%s6 + $0x200] sm:$0xff]
  %v3074 = vld [vmem:[%s6 + $0x208] sm:$0xff]
  %v3075 = vld [vmem:[%s6 + $0x210] sm:$0xff]
  %v3076 = vld [vmem:[%s6 + $0x218] sm:$0xff]
  %v3077 = vld [vmem:[%s6 + $0x220] sm:$0xff]
  %v3078 = vld [vmem:[%s6 + $0x228] sm:$0xff]
  %v3079 = vld [vmem:[%s6 + $0x230] sm:$0xff]
  %v3080 = vld [vmem:[%s6 + $0x238] sm:$0xff]
  %v3082 = vsel %vm1228, %v3072, 0
  %3084 = vmatprep.subr.mxu0 0.0
  %3085 = vmatpush1.msra.mxu0 %v3073
  %3086 = vmatprep.subr.mxu0 0.0
  %3087 = vmatpush1.msra.mxu0 %v3074
  %3088 = vmatprep.subr.mxu0 0.0
  %3089 = vmatpush1.msra.mxu0 %v3075
  %3090 = vmatprep.subr.mxu0 0.0
  %3091 = vmatpush1.msra.mxu0 %v3076
  %3092 = vmatprep.subr.mxu0 0.0
  %3093 = vmatpush1.msra.mxu0 %v3077
  %3094 = vmatprep.subr.mxu0 0.0
  %3095 = vmatpush1.msra.mxu0 %v3078
  %3096 = vmatprep.subr.mxu0 0.0
  %3097 = vmatpush1.msra.mxu0 %v3079
  %3098 = vmatprep.subr.mxu0 0.0
  %3099 = vmatpush1.msra.mxu0 %v3080
  %3100 = vmatprep.subr.mxu0 0.0
  %3101 = vmatpush1.msra.mxu0 0.0
  %3102 = vmatprep.subr.mxu0 0.0
  %3103 = vmatpush1.msra.mxu0 0.0
  %3104 = vmatprep.subr.mxu0 0.0
  %3105 = vmatpush1.msra.mxu0 0.0
  %3106 = vmatprep.subr.mxu0 0.0
  %3107 = vmatpush1.msra.mxu0 0.0
  %3108 = vmatprep.subr.mxu0 0.0
  %3109 = vmatpush1.msra.mxu0 0.0
  %3110 = vmatprep.subr.mxu0 0.0
  %3111 = vmatpush1.msra.mxu0 0.0
  %3112 = vmatprep.subr.mxu0 0.0
  %3113 = vmatpush1.msra.mxu0 0.0
  %3114 = vmatprep.subr.mxu0 0.0
  %3115 = vmatpush1.msra.mxu0 0.0
  %3116 = vmatprep.subr.mxu0 0.0
  %3117 = vmatpush1.msra.mxu0 0.0
  %3118 = vmatprep.subr.mxu0 0.0
  %3119 = vmatpush1.msra.mxu0 0.0
  %3120 = vmatprep.subr.mxu0 0.0
  %3121 = vmatpush1.msra.mxu0 0.0
  %3122 = vmatprep.subr.mxu0 0.0
  %3123 = vmatpush1.msra.mxu0 0.0
  %3124 = vmatprep.subr.mxu0 0.0
  %3125 = vmatpush1.msra.mxu0 0.0
  %3126 = vmatprep.subr.mxu0 0.0
  %3127 = vmatpush1.msra.mxu0 0.0
  %3128 = vmatprep.subr.mxu0 0.0
  %3129 = vmatpush1.msra.mxu0 0.0
  %3130 = vmatprep.subr.mxu0 0.0
  %3131 = vmatpush1.msra.mxu0 0.0
  %3132 = vmatprep.subr.mxu0 0.0
  %3133 = vmatpush1.msra.mxu0 0.0
  %3134 = vmatprep.subr.mxu0 0.0
  %3135 = vmatpush1.msra.mxu0 0.0
  %3136 = vmatprep.subr.mxu0 0.0
  %3137 = vmatpush1.msra.mxu0 0.0
  %3138 = vmatprep.subr.mxu0 0.0
  %3139 = vmatpush1.msra.mxu0 0.0
  %3140 = vmatprep.subr.mxu0 0.0
  %3141 = vmatpush1.msra.mxu0 0.0
  %3142 = vmatprep.subr.mxu0 0.0
  %3143 = vmatpush1.msra.mxu0 0.0
  %3144 = vmatprep.subr.mxu0 0.0
  %3145 = vmatpush1.msra.mxu0 0.0
  %3146 = vmatprep.subr.mxu0 0.0
  %3147 = vmatpush1.msra.mxu0 0.0
  %3148 = vmatprep.mubr.f32.mxu0 0.0
  %3149 = vmatmul.mubr.f32.gmra.mrb[0].mxu0 %v3082
  %v3150 = vpop.f32.mrb[0].mxu0
  %v3151 = vadd.f32 0.0, %v3150
  %v3152 = vpop.f32.mrb[0].mxu0
  %3153 = vdwg.mxu0
  %v3154 = vadd.f32 %v2931, %v3151
  %v3155 = vld [vmem:[%s7] sm:$0x1]
  %v3157 = vlaneseq
  %v3158 = vshrl.u32 %v3157, 7
  %v3159 = vsub.s32 0, %v3158
  %v3160 = vrot.slane %v3155, %v3159
  %v3162 = vadd.f32 %v3154, %v3160
  %v3163 = vmax.f32 %v3162, 0.0
  %v3164 = vld [vmem:[%s8] sm:$0xff]
  %v3165 = vld [vmem:[%s8 + $0x8] sm:$0xff]
  %v3166 = vld [vmem:[%s8 + $0x10] sm:$0xff]
  %v3167 = vld [vmem:[%s8 + $0x18] sm:$0xff]
  %v3168 = vld [vmem:[%s9] sm:$0x1]
  %v3170 = vlaneseq
  %v3171 = vshrl.u32 %v3170, 7
  %v3172 = vsub.s32 0, %v3171
  %v3173 = vrot.slane %v3168, %v3172
  %v3176 = vsel %vm730, %v3163, 0
  %3178 = vmatprep.subr.mxu0 0.0
  %3179 = vmatpush1.msra.mxu0 %v3164
  %3180 = vmatprep.subr.mxu0 0.0
  %3181 = vmatpush1.msra.mxu0 %v3165
  %3182 = vmatprep.subr.mxu0 0.0
  %3183 = vmatpush1.msra.mxu0 %v3166
  %3184 = vmatprep.subr.mxu0 0.0
  %3185 = vmatpush1.msra.mxu0 %v3167
  %3186 = vmatprep.subr.mxu0 0.0
  %3187 = vmatpush1.msra.mxu0 0.0
  %3188 = vmatprep.subr.mxu0 0.0
  %3189 = vmatpush1.msra.mxu0 0.0
  %3190 = vmatprep.subr.mxu0 0.0
  %3191 = vmatpush1.msra.mxu0 0.0
  %3192 = vmatprep.subr.mxu0 0.0
  %3193 = vmatpush1.msra.mxu0 0.0
  %3194 = vmatprep.subr.mxu0 0.0
  %3195 = vmatpush1.msra.mxu0 0.0
  %3196 = vmatprep.subr.mxu0 0.0
  %3197 = vmatpush1.msra.mxu0 0.0
  %3198 = vmatprep.subr.mxu0 0.0
  %3199 = vmatpush1.msra.mxu0 0.0
  %3200 = vmatprep.subr.mxu0 0.0
  %3201 = vmatpush1.msra.mxu0 0.0
  %3202 = vmatprep.subr.mxu0 0.0
  %3203 = vmatpush1.msra.mxu0 0.0
  %3204 = vmatprep.subr.mxu0 0.0
  %3205 = vmatpush1.msra.mxu0 0.0
  %3206 = vmatprep.subr.mxu0 0.0
  %3207 = vmatpush1.msra.mxu0 0.0
  %3208 = vmatprep.subr.mxu0 0.0
  %3209 = vmatpush1.msra.mxu0 0.0
  %3210 = vmatprep.subr.mxu0 0.0
  %3211 = vmatpush1.msra.mxu0 0.0
  %3212 = vmatprep.subr.mxu0 0.0
  %3213 = vmatpush1.msra.mxu0 0.0
  %3214 = vmatprep.subr.mxu0 0.0
  %3215 = vmatpush1.msra.mxu0 0.0
  %3216 = vmatprep.subr.mxu0 0.0
  %3217 = vmatpush1.msra.mxu0 0.0
  %3218 = vmatprep.subr.mxu0 0.0
  %3219 = vmatpush1.msra.mxu0 0.0
  %3220 = vmatprep.subr.mxu0 0.0
  %3221 = vmatpush1.msra.mxu0 0.0
  %3222 = vmatprep.subr.mxu0 0.0
  %3223 = vmatpush1.msra.mxu0 0.0
  %3224 = vmatprep.subr.mxu0 0.0
  %3225 = vmatpush1.msra.mxu0 0.0
  %3226 = vmatprep.subr.mxu0 0.0
  %3227 = vmatpush1.msra.mxu0 0.0
  %3228 = vmatprep.subr.mxu0 0.0
  %3229 = vmatpush1.msra.mxu0 0.0
  %3230 = vmatprep.subr.mxu0 0.0
  %3231 = vmatpush1.msra.mxu0 0.0
  %3232 = vmatprep.subr.mxu0 0.0
  %3233 = vmatpush1.msra.mxu0 0.0
  %3234 = vmatprep.subr.mxu0 0.0
  %3235 = vmatpush1.msra.mxu0 0.0
  %3236 = vmatprep.subr.mxu0 0.0
  %3237 = vmatpush1.msra.mxu0 0.0
  %3238 = vmatprep.subr.mxu0 0.0
  %3239 = vmatpush1.msra.mxu0 0.0
  %3240 = vmatprep.subr.mxu0 0.0
  %3241 = vmatpush1.msra.mxu0 0.0
  %3242 = vmatprep.mubr.f32.mxu0 0.0
  %3243 = vmatmul.mubr.f32.gmra.mrb[0].mxu0 %v3176
  %v3244 = vpop.f32.mrb[0].mxu0
  %v3245 = vadd.f32 %v3173, %v3244
  %v3246 = vpop.f32.mrb[0].mxu0
  %3247 = vdwg.mxu0
  %v3248 = vmax.f32 %v3245, 0.0
  %v3249 = vlaneseq
  %v3250 = vand.u32 %v3249, 127
  %v3251 = vld [vmem:[%s1] sm:$0xff]
  %3252 = vset.pattern.permute.xlu0 0
  %3253 = vperm.xlu0 %3252, %v3251
  %v3254 = vpop.permute.xlu0 %3253
  %vm3255 = vcmp.eq.s32.totalorder %v3250, %v3254
  %v3256 = vsel %vm3255, 1, 0
  %v3257 = vcvt.s32.f32 %v3256
  %v3258 = vld [vmem:[%s10] sm:$0xff]
  %v3259 = vld [vmem:[%s10 + $0x8] sm:$0xff]
  %v3260 = vld [vmem:[%s10 + $0x10] sm:$0xff]
  %v3261 = vld [vmem:[%s10 + $0x18] sm:$0xff]
  %v3262 = vld [vmem:[%s10 + $0x20] sm:$0xff]
  %v3263 = vld [vmem:[%s10 + $0x28] sm:$0xff]
  %v3264 = vld [vmem:[%s10 + $0x30] sm:$0xff]
  %v3265 = vld [vmem:[%s10 + $0x38] sm:$0xff]
  %v3266 = vld [vmem:[%s11] sm:$0x3f]
  %vm3267 = vcmask 48128
  %v3269 = vsel %vm3267, %v3257, 0
  %vm3271 = vcmask 1045504
  %v3273 = vsel %vm3271, %v3266, 0
  %3275 = vmatprep.subr.mxu0 0.0
  %3276 = vmatpush1.msra.mxu0 %v3273
  %3277 = vmatprep.subr.mxu0 0.0
  %3278 = vmatpush1.msra.mxu0 0.0
  %3279 = vmatprep.subr.mxu0 0.0
  %3280 = vmatpush1.msra.mxu0 0.0
  %3281 = vmatprep.subr.mxu0 0.0
  %3282 = vmatpush1.msra.mxu0 0.0
  %3283 = vmatprep.subr.mxu0 0.0
  %3284 = vmatpush1.msra.mxu0 0.0
  %3285 = vmatprep.subr.mxu0 0.0
  %3286 = vmatpush1.msra.mxu0 0.0
  %3287 = vmatprep.subr.mxu0 0.0
  %3288 = vmatpush1.msra.mxu0 0.0
  %3289 = vmatprep.subr.mxu0 0.0
  %3290 = vmatpush1.msra.mxu0 0.0
  %3291 = vmatprep.subr.mxu0 0.0
  %3292 = vmatpush1.msra.mxu0 0.0
  %3293 = vmatprep.subr.mxu0 0.0
  %3294 = vmatpush1.msra.mxu0 0.0
  %3295 = vmatprep.subr.mxu0 0.0
  %3296 = vmatpush1.msra.mxu0 0.0
  %3297 = vmatprep.subr.mxu0 0.0
  %3298 = vmatpush1.msra.mxu0 0.0
  %3299 = vmatprep.subr.mxu0 0.0
  %3300 = vmatpush1.msra.mxu0 0.0
  %3301 = vmatprep.subr.mxu0 0.0
  %3302 = vmatpush1.msra.mxu0 0.0
  %3303 = vmatprep.subr.mxu0 0.0
  %3304 = vmatpush1.msra.mxu0 0.0
  %3305 = vmatprep.subr.mxu0 0.0
  %3306 = vmatpush1.msra.mxu0 0.0
  %3307 = vmatprep.subr.mxu0 0.0
  %3308 = vmatpush1.msra.mxu0 0.0
  %3309 = vmatprep.subr.mxu0 0.0
  %3310 = vmatpush1.msra.mxu0 0.0
  %3311 = vmatprep.subr.mxu0 0.0
  %3312 = vmatpush1.msra.mxu0 0.0
  %3313 = vmatprep.subr.mxu0 0.0
  %3314 = vmatpush1.msra.mxu0 0.0
  %3315 = vmatprep.subr.mxu0 0.0
  %3316 = vmatpush1.msra.mxu0 0.0
  %3317 = vmatprep.subr.mxu0 0.0
  %3318 = vmatpush1.msra.mxu0 0.0
  %3319 = vmatprep.subr.mxu0 0.0
  %3320 = vmatpush1.msra.mxu0 0.0
  %3321 = vmatprep.subr.mxu0 0.0
  %3322 = vmatpush1.msra.mxu0 0.0
  %3323 = vmatprep.subr.mxu0 0.0
  %3324 = vmatpush1.msra.mxu0 0.0
  %3325 = vmatprep.subr.mxu0 0.0
  %3326 = vmatpush1.msra.mxu0 0.0
  %3327 = vmatprep.subr.mxu0 0.0
  %3328 = vmatpush1.msra.mxu0 0.0
  %3329 = vmatprep.subr.mxu0 0.0
  %3330 = vmatpush1.msra.mxu0 0.0
  %3331 = vmatprep.subr.mxu0 0.0
  %3332 = vmatpush1.msra.mxu0 0.0
  %3333 = vmatprep.subr.mxu0 0.0
  %3334 = vmatpush1.msra.mxu0 0.0
  %3335 = vmatprep.subr.mxu0 0.0
  %3336 = vmatpush1.msra.mxu0 0.0
  %3337 = vmatprep.subr.mxu0 0.0
  %3338 = vmatpush1.msra.mxu0 0.0
  %3339 = vmatprep.mubr.f32.mxu0 0.0
  %3340 = vmatmul.mubr.f32.gmra.mrb[0].mxu0 %v3269
  %v3341 = vpop.f32.mrb[0].mxu0
  %v3342 = vadd.f32 0.0, %v3341
  %v3343 = vpop.f32.mrb[0].mxu0
  %3344 = vdwg.mxu0
  %v3346 = vsel %vm1228, %v3248, 0
  %3348 = vmatprep.subr.mxu0 0.0
  %3349 = vmatpush1.msra.mxu0 %v3258
  %3350 = vmatprep.subr.mxu0 0.0
  %3351 = vmatpush1.msra.mxu0 %v3259
  %3352 = vmatprep.subr.mxu0 0.0
  %3353 = vmatpush1.msra.mxu0 %v3260
  %3354 = vmatprep.subr.mxu0 0.0
  %3355 = vmatpush1.msra.mxu0 %v3261
  %3356 = vmatprep.subr.mxu0 0.0
  %3357 = vmatpush1.msra.mxu0 %v3262
  %3358 = vmatprep.subr.mxu0 0.0
  %3359 = vmatpush1.msra.mxu0 %v3263
  %3360 = vmatprep.subr.mxu0 0.0
  %3361 = vmatpush1.msra.mxu0 %v3264
  %3362 = vmatprep.subr.mxu0 0.0
  %3363 = vmatpush1.msra.mxu0 %v3265
  %3364 = vmatprep.subr.mxu0 0.0
  %3365 = vmatpush1.msra.mxu0 0.0
  %3366 = vmatprep.subr.mxu0 0.0
  %3367 = vmatpush1.msra.mxu0 0.0
  %3368 = vmatprep.subr.mxu0 0.0
  %3369 = vmatpush1.msra.mxu0 0.0
  %3370 = vmatprep.subr.mxu0 0.0
  %3371 = vmatpush1.msra.mxu0 0.0
  %3372 = vmatprep.subr.mxu0 0.0
  %3373 = vmatpush1.msra.mxu0 0.0
  %3374 = vmatprep.subr.mxu0 0.0
  %3375 = vmatpush1.msra.mxu0 0.0
  %3376 = vmatprep.subr.mxu0 0.0
  %3377 = vmatpush1.msra.mxu0 0.0
  %3378 = vmatprep.subr.mxu0 0.0
  %3379 = vmatpush1.msra.mxu0 0.0
  %3380 = vmatprep.subr.mxu0 0.0
  %3381 = vmatpush1.msra.mxu0 0.0
  %3382 = vmatprep.subr.mxu0 0.0
  %3383 = vmatpush1.msra.mxu0 0.0
  %3384 = vmatprep.subr.mxu0 0.0
  %3385 = vmatpush1.msra.mxu0 0.0
  %3386 = vmatprep.subr.mxu0 0.0
  %3387 = vmatpush1.msra.mxu0 0.0
  %3388 = vmatprep.subr.mxu0 0.0
  %3389 = vmatpush1.msra.mxu0 0.0
  %3390 = vmatprep.subr.mxu0 0.0
  %3391 = vmatpush1.msra.mxu0 0.0
  %3392 = vmatprep.subr.mxu0 0.0
  %3393 = vmatpush1.msra.mxu0 0.0
  %3394 = vmatprep.subr.mxu0 0.0
  %3395 = vmatpush1.msra.mxu0 0.0
  %3396 = vmatprep.subr.mxu0 0.0
  %3397 = vmatpush1.msra.mxu0 0.0
  %3398 = vmatprep.subr.mxu0 0.0
  %3399 = vmatpush1.msra.mxu0 0.0
  %3400 = vmatprep.subr.mxu0 0.0
  %3401 = vmatpush1.msra.mxu0 0.0
  %3402 = vmatprep.subr.mxu0 0.0
  %3403 = vmatpush1.msra.mxu0 0.0
  %3404 = vmatprep.subr.mxu0 0.0
  %3405 = vmatpush1.msra.mxu0 0.0
  %3406 = vmatprep.subr.mxu0 0.0
  %3407 = vmatpush1.msra.mxu0 0.0
  %3408 = vmatprep.subr.mxu0 0.0
  %3409 = vmatpush1.msra.mxu0 0.0
  %3410 = vmatprep.subr.mxu0 0.0
  %3411 = vmatpush1.msra.mxu0 0.0
  %3412 = vmatprep.mubr.f32.mxu0 0.0
  %3413 = vmatmul.mubr.f32.gmra.mrb[0].mxu0 %v3346
  %v3414 = vpop.f32.mrb[0].mxu0
  %v3415 = vadd.f32 %v3342, %v3414
  %v3416 = vpop.f32.mrb[0].mxu0
  %3417 = vdwg.mxu0
  %v3418 = vld [vmem:[%s12] sm:$0x1]
  %v3420 = vlaneseq
  %v3421 = vshrl.u32 %v3420, 7
  %v3422 = vsub.s32 0, %v3421
  %v3423 = vrot.slane %v3418, %v3422
  %v3425 = vadd.f32 %v3415, %v3423
  %v3426 = vmax.f32 %v3425, 0.0
  %v3427 = vld [vmem:[%s13] sm:$0xff]
  %v3428 = vld [vmem:[%s13 + $0x8] sm:$0xff]
  %v3429 = vld [vmem:[%s13 + $0x10] sm:$0xff]
  %v3430 = vld [vmem:[%s13 + $0x18] sm:$0xff]
  %v3431 = vld [vmem:[%s13 + $0x20] sm:$0xff]
  %v3432 = vld [vmem:[%s13 + $0x28] sm:$0xff]
  %v3433 = vld [vmem:[%s13 + $0x30] sm:$0xff]
  %v3434 = vld [vmem:[%s13 + $0x38] sm:$0xff]
  %v3435 = vld [vmem:[%s14] sm:$0x3]
  %v3437 = vlaneseq
  %v3438 = vshrl.u32 %v3437, 7
  %v3439 = vsub.s32 0, %v3438
  %v3440 = vrot.slane %v3435, %v3439
  %v3441 = vlaneseq
  %v3442 = vshrl.u32 %v3441, 7
  %v3443 = vsub.s32 1, %v3442
  %v3444 = vrot.slane %v3435, %v3443
  %v3448 = vsel %vm730, %v3426, 0
  %3450 = vmatprep.subr.mxu0 %v3428
  %3451 = vmatpush1.msra.mxu0 %v3427
  %3452 = vmatprep.subr.mxu0 %v3430
  %3453 = vmatpush1.msra.mxu0 %v3429
  %3454 = vmatprep.subr.mxu0 %v3432
  %3455 = vmatpush1.msra.mxu0 %v3431
  %3456 = vmatprep.subr.mxu0 %v3434
  %3457 = vmatpush1.msra.mxu0 %v3433
  %3458 = vmatprep.subr.mxu0 0.0
  %3459 = vmatpush1.msra.mxu0 0.0
  %3460 = vmatprep.subr.mxu0 0.0
  %3461 = vmatpush1.msra.mxu0 0.0
  %3462 = vmatprep.subr.mxu0 0.0
  %3463 = vmatpush1.msra.mxu0 0.0
  %3464 = vmatprep.subr.mxu0 0.0
  %3465 = vmatpush1.msra.mxu0 0.0
  %3466 = vmatprep.subr.mxu0 0.0
  %3467 = vmatpush1.msra.mxu0 0.0
  %3468 = vmatprep.subr.mxu0 0.0
  %3469 = vmatpush1.msra.mxu0 0.0
  %3470 = vmatprep.subr.mxu0 0.0
  %3471 = vmatpush1.msra.mxu0 0.0
  %3472 = vmatprep.subr.mxu0 0.0
  %3473 = vmatpush1.msra.mxu0 0.0
  %3474 = vmatprep.subr.mxu0 0.0
  %3475 = vmatpush1.msra.mxu0 0.0
  %3476 = vmatprep.subr.mxu0 0.0
  %3477 = vmatpush1.msra.mxu0 0.0
  %3478 = vmatprep.subr.mxu0 0.0
  %3479 = vmatpush1.msra.mxu0 0.0
  %3480 = vmatprep.subr.mxu0 0.0
  %3481 = vmatpush1.msra.mxu0 0.0
  %3482 = vmatprep.subr.mxu0 0.0
  %3483 = vmatpush1.msra.mxu0 0.0
  %3484 = vmatprep.subr.mxu0 0.0
  %3485 = vmatpush1.msra.mxu0 0.0
  %3486 = vmatprep.subr.mxu0 0.0
  %3487 = vmatpush1.msra.mxu0 0.0
  %3488 = vmatprep.subr.mxu0 0.0
  %3489 = vmatpush1.msra.mxu0 0.0
  %3490 = vmatprep.subr.mxu0 0.0
  %3491 = vmatpush1.msra.mxu0 0.0
  %3492 = vmatprep.subr.mxu0 0.0
  %3493 = vmatpush1.msra.mxu0 0.0
  %3494 = vmatprep.subr.mxu0 0.0
  %3495 = vmatpush1.msra.mxu0 0.0
  %3496 = vmatprep.subr.mxu0 0.0
  %3497 = vmatpush1.msra.mxu0 0.0
  %3498 = vmatprep.subr.mxu0 0.0
  %3499 = vmatpush1.msra.mxu0 0.0
  %3500 = vmatprep.subr.mxu0 0.0
  %3501 = vmatpush1.msra.mxu0 0.0
  %3502 = vmatprep.subr.mxu0 0.0
  %3503 = vmatpush1.msra.mxu0 0.0
  %3504 = vmatprep.subr.mxu0 0.0
  %3505 = vmatpush1.msra.mxu0 0.0
  %3506 = vmatprep.subr.mxu0 0.0
  %3507 = vmatpush1.msra.mxu0 0.0
  %3508 = vmatprep.subr.mxu0 0.0
  %3509 = vmatpush1.msra.mxu0 0.0
  %3510 = vmatprep.subr.mxu0 0.0
  %3511 = vmatpush1.msra.mxu0 0.0
  %3512 = vmatprep.subr.mxu0 0.0
  %3513 = vmatpush1.msra.mxu0 0.0
  %3514 = vmatprep.mubr.f32.mxu0 0.0
  %3515 = vmatmul.mubr.f32.gmra.mrb[0].mxu0 %v3448
  %v3516 = vpop.f32.mrb[0].mxu0
  %v3517 = vadd.f32 %v3440, %v3516
  %v3518 = vpop.f32.mrb[0].mxu0
  %v3519 = vadd.f32 %v3444, %v3518
  %3520 = vdwg.mxu0
  %3521 = vst [vmem:[%s15] sm:$0xff] %v3517
  %v3522 = vmax.f32 %v3519, -20.0
  %v3523 = vmin.f32 %v3522, 2.0
  %v3524 = vmul.f32 %v3523, 1.442695
  %v3525 = vpow.pop %v3524
  %3526 = vst [vmem:[%s15 + $0x8] sm:$0xff] %v3525
  // Predicated region
  $region62: #{cnn_base_forward.1} parent=0 // pred_check
    _
  $region63: #{cnn_base_forward.1} parent=0 // pred_check_branch
    %3528 = sbr.rel (0) target = $region65
  $region64: #{cnn_base_forward.1} parent=0 // pred_region
    _
  $region65: #{cnn_base_forward.1} parent=0 // pred_fallthru
    _
  // Predicated region
  $region66: #{cnn_base_forward.1} parent=0 // pred_check
    _
  $region67: #{cnn_base_forward.1} parent=0 // pred_check_branch
    %3530 = sbr.rel (0) target = $region69
  $region68: #{cnn_base_forward.1} parent=0 // pred_region
    _
  $region69: #{cnn_base_forward.1} parent=0 // pred_fallthru
    _

</llo_original>
